<compile_context>
chip_gen: v7x
topology: tpu7x:2x2x1
jax: 0.10.0
libtpu: 0.0.40
codegen_flags: <defaults>
</compile_context>

<pallas_src>
import functools

import jax
import jax.numpy as jnp
from jax.experimental import pallas as pl
from jax.experimental.pallas import tpu as pltpu

LANE = 128
SUBLANE = 8


def _round_up(n, m):
    return ((n + m - 1) // m) * m


# ---------------------------------------------------------------------------
# Fused forward kernel (no grid: straight-line, time loops fully unrolled).
# ---------------------------------------------------------------------------
def _fused_ae_kernel(
    x_ref,                                    # (S*Bp, Fp)   f32  time-major flat
    w1i_ref, w1h_ref, b1_ref,                 # enc_rnn1: (Fp,4P1) / (P1,4P1) / (1,4P1)
    w2s_ref, b2_ref,                          # enc_rnn2 stacked: (P1+P2,4P2) / (1,4P2)
    w3i_ref, w3h_ref, b3_ref,                 # dec_rnn1: (P2,4P3) / (P3,4P3) / (1,4P3)
    w4s_ref, b4_ref,                          # dec_rnn2 stacked: (P3+P4,4P4) / (1,4P4)
    fcw_ref, fcb_ref,                         # classifier (BN folded): (P2,Cp) / (1,Cp)
    ow_ref, ob_ref,                           # decoder output: (P4,Fp) / (1,Fp)
    recon_ref, prob_ref,                      # outputs: (S*Bp,Fp) f32 / (Bp,Cp) f32
    *, S, Bp,
):
    P1 = w1h_ref.shape[0]
    P2 = w2s_ref.shape[1] // 4
    P3 = w3h_ref.shape[0]
    P4 = w4s_ref.shape[1] // 4

    def mm(a_f32, w_ref, b_ref=None):
        # bf16 x bf16 -> f32 accumulation on the MXU.
        y = jnp.dot(a_f32.astype(jnp.bfloat16), w_ref[...],
                    preferred_element_type=jnp.float32)
        if b_ref is not None:
            y = y + b_ref[...]
        return y

    def cell(gates, c, P):
        # One EUP pass of each nonlinearity over the whole packed gate tile,
        # then in-vreg lane slices (XLU) to extract the gates.
        sg = jax.nn.sigmoid(gates)
        tg = jnp.tanh(gates)
        i_g = sg[:, 0 * P:1 * P]
        f_g = sg[:, 1 * P:2 * P]
        g_g = tg[:, 2 * P:3 * P]
        o_g = sg[:, 3 * P:4 * P]
        c_new = f_g * c + i_g * g_g
        h_new = o_g * jnp.tanh(c_new)
        return h_new, c_new

    zeros = lambda p: jnp.zeros((Bp, p), jnp.float32)

    # ---- encoder: interleaved rnn1 (F -> 2E) + rnn2 (2E -> E) --------------
    # Input projection of layer 1 hoisted out of the recurrence (one matmul).
    xproj1 = mm(x_ref[...], w1i_ref, b1_ref)                   # (S*Bp, 4*P1)
    h1, c1 = zeros(P1), zeros(P1)
    h2, c2 = zeros(P2), zeros(P2)
    # TODO(synk): for S > ~16 switch this static unroll to lax.fori_loop with
    # a small unroll factor to bound vreg live ranges / compile time.
    for t in range(S):                                         # full-tile rows
        g1 = xproj1[t * Bp:(t + 1) * Bp, :] + mm(h1, w1h_ref)
        h1, c1 = cell(g1, c1, P1)
        # Layer 2: one stacked matmul of [h1_t, h2_{t-1}] @ [W_ih^T; W_hh^T].
        g2 = mm(jnp.concatenate([h1, h2], axis=1), w2s_ref, b2_ref)
        h2, c2 = cell(g2, c2, P2)
    z = h2                                                     # (Bp, P2)

    # ---- classifier: BatchNorm folded into the Linear in the wrapper -------
    prob_ref[...] = mm(z, fcw_ref, fcb_ref)

    # ---- decoder: interleaved rnn1 (E -> E, constant z input) + rnn2 -------
    zproj3 = mm(z, w3i_ref, b3_ref)          # constant input projection, once
    h3, c3 = zeros(P3), zeros(P3)
    h4, c4 = zeros(P4), zeros(P4)
    h4_seq = []
    for t in range(S):
        g3 = zproj3 + mm(h3, w3h_ref)
        h3, c3 = cell(g3, c3, P3)
        g4 = mm(jnp.concatenate([h3, h4], axis=1), w4s_ref, b4_ref)
        h4, c4 = cell(g4, c4, P4)
        h4_seq.append(h4)

    # ---- decoder output Linear: one batched matmul over all timesteps ------
    h4_all = jnp.concatenate(h4_seq, axis=0)                   # (S*Bp, P4)
    recon_ref[...] = mm(h4_all, ow_ref, ob_ref)


# ---------------------------------------------------------------------------
# Parameter packing: PyTorch layout -> tight gate-packed bf16 matmul weights.
# Gate order [i, f, g, o]; gate g occupies columns [g*H, (g+1)*H).
# NOTE: any padded weight rows/bias lanes MUST stay exactly zero so padded
# input lanes cannot leak into the gates.
# ---------------------------------------------------------------------------
def _pack_lstm_split(p, in_pad):
    """Layer whose input projection is hoisted: returns (W_ih^T, W_hh^T, b)."""
    w_ih = jnp.asarray(p["w_ih"], jnp.float32)                  # (4H, Din)
    w_hh = jnp.asarray(p["w_hh"], jnp.float32)                  # (4H, H)
    b = jnp.asarray(p["b_ih"], jnp.float32) + jnp.asarray(p["b_hh"], jnp.float32)
    H4, Din = w_ih.shape
    wi = jnp.zeros((in_pad, H4), jnp.float32).at[:Din, :].set(w_ih.T)
    wh = w_hh.T                                                 # (H, 4H)
    return wi.astype(jnp.bfloat16), wh.astype(jnp.bfloat16), b.reshape(1, H4)


def _pack_lstm_stacked(p):
    """Second layer of an interleaved pair: stacked [W_ih^T; W_hh^T], b."""
    w_ih = jnp.asarray(p["w_ih"], jnp.float32)                  # (4H, Din)
    w_hh = jnp.asarray(p["w_hh"], jnp.float32)                  # (4H, H)
    b = jnp.asarray(p["b_ih"], jnp.float32) + jnp.asarray(p["b_hh"], jnp.float32)
    H4 = w_ih.shape[0]
    ws = jnp.concatenate([w_ih.T, w_hh.T], axis=0)              # (Din + H, 4H)
    return ws.astype(jnp.bfloat16), b.reshape(1, H4)


# ---------------------------------------------------------------------------
# Full forward: weight packing + single fused pallas_call.
# ---------------------------------------------------------------------------
@functools.partial(jax.jit, static_argnames=("seq_len", "n_features",
                                             "embedding_dim", "n_classes"))
def autoencoder_forward(x, params, *, seq_len, n_features, embedding_dim,
                        n_classes):
    """x: (B, S, F) batch-first (PyTorch convention). Returns (recon, logits)."""
    B = x.shape[0]
    S, F, E, C = seq_len, n_features, embedding_dim, n_classes
    H = 2 * E
    Bp = _round_up(B, SUBLANE)      # sublane-padded batch -> full-tile per-step rows
    Fp = _round_up(F, LANE)         # lane-padded feature width
    Cp = _round_up(C, LANE)         # lane-padded class width

    # Input: batch-first -> time-major, batch padded to sublane tile, lane-padded.
    x_tm = jnp.transpose(x.astype(jnp.float32), (1, 0, 2))          # (S, B, F)
    x_pad = jnp.zeros((S, Bp, Fp), jnp.float32).at[:, :B, :F].set(x_tm)
    x_pad = x_pad.reshape(S * Bp, Fp)

    # LSTM weights (zero padding keeps padded input lanes inert).
    w1i, w1h, b1 = _pack_lstm_split(params["enc_rnn1"], in_pad=Fp)   # F  -> 2E
    w2s, b2 = _pack_lstm_stacked(params["enc_rnn2"])                 # 2E -> E
    w3i, w3h, b3 = _pack_lstm_split(params["dec_rnn1"], in_pad=E)    # E  -> E
    w4s, b4 = _pack_lstm_stacked(params["dec_rnn2"])                 # E  -> 2E

    # Classifier: fold eval-mode BatchNorm1d completely into the Linear.
    c = params["clf"]
    scale = jnp.asarray(c["bn_gamma"], jnp.float32) * jax.lax.rsqrt(
        jnp.asarray(c["bn_var"], jnp.float32) + 1e-5)
    shift = jnp.asarray(c["bn_beta"], jnp.float32) - \
        jnp.asarray(c["bn_mean"], jnp.float32) * scale
    fcw_t = jnp.asarray(c["fc_w"], jnp.float32).T                    # (E, C)
    fcw = jnp.zeros((E, Cp), jnp.float32).at[:, :C].set(
        scale[:, None] * fcw_t).astype(jnp.bfloat16)
    fcb = jnp.zeros((1, Cp), jnp.float32).at[0, :C].set(
        jnp.asarray(c["fc_b"], jnp.float32) + shift @ fcw_t)

    # Decoder output Linear, lane-padded.
    o = params["dec_out"]
    ow = jnp.zeros((H, Fp), jnp.float32).at[:, :F].set(
        jnp.asarray(o["w"], jnp.float32).T).astype(jnp.bfloat16)
    ob = jnp.zeros((1, Fp), jnp.float32).at[0, :F].set(
        jnp.asarray(o["b"], jnp.float32))

    recon_pad, prob_pad = pl.pallas_call(
        functools.partial(_fused_ae_kernel, S=S, Bp=Bp),
        out_shape=(jax.ShapeDtypeStruct((S * Bp, Fp), jnp.float32),
                   jax.ShapeDtypeStruct((Bp, Cp), jnp.float32)),
        # No grid -> weights VMEM-resident once, no double buffering.  Total
        # VMEM footprint here is < 1 MiB; re-derive before scaling S*Bp
        # (v7x physical VMEM is 64 MiB vs 128 MiB on v5e/v6e).
        compiler_params=pltpu.CompilerParams(
            vmem_limit_bytes=32 * 1024 * 1024),
        # TODO(synk): on v7x with batch >= 16, add a 'parallel' batch-tile grid
        # axis (multiple-of-8 rows) so the second TensorCore gets its own shard.
    )(x_pad, w1i, w1h, b1, w2s, b2, w3i, w3h, b3, w4s, b4, fcw, fcb, ow, ob)

    recon = recon_pad.reshape(S, Bp, Fp)[:, :B, :F].transpose(1, 0, 2)  # (B,S,F)
    prob = prob_pad[:B, :C]                                             # logits
    return recon, prob


# ---------------------------------------------------------------------------
# Pure-JAX f32 reference (mirrors the PyTorch module exactly).
# ---------------------------------------------------------------------------
def reference_forward(x, params, *, seq_len):
    def lstm(x_seq, p):
        w_ih = p["w_ih"]; w_hh = p["w_hh"]; b = p["b_ih"] + p["b_hh"]
        Hd = w_hh.shape[1]
        Bsz = x_seq.shape[0]

        def step(carry, x_t):
            h, c0 = carry
            g = x_t @ w_ih.T + h @ w_hh.T + b
            i, f, gg, o = jnp.split(g, 4, axis=1)
            c1 = jax.nn.sigmoid(f) * c0 + jax.nn.sigmoid(i) * jnp.tanh(gg)
            h1 = jax.nn.sigmoid(o) * jnp.tanh(c1)
            return (h1, c1), h1

        init = (jnp.zeros((Bsz, Hd)), jnp.zeros((Bsz, Hd)))
        (hT, _), hs = jax.lax.scan(step, init, jnp.transpose(x_seq, (1, 0, 2)))
        return jnp.transpose(hs, (1, 0, 2)), hT

    seq1, _ = lstm(x, params["enc_rnn1"])
    _, z = lstm(seq1, params["enc_rnn2"])
    c = params["clf"]
    zn = (z - c["bn_mean"]) * (c["bn_gamma"] / jnp.sqrt(c["bn_var"] + 1e-5)) \
        + c["bn_beta"]
    prob = zn @ c["fc_w"].T + c["fc_b"]
    dec_in = jnp.repeat(z[:, None, :], seq_len, axis=1)
    seq3, _ = lstm(dec_in, params["dec_rnn1"])
    seq4, _ = lstm(seq3, params["dec_rnn2"])
    recon = seq4 @ params["dec_out"]["w"].T + params["dec_out"]["b"]
    return recon, prob


# ---------------------------------------------------------------------------
# Deterministic parameter construction (synthetic; matches module shapes).
# ---------------------------------------------------------------------------
def init_params(key, seq_len, n_features, embedding_dim, n_classes):
    E = embedding_dim
    H = 2 * E

    def lstm_params(k, in_dim, hid):
        k1, k2, k3, k4 = jax.random.split(k, 4)
        s = 1.0 / jnp.sqrt(hid)
        return {
            "w_ih": jax.random.uniform(k1, (4 * hid, in_dim), jnp.float32, -s, s),
            "w_hh": jax.random.uniform(k2, (4 * hid, hid), jnp.float32, -s, s),
            "b_ih": jax.random.uniform(k3, (4 * hid,), jnp.float32, -s, s),
            "b_hh": jax.random.uniform(k4, (4 * hid,), jnp.float32, -s, s),
        }

    keys = jax.random.split(key, 12)
    xav = jnp.sqrt(6.0 / (E + n_classes))
    params = {
        "enc_rnn1": lstm_params(keys[0], n_features, H),
        "enc_rnn2": lstm_params(keys[1], H, E),
        "dec_rnn1": lstm_params(keys[2], E, E),
        "dec_rnn2": lstm_params(keys[3], E, H),
        "dec_out": {
            "w": jax.random.uniform(keys[4], (n_features, H), jnp.float32,
                                    -1.0 / jnp.sqrt(H), 1.0 / jnp.sqrt(H)),
            "b": jax.random.uniform(keys[5], (n_features,), jnp.float32,
                                    -1.0 / jnp.sqrt(H), 1.0 / jnp.sqrt(H)),
        },
        "clf": {
            # Non-trivial eval-mode BatchNorm stats so the BN fold is exercised.
            "bn_gamma": jax.random.uniform(keys[8], (E,), jnp.float32, 0.5, 1.5),
            "bn_beta": 0.1 * jax.random.normal(keys[9], (E,), jnp.float32),
            "bn_mean": 0.1 * jax.random.normal(keys[10], (E,), jnp.float32),
            "bn_var": jax.random.uniform(keys[11], (E,), jnp.float32, 0.5, 1.5),
            "fc_w": jax.random.uniform(keys[6], (n_classes, E), jnp.float32,
                                       -xav, xav),
            "fc_b": jax.random.uniform(keys[7], (n_classes,), jnp.float32,
                                       -1.0 / jnp.sqrt(E), 1.0 / jnp.sqrt(E)),
        },
    }
    return params


if __name__ == "__main__":
    # Small shapes consistent with the module. n_layers=1 (required by the
    # encoder's hidden_n.reshape((batch, embedding_dim))).
    batch = 2
    seq_len = 8
    n_features = 8
    embedding_dim = 32
    n_classes = 5

    key = jax.random.PRNGKey(0)
    k_x, k_p = jax.random.split(key)
    x = jax.random.normal(k_x, (batch, seq_len, n_features), jnp.float32)
    params = init_params(k_p, seq_len, n_features, embedding_dim, n_classes)

    recon, prob = autoencoder_forward(
        x, params, seq_len=seq_len, n_features=n_features,
        embedding_dim=embedding_dim, n_classes=n_classes)
    jax.block_until_ready((recon, prob))

    assert recon.shape == (batch, seq_len, n_features)
    assert prob.shape == (batch, n_classes)
    assert bool(jnp.all(jnp.isfinite(recon))) and bool(jnp.all(jnp.isfinite(prob)))

    # Semantic check against a pure-JAX f32 reference of the PyTorch module
    # (loose tolerance: kernel matmuls run in bf16 with f32 accumulation).
    recon_ref, prob_ref = reference_forward(x, params, seq_len=seq_len)
    assert float(jnp.max(jnp.abs(recon - recon_ref))) < 5e-2
    assert float(jnp.max(jnp.abs(prob - prob_ref))) < 5e-2

    print("KERNEL_OK")
</pallas_src>

<mosaic_0001>
module attributes {stable_mosaic.version = 11 : i64} {
  func.func @_fused_ae_kernel(%arg0: memref<64x128xf32, #tpu.memory_space<vmem>>, %arg1: memref<128x256xbf16, #tpu.memory_space<vmem>>, %arg2: memref<64x256xbf16, #tpu.memory_space<vmem>>, %arg3: memref<1x256xf32, #tpu.memory_space<vmem>>, %arg4: memref<96x128xbf16, #tpu.memory_space<vmem>>, %arg5: memref<1x128xf32, #tpu.memory_space<vmem>>, %arg6: memref<32x128xbf16, #tpu.memory_space<vmem>>, %arg7: memref<32x128xbf16, #tpu.memory_space<vmem>>, %arg8: memref<1x128xf32, #tpu.memory_space<vmem>>, %arg9: memref<96x256xbf16, #tpu.memory_space<vmem>>, %arg10: memref<1x256xf32, #tpu.memory_space<vmem>>, %arg11: memref<32x128xbf16, #tpu.memory_space<vmem>>, %arg12: memref<1x128xf32, #tpu.memory_space<vmem>>, %arg13: memref<64x128xbf16, #tpu.memory_space<vmem>>, %arg14: memref<1x128xf32, #tpu.memory_space<vmem>>, %arg15: memref<64x128xf32, #tpu.memory_space<vmem>>, %arg16: memref<8x128xf32, #tpu.memory_space<vmem>>) attributes {dimension_semantics = [], scalar_prefetch = 0 : i64, scratch_operands = 0 : i64, tpu.core_type = #tpu.core_type<tc>} {
    %c0 = arith.constant 0 : index
    %c0_0 = arith.constant 0 : index
    %0 = vector.load %arg0[%c0, %c0_0] : memref<64x128xf32, #tpu.memory_space<vmem>>, vector<64x128xf32>
    %1 = arith.truncf %0 : vector<64x128xf32> to vector<64x128xbf16>
    %c0_1 = arith.constant 0 : index
    %c0_2 = arith.constant 0 : index
    %2 = vector.load %arg1[%c0_1, %c0_2] : memref<128x256xbf16, #tpu.memory_space<vmem>>, vector<128x256xbf16>
    %cst = arith.constant dense<0.000000e+00> : vector<64x256xf32>
    %3 = tpu.matmul %1, %2, %cst {dimension_numbers = #tpu.dot_dimension_numbers<[1], [0], [0], [1], [0, 0, 1, 1], [], []>} : vector<64x128xbf16>, vector<128x256xbf16>, vector<64x256xf32> -> vector<64x256xf32>
    %c0_3 = arith.constant 0 : index
    %c0_4 = arith.constant 0 : index
    %4 = vector.load %arg3[%c0_3, %c0_4] : memref<1x256xf32, #tpu.memory_space<vmem>>, vector<1x256xf32>
    %5 = vector.broadcast %4 : vector<1x256xf32> to vector<64x256xf32>
    %6 = arith.addf %3, %5 : vector<64x256xf32>
    %cst_5 = arith.constant 0.000000e+00 : f32
    %7 = vector.broadcast %cst_5 : f32 to vector<8x64xf32>
    %cst_6 = arith.constant 0.000000e+00 : f32
    %8 = vector.broadcast %cst_6 : f32 to vector<8x64xf32>
    %cst_7 = arith.constant 0.000000e+00 : f32
    %9 = vector.broadcast %cst_7 : f32 to vector<8x32xf32>
    %cst_8 = arith.constant 0.000000e+00 : f32
    %10 = vector.broadcast %cst_8 : f32 to vector<8x32xf32>
    %11 = vector.extract_strided_slice %6 {offsets = [0, 0], sizes = [8, 256], strides = [1, 1]} : vector<64x256xf32> to vector<8x256xf32>
    %12 = arith.truncf %7 : vector<8x64xf32> to vector<8x64xbf16>
    %c0_9 = arith.constant 0 : index
    %c0_10 = arith.constant 0 : index
    %13 = vector.load %arg2[%c0_9, %c0_10] : memref<64x256xbf16, #tpu.memory_space<vmem>>, vector<64x256xbf16>
    %cst_11 = arith.constant dense<0.000000e+00> : vector<8x256xf32>
    %14 = tpu.matmul %12, %13, %cst_11 {dimension_numbers = #tpu.dot_dimension_numbers<[1], [0], [0], [1], [0, 0, 1, 1], [], []>} : vector<8x64xbf16>, vector<64x256xbf16>, vector<8x256xf32> -> vector<8x256xf32>
    %15 = arith.addf %11, %14 : vector<8x256xf32>
    %16 = arith.negf %15 : vector<8x256xf32>
    %17 = math.exp %16 : vector<8x256xf32>
    %cst_12 = arith.constant 1.000000e+00 : f32
    %18 = vector.broadcast %cst_12 : f32 to vector<8x256xf32>
    %19 = arith.addf %18, %17 : vector<8x256xf32>
    %20 = arith.divf %18, %19 : vector<8x256xf32>
    %21 = math.tanh %15 : vector<8x256xf32>
    %22 = vector.extract_strided_slice %20 {offsets = [0, 0], sizes = [8, 64], strides = [1, 1]} : vector<8x256xf32> to vector<8x64xf32>
    %23 = vector.extract_strided_slice %20 {offsets = [0, 64], sizes = [8, 64], strides = [1, 1]} : vector<8x256xf32> to vector<8x64xf32>
    %24 = vector.extract_strided_slice %21 {offsets = [0, 128], sizes = [8, 64], strides = [1, 1]} : vector<8x256xf32> to vector<8x64xf32>
    %25 = vector.extract_strided_slice %20 {offsets = [0, 192], sizes = [8, 64], strides = [1, 1]} : vector<8x256xf32> to vector<8x64xf32>
    %26 = arith.mulf %23, %8 : vector<8x64xf32>
    %27 = arith.mulf %22, %24 : vector<8x64xf32>
    %28 = arith.addf %26, %27 : vector<8x64xf32>
    %29 = math.tanh %28 : vector<8x64xf32>
    %30 = arith.mulf %25, %29 : vector<8x64xf32>
    %31 = tpu.concatenate %30, %9 in 1 : vector<8x64xf32>, vector<8x32xf32> -> vector<8x96xf32>
    %32 = arith.truncf %31 : vector<8x96xf32> to vector<8x96xbf16>
    %c0_13 = arith.constant 0 : index
    %c0_14 = arith.constant 0 : index
    %33 = vector.load %arg4[%c0_13, %c0_14] : memref<96x128xbf16, #tpu.memory_space<vmem>>, vector<96x128xbf16>
    %cst_15 = arith.constant dense<0.000000e+00> : vector<8x128xf32>
    %34 = tpu.matmul %32, %33, %cst_15 {dimension_numbers = #tpu.dot_dimension_numbers<[1], [0], [0], [1], [0, 0, 1, 1], [], []>} : vector<8x96xbf16>, vector<96x128xbf16>, vector<8x128xf32> -> vector<8x128xf32>
    %c0_16 = arith.constant 0 : index
    %c0_17 = arith.constant 0 : index
    %35 = vector.load %arg5[%c0_16, %c0_17] : memref<1x128xf32, #tpu.memory_space<vmem>>, vector<1x128xf32>
    %36 = vector.broadcast %35 : vector<1x128xf32> to vector<8x128xf32>
    %37 = arith.addf %34, %36 : vector<8x128xf32>
    %38 = arith.negf %37 : vector<8x128xf32>
    %39 = math.exp %38 : vector<8x128xf32>
    %cst_18 = arith.constant 1.000000e+00 : f32
    %40 = vector.broadcast %cst_18 : f32 to vector<8x128xf32>
    %41 = arith.addf %40, %39 : vector<8x128xf32>
    %42 = arith.divf %40, %41 : vector<8x128xf32>
    %43 = math.tanh %37 : vector<8x128xf32>
    %44 = vector.extract_strided_slice %42 {offsets = [0, 0], sizes = [8, 32], strides = [1, 1]} : vector<8x128xf32> to vector<8x32xf32>
    %45 = vector.extract_strided_slice %42 {offsets = [0, 32], sizes = [8, 32], strides = [1, 1]} : vector<8x128xf32> to vector<8x32xf32>
    %46 = vector.extract_strided_slice %43 {offsets = [0, 64], sizes = [8, 32], strides = [1, 1]} : vector<8x128xf32> to vector<8x32xf32>
    %47 = vector.extract_strided_slice %42 {offsets = [0, 96], sizes = [8, 32], strides = [1, 1]} : vector<8x128xf32> to vector<8x32xf32>
    %48 = arith.mulf %45, %10 : vector<8x32xf32>
    %49 = arith.mulf %44, %46 : vector<8x32xf32>
    %50 = arith.addf %48, %49 : vector<8x32xf32>
    %51 = math.tanh %50 : vector<8x32xf32>
    %52 = arith.mulf %47, %51 : vector<8x32xf32>
    %53 = vector.extract_strided_slice %6 {offsets = [8, 0], sizes = [8, 256], strides = [1, 1]} : vector<64x256xf32> to vector<8x256xf32>
    %54 = arith.truncf %30 : vector<8x64xf32> to vector<8x64xbf16>
    %c0_19 = arith.constant 0 : index
    %c0_20 = arith.constant 0 : index
    %55 = vector.load %arg2[%c0_19, %c0_20] : memref<64x256xbf16, #tpu.memory_space<vmem>>, vector<64x256xbf16>
    %cst_21 = arith.constant dense<0.000000e+00> : vector<8x256xf32>
    %56 = tpu.matmul %54, %55, %cst_21 {dimension_numbers = #tpu.dot_dimension_numbers<[1], [0], [0], [1], [0, 0, 1, 1], [], []>} : vector<8x64xbf16>, vector<64x256xbf16>, vector<8x256xf32> -> vector<8x256xf32>
    %57 = arith.addf %53, %56 : vector<8x256xf32>
    %58 = arith.negf %57 : vector<8x256xf32>
    %59 = math.exp %58 : vector<8x256xf32>
    %cst_22 = arith.constant 1.000000e+00 : f32
    %60 = vector.broadcast %cst_22 : f32 to vector<8x256xf32>
    %61 = arith.addf %60, %59 : vector<8x256xf32>
    %62 = arith.divf %60, %61 : vector<8x256xf32>
    %63 = math.tanh %57 : vector<8x256xf32>
    %64 = vector.extract_strided_slice %62 {offsets = [0, 0], sizes = [8, 64], strides = [1, 1]} : vector<8x256xf32> to vector<8x64xf32>
    %65 = vector.extract_strided_slice %62 {offsets = [0, 64], sizes = [8, 64], strides = [1, 1]} : vector<8x256xf32> to vector<8x64xf32>
    %66 = vector.extract_strided_slice %63 {offsets = [0, 128], sizes = [8, 64], strides = [1, 1]} : vector<8x256xf32> to vector<8x64xf32>
    %67 = vector.extract_strided_slice %62 {offsets = [0, 192], sizes = [8, 64], strides = [1, 1]} : vector<8x256xf32> to vector<8x64xf32>
    %68 = arith.mulf %65, %28 : vector<8x64xf32>
    %69 = arith.mulf %64, %66 : vector<8x64xf32>
    %70 = arith.addf %68, %69 : vector<8x64xf32>
    %71 = math.tanh %70 : vector<8x64xf32>
    %72 = arith.mulf %67, %71 : vector<8x64xf32>
    %73 = tpu.concatenate %72, %52 in 1 : vector<8x64xf32>, vector<8x32xf32> -> vector<8x96xf32>
    %74 = arith.truncf %73 : vector<8x96xf32> to vector<8x96xbf16>
    %c0_23 = arith.constant 0 : index
    %c0_24 = arith.constant 0 : index
    %75 = vector.load %arg4[%c0_23, %c0_24] : memref<96x128xbf16, #tpu.memory_space<vmem>>, vector<96x128xbf16>
    %cst_25 = arith.constant dense<0.000000e+00> : vector<8x128xf32>
    %76 = tpu.matmul %74, %75, %cst_25 {dimension_numbers = #tpu.dot_dimension_numbers<[1], [0], [0], [1], [0, 0, 1, 1], [], []>} : vector<8x96xbf16>, vector<96x128xbf16>, vector<8x128xf32> -> vector<8x128xf32>
    %c0_26 = arith.constant 0 : index
    %c0_27 = arith.constant 0 : index
    %77 = vector.load %arg5[%c0_26, %c0_27] : memref<1x128xf32, #tpu.memory_space<vmem>>, vector<1x128xf32>
    %78 = vector.broadcast %77 : vector<1x128xf32> to vector<8x128xf32>
    %79 = arith.addf %76, %78 : vector<8x128xf32>
    %80 = arith.negf %79 : vector<8x128xf32>
    %81 = math.exp %80 : vector<8x128xf32>
    %cst_28 = arith.constant 1.000000e+00 : f32
    %82 = vector.broadcast %cst_28 : f32 to vector<8x128xf32>
    %83 = arith.addf %82, %81 : vector<8x128xf32>
    %84 = arith.divf %82, %83 : vector<8x128xf32>
    %85 = math.tanh %79 : vector<8x128xf32>
    %86 = vector.extract_strided_slice %84 {offsets = [0, 0], sizes = [8, 32], strides = [1, 1]} : vector<8x128xf32> to vector<8x32xf32>
    %87 = vector.extract_strided_slice %84 {offsets = [0, 32], sizes = [8, 32], strides = [1, 1]} : vector<8x128xf32> to vector<8x32xf32>
    %88 = vector.extract_strided_slice %85 {offsets = [0, 64], sizes = [8, 32], strides = [1, 1]} : vector<8x128xf32> to vector<8x32xf32>
    %89 = vector.extract_strided_slice %84 {offsets = [0, 96], sizes = [8, 32], strides = [1, 1]} : vector<8x128xf32> to vector<8x32xf32>
    %90 = arith.mulf %87, %50 : vector<8x32xf32>
    %91 = arith.mulf %86, %88 : vector<8x32xf32>
    %92 = arith.addf %90, %91 : vector<8x32xf32>
    %93 = math.tanh %92 : vector<8x32xf32>
    %94 = arith.mulf %89, %93 : vector<8x32xf32>
    %95 = vector.extract_strided_slice %6 {offsets = [16, 0], sizes = [8, 256], strides = [1, 1]} : vector<64x256xf32> to vector<8x256xf32>
    %96 = arith.truncf %72 : vector<8x64xf32> to vector<8x64xbf16>
    %c0_29 = arith.constant 0 : index
    %c0_30 = arith.constant 0 : index
    %97 = vector.load %arg2[%c0_29, %c0_30] : memref<64x256xbf16, #tpu.memory_space<vmem>>, vector<64x256xbf16>
    %cst_31 = arith.constant dense<0.000000e+00> : vector<8x256xf32>
    %98 = tpu.matmul %96, %97, %cst_31 {dimension_numbers = #tpu.dot_dimension_numbers<[1], [0], [0], [1], [0, 0, 1, 1], [], []>} : vector<8x64xbf16>, vector<64x256xbf16>, vector<8x256xf32> -> vector<8x256xf32>
    %99 = arith.addf %95, %98 : vector<8x256xf32>
    %100 = arith.negf %99 : vector<8x256xf32>
    %101 = math.exp %100 : vector<8x256xf32>
    %cst_32 = arith.constant 1.000000e+00 : f32
    %102 = vector.broadcast %cst_32 : f32 to vector<8x256xf32>
    %103 = arith.addf %102, %101 : vector<8x256xf32>
    %104 = arith.divf %102, %103 : vector<8x256xf32>
    %105 = math.tanh %99 : vector<8x256xf32>
    %106 = vector.extract_strided_slice %104 {offsets = [0, 0], sizes = [8, 64], strides = [1, 1]} : vector<8x256xf32> to vector<8x64xf32>
    %107 = vector.extract_strided_slice %104 {offsets = [0, 64], sizes = [8, 64], strides = [1, 1]} : vector<8x256xf32> to vector<8x64xf32>
    %108 = vector.extract_strided_slice %105 {offsets = [0, 128], sizes = [8, 64], strides = [1, 1]} : vector<8x256xf32> to vector<8x64xf32>
    %109 = vector.extract_strided_slice %104 {offsets = [0, 192], sizes = [8, 64], strides = [1, 1]} : vector<8x256xf32> to vector<8x64xf32>
    %110 = arith.mulf %107, %70 : vector<8x64xf32>
    %111 = arith.mulf %106, %108 : vector<8x64xf32>
    %112 = arith.addf %110, %111 : vector<8x64xf32>
    %113 = math.tanh %112 : vector<8x64xf32>
    %114 = arith.mulf %109, %113 : vector<8x64xf32>
    %115 = tpu.concatenate %114, %94 in 1 : vector<8x64xf32>, vector<8x32xf32> -> vector<8x96xf32>
    %116 = arith.truncf %115 : vector<8x96xf32> to vector<8x96xbf16>
    %c0_33 = arith.constant 0 : index
    %c0_34 = arith.constant 0 : index
    %117 = vector.load %arg4[%c0_33, %c0_34] : memref<96x128xbf16, #tpu.memory_space<vmem>>, vector<96x128xbf16>
    %cst_35 = arith.constant dense<0.000000e+00> : vector<8x128xf32>
    %118 = tpu.matmul %116, %117, %cst_35 {dimension_numbers = #tpu.dot_dimension_numbers<[1], [0], [0], [1], [0, 0, 1, 1], [], []>} : vector<8x96xbf16>, vector<96x128xbf16>, vector<8x128xf32> -> vector<8x128xf32>
    %c0_36 = arith.constant 0 : index
    %c0_37 = arith.constant 0 : index
    %119 = vector.load %arg5[%c0_36, %c0_37] : memref<1x128xf32, #tpu.memory_space<vmem>>, vector<1x128xf32>
    %120 = vector.broadcast %119 : vector<1x128xf32> to vector<8x128xf32>
    %121 = arith.addf %118, %120 : vector<8x128xf32>
    %122 = arith.negf %121 : vector<8x128xf32>
    %123 = math.exp %122 : vector<8x128xf32>
    %cst_38 = arith.constant 1.000000e+00 : f32
    %124 = vector.broadcast %cst_38 : f32 to vector<8x128xf32>
    %125 = arith.addf %124, %123 : vector<8x128xf32>
    %126 = arith.divf %124, %125 : vector<8x128xf32>
    %127 = math.tanh %121 : vector<8x128xf32>
    %128 = vector.extract_strided_slice %126 {offsets = [0, 0], sizes = [8, 32], strides = [1, 1]} : vector<8x128xf32> to vector<8x32xf32>
    %129 = vector.extract_strided_slice %126 {offsets = [0, 32], sizes = [8, 32], strides = [1, 1]} : vector<8x128xf32> to vector<8x32xf32>
    %130 = vector.extract_strided_slice %127 {offsets = [0, 64], sizes = [8, 32], strides = [1, 1]} : vector<8x128xf32> to vector<8x32xf32>
    %131 = vector.extract_strided_slice %126 {offsets = [0, 96], sizes = [8, 32], strides = [1, 1]} : vector<8x128xf32> to vector<8x32xf32>
    %132 = arith.mulf %129, %92 : vector<8x32xf32>
    %133 = arith.mulf %128, %130 : vector<8x32xf32>
    %134 = arith.addf %132, %133 : vector<8x32xf32>
    %135 = math.tanh %134 : vector<8x32xf32>
    %136 = arith.mulf %131, %135 : vector<8x32xf32>
    %137 = vector.extract_strided_slice %6 {offsets = [24, 0], sizes = [8, 256], strides = [1, 1]} : vector<64x256xf32> to vector<8x256xf32>
    %138 = arith.truncf %114 : vector<8x64xf32> to vector<8x64xbf16>
    %c0_39 = arith.constant 0 : index
    %c0_40 = arith.constant 0 : index
    %139 = vector.load %arg2[%c0_39, %c0_40] : memref<64x256xbf16, #tpu.memory_space<vmem>>, vector<64x256xbf16>
    %cst_41 = arith.constant dense<0.000000e+00> : vector<8x256xf32>
    %140 = tpu.matmul %138, %139, %cst_41 {dimension_numbers = #tpu.dot_dimension_numbers<[1], [0], [0], [1], [0, 0, 1, 1], [], []>} : vector<8x64xbf16>, vector<64x256xbf16>, vector<8x256xf32> -> vector<8x256xf32>
    %141 = arith.addf %137, %140 : vector<8x256xf32>
    %142 = arith.negf %141 : vector<8x256xf32>
    %143 = math.exp %142 : vector<8x256xf32>
    %cst_42 = arith.constant 1.000000e+00 : f32
    %144 = vector.broadcast %cst_42 : f32 to vector<8x256xf32>
    %145 = arith.addf %144, %143 : vector<8x256xf32>
    %146 = arith.divf %144, %145 : vector<8x256xf32>
    %147 = math.tanh %141 : vector<8x256xf32>
    %148 = vector.extract_strided_slice %146 {offsets = [0, 0], sizes = [8, 64], strides = [1, 1]} : vector<8x256xf32> to vector<8x64xf32>
    %149 = vector.extract_strided_slice %146 {offsets = [0, 64], sizes = [8, 64], strides = [1, 1]} : vector<8x256xf32> to vector<8x64xf32>
    %150 = vector.extract_strided_slice %147 {offsets = [0, 128], sizes = [8, 64], strides = [1, 1]} : vector<8x256xf32> to vector<8x64xf32>
    %151 = vector.extract_strided_slice %146 {offsets = [0, 192], sizes = [8, 64], strides = [1, 1]} : vector<8x256xf32> to vector<8x64xf32>
    %152 = arith.mulf %149, %112 : vector<8x64xf32>
    %153 = arith.mulf %148, %150 : vector<8x64xf32>
    %154 = arith.addf %152, %153 : vector<8x64xf32>
    %155 = math.tanh %154 : vector<8x64xf32>
    %156 = arith.mulf %151, %155 : vector<8x64xf32>
    %157 = tpu.concatenate %156, %136 in 1 : vector<8x64xf32>, vector<8x32xf32> -> vector<8x96xf32>
    %158 = arith.truncf %157 : vector<8x96xf32> to vector<8x96xbf16>
    %c0_43 = arith.constant 0 : index
    %c0_44 = arith.constant 0 : index
    %159 = vector.load %arg4[%c0_43, %c0_44] : memref<96x128xbf16, #tpu.memory_space<vmem>>, vector<96x128xbf16>
    %cst_45 = arith.constant dense<0.000000e+00> : vector<8x128xf32>
    %160 = tpu.matmul %158, %159, %cst_45 {dimension_numbers = #tpu.dot_dimension_numbers<[1], [0], [0], [1], [0, 0, 1, 1], [], []>} : vector<8x96xbf16>, vector<96x128xbf16>, vector<8x128xf32> -> vector<8x128xf32>
    %c0_46 = arith.constant 0 : index
    %c0_47 = arith.constant 0 : index
    %161 = vector.load %arg5[%c0_46, %c0_47] : memref<1x128xf32, #tpu.memory_space<vmem>>, vector<1x128xf32>
    %162 = vector.broadcast %161 : vector<1x128xf32> to vector<8x128xf32>
    %163 = arith.addf %160, %162 : vector<8x128xf32>
    %164 = arith.negf %163 : vector<8x128xf32>
    %165 = math.exp %164 : vector<8x128xf32>
    %cst_48 = arith.constant 1.000000e+00 : f32
    %166 = vector.broadcast %cst_48 : f32 to vector<8x128xf32>
    %167 = arith.addf %166, %165 : vector<8x128xf32>
    %168 = arith.divf %166, %167 : vector<8x128xf32>
    %169 = math.tanh %163 : vector<8x128xf32>
    %170 = vector.extract_strided_slice %168 {offsets = [0, 0], sizes = [8, 32], strides = [1, 1]} : vector<8x128xf32> to vector<8x32xf32>
    %171 = vector.extract_strided_slice %168 {offsets = [0, 32], sizes = [8, 32], strides = [1, 1]} : vector<8x128xf32> to vector<8x32xf32>
    %172 = vector.extract_strided_slice %169 {offsets = [0, 64], sizes = [8, 32], strides = [1, 1]} : vector<8x128xf32> to vector<8x32xf32>
    %173 = vector.extract_strided_slice %168 {offsets = [0, 96], sizes = [8, 32], strides = [1, 1]} : vector<8x128xf32> to vector<8x32xf32>
    %174 = arith.mulf %171, %134 : vector<8x32xf32>
    %175 = arith.mulf %170, %172 : vector<8x32xf32>
    %176 = arith.addf %174, %175 : vector<8x32xf32>
    %177 = math.tanh %176 : vector<8x32xf32>
    %178 = arith.mulf %173, %177 : vector<8x32xf32>
    %179 = vector.extract_strided_slice %6 {offsets = [32, 0], sizes = [8, 256], strides = [1, 1]} : vector<64x256xf32> to vector<8x256xf32>
    %180 = arith.truncf %156 : vector<8x64xf32> to vector<8x64xbf16>
    %c0_49 = arith.constant 0 : index
    %c0_50 = arith.constant 0 : index
    %181 = vector.load %arg2[%c0_49, %c0_50] : memref<64x256xbf16, #tpu.memory_space<vmem>>, vector<64x256xbf16>
    %cst_51 = arith.constant dense<0.000000e+00> : vector<8x256xf32>
    %182 = tpu.matmul %180, %181, %cst_51 {dimension_numbers = #tpu.dot_dimension_numbers<[1], [0], [0], [1], [0, 0, 1, 1], [], []>} : vector<8x64xbf16>, vector<64x256xbf16>, vector<8x256xf32> -> vector<8x256xf32>
    %183 = arith.addf %179, %182 : vector<8x256xf32>
    %184 = arith.negf %183 : vector<8x256xf32>
    %185 = math.exp %184 : vector<8x256xf32>
    %cst_52 = arith.constant 1.000000e+00 : f32
    %186 = vector.broadcast %cst_52 : f32 to vector<8x256xf32>
    %187 = arith.addf %186, %185 : vector<8x256xf32>
    %188 = arith.divf %186, %187 : vector<8x256xf32>
    %189 = math.tanh %183 : vector<8x256xf32>
    %190 = vector.extract_strided_slice %188 {offsets = [0, 0], sizes = [8, 64], strides = [1, 1]} : vector<8x256xf32> to vector<8x64xf32>
    %191 = vector.extract_strided_slice %188 {offsets = [0, 64], sizes = [8, 64], strides = [1, 1]} : vector<8x256xf32> to vector<8x64xf32>
    %192 = vector.extract_strided_slice %189 {offsets = [0, 128], sizes = [8, 64], strides = [1, 1]} : vector<8x256xf32> to vector<8x64xf32>
    %193 = vector.extract_strided_slice %188 {offsets = [0, 192], sizes = [8, 64], strides = [1, 1]} : vector<8x256xf32> to vector<8x64xf32>
    %194 = arith.mulf %191, %154 : vector<8x64xf32>
    %195 = arith.mulf %190, %192 : vector<8x64xf32>
    %196 = arith.addf %194, %195 : vector<8x64xf32>
    %197 = math.tanh %196 : vector<8x64xf32>
    %198 = arith.mulf %193, %197 : vector<8x64xf32>
    %199 = tpu.concatenate %198, %178 in 1 : vector<8x64xf32>, vector<8x32xf32> -> vector<8x96xf32>
    %200 = arith.truncf %199 : vector<8x96xf32> to vector<8x96xbf16>
    %c0_53 = arith.constant 0 : index
    %c0_54 = arith.constant 0 : index
    %201 = vector.load %arg4[%c0_53, %c0_54] : memref<96x128xbf16, #tpu.memory_space<vmem>>, vector<96x128xbf16>
    %cst_55 = arith.constant dense<0.000000e+00> : vector<8x128xf32>
    %202 = tpu.matmul %200, %201, %cst_55 {dimension_numbers = #tpu.dot_dimension_numbers<[1], [0], [0], [1], [0, 0, 1, 1], [], []>} : vector<8x96xbf16>, vector<96x128xbf16>, vector<8x128xf32> -> vector<8x128xf32>
    %c0_56 = arith.constant 0 : index
    %c0_57 = arith.constant 0 : index
    %203 = vector.load %arg5[%c0_56, %c0_57] : memref<1x128xf32, #tpu.memory_space<vmem>>, vector<1x128xf32>
    %204 = vector.broadcast %203 : vector<1x128xf32> to vector<8x128xf32>
    %205 = arith.addf %202, %204 : vector<8x128xf32>
    %206 = arith.negf %205 : vector<8x128xf32>
    %207 = math.exp %206 : vector<8x128xf32>
    %cst_58 = arith.constant 1.000000e+00 : f32
    %208 = vector.broadcast %cst_58 : f32 to vector<8x128xf32>
    %209 = arith.addf %208, %207 : vector<8x128xf32>
    %210 = arith.divf %208, %209 : vector<8x128xf32>
    %211 = math.tanh %205 : vector<8x128xf32>
    %212 = vector.extract_strided_slice %210 {offsets = [0, 0], sizes = [8, 32], strides = [1, 1]} : vector<8x128xf32> to vector<8x32xf32>
    %213 = vector.extract_strided_slice %210 {offsets = [0, 32], sizes = [8, 32], strides = [1, 1]} : vector<8x128xf32> to vector<8x32xf32>
    %214 = vector.extract_strided_slice %211 {offsets = [0, 64], sizes = [8, 32], strides = [1, 1]} : vector<8x128xf32> to vector<8x32xf32>
    %215 = vector.extract_strided_slice %210 {offsets = [0, 96], sizes = [8, 32], strides = [1, 1]} : vector<8x128xf32> to vector<8x32xf32>
    %216 = arith.mulf %213, %176 : vector<8x32xf32>
    %217 = arith.mulf %212, %214 : vector<8x32xf32>
    %218 = arith.addf %216, %217 : vector<8x32xf32>
    %219 = math.tanh %218 : vector<8x32xf32>
    %220 = arith.mulf %215, %219 : vector<8x32xf32>
    %221 = vector.extract_strided_slice %6 {offsets = [40, 0], sizes = [8, 256], strides = [1, 1]} : vector<64x256xf32> to vector<8x256xf32>
    %222 = arith.truncf %198 : vector<8x64xf32> to vector<8x64xbf16>
    %c0_59 = arith.constant 0 : index
    %c0_60 = arith.constant 0 : index
    %223 = vector.load %arg2[%c0_59, %c0_60] : memref<64x256xbf16, #tpu.memory_space<vmem>>, vector<64x256xbf16>
    %cst_61 = arith.constant dense<0.000000e+00> : vector<8x256xf32>
    %224 = tpu.matmul %222, %223, %cst_61 {dimension_numbers = #tpu.dot_dimension_numbers<[1], [0], [0], [1], [0, 0, 1, 1], [], []>} : vector<8x64xbf16>, vector<64x256xbf16>, vector<8x256xf32> -> vector<8x256xf32>
    %225 = arith.addf %221, %224 : vector<8x256xf32>
    %226 = arith.negf %225 : vector<8x256xf32>
    %227 = math.exp %226 : vector<8x256xf32>
    %cst_62 = arith.constant 1.000000e+00 : f32
    %228 = vector.broadcast %cst_62 : f32 to vector<8x256xf32>
    %229 = arith.addf %228, %227 : vector<8x256xf32>
    %230 = arith.divf %228, %229 : vector<8x256xf32>
    %231 = math.tanh %225 : vector<8x256xf32>
    %232 = vector.extract_strided_slice %230 {offsets = [0, 0], sizes = [8, 64], strides = [1, 1]} : vector<8x256xf32> to vector<8x64xf32>
    %233 = vector.extract_strided_slice %230 {offsets = [0, 64], sizes = [8, 64], strides = [1, 1]} : vector<8x256xf32> to vector<8x64xf32>
    %234 = vector.extract_strided_slice %231 {offsets = [0, 128], sizes = [8, 64], strides = [1, 1]} : vector<8x256xf32> to vector<8x64xf32>
    %235 = vector.extract_strided_slice %230 {offsets = [0, 192], sizes = [8, 64], strides = [1, 1]} : vector<8x256xf32> to vector<8x64xf32>
    %236 = arith.mulf %233, %196 : vector<8x64xf32>
    %237 = arith.mulf %232, %234 : vector<8x64xf32>
    %238 = arith.addf %236, %237 : vector<8x64xf32>
    %239 = math.tanh %238 : vector<8x64xf32>
    %240 = arith.mulf %235, %239 : vector<8x64xf32>
    %241 = tpu.concatenate %240, %220 in 1 : vector<8x64xf32>, vector<8x32xf32> -> vector<8x96xf32>
    %242 = arith.truncf %241 : vector<8x96xf32> to vector<8x96xbf16>
    %c0_63 = arith.constant 0 : index
    %c0_64 = arith.constant 0 : index
    %243 = vector.load %arg4[%c0_63, %c0_64] : memref<96x128xbf16, #tpu.memory_space<vmem>>, vector<96x128xbf16>
    %cst_65 = arith.constant dense<0.000000e+00> : vector<8x128xf32>
    %244 = tpu.matmul %242, %243, %cst_65 {dimension_numbers = #tpu.dot_dimension_numbers<[1], [0], [0], [1], [0, 0, 1, 1], [], []>} : vector<8x96xbf16>, vector<96x128xbf16>, vector<8x128xf32> -> vector<8x128xf32>
    %c0_66 = arith.constant 0 : index
    %c0_67 = arith.constant 0 : index
    %245 = vector.load %arg5[%c0_66, %c0_67] : memref<1x128xf32, #tpu.memory_space<vmem>>, vector<1x128xf32>
    %246 = vector.broadcast %245 : vector<1x128xf32> to vector<8x128xf32>
    %247 = arith.addf %244, %246 : vector<8x128xf32>
    %248 = arith.negf %247 : vector<8x128xf32>
    %249 = math.exp %248 : vector<8x128xf32>
    %cst_68 = arith.constant 1.000000e+00 : f32
    %250 = vector.broadcast %cst_68 : f32 to vector<8x128xf32>
    %251 = arith.addf %250, %249 : vector<8x128xf32>
    %252 = arith.divf %250, %251 : vector<8x128xf32>
    %253 = math.tanh %247 : vector<8x128xf32>
    %254 = vector.extract_strided_slice %252 {offsets = [0, 0], sizes = [8, 32], strides = [1, 1]} : vector<8x128xf32> to vector<8x32xf32>
    %255 = vector.extract_strided_slice %252 {offsets = [0, 32], sizes = [8, 32], strides = [1, 1]} : vector<8x128xf32> to vector<8x32xf32>
    %256 = vector.extract_strided_slice %253 {offsets = [0, 64], sizes = [8, 32], strides = [1, 1]} : vector<8x128xf32> to vector<8x32xf32>
    %257 = vector.extract_strided_slice %252 {offsets = [0, 96], sizes = [8, 32], strides = [1, 1]} : vector<8x128xf32> to vector<8x32xf32>
    %258 = arith.mulf %255, %218 : vector<8x32xf32>
    %259 = arith.mulf %254, %256 : vector<8x32xf32>
    %260 = arith.addf %258, %259 : vector<8x32xf32>
    %261 = math.tanh %260 : vector<8x32xf32>
    %262 = arith.mulf %257, %261 : vector<8x32xf32>
    %263 = vector.extract_strided_slice %6 {offsets = [48, 0], sizes = [8, 256], strides = [1, 1]} : vector<64x256xf32> to vector<8x256xf32>
    %264 = arith.truncf %240 : vector<8x64xf32> to vector<8x64xbf16>
    %c0_69 = arith.constant 0 : index
    %c0_70 = arith.constant 0 : index
    %265 = vector.load %arg2[%c0_69, %c0_70] : memref<64x256xbf16, #tpu.memory_space<vmem>>, vector<64x256xbf16>
    %cst_71 = arith.constant dense<0.000000e+00> : vector<8x256xf32>
    %266 = tpu.matmul %264, %265, %cst_71 {dimension_numbers = #tpu.dot_dimension_numbers<[1], [0], [0], [1], [0, 0, 1, 1], [], []>} : vector<8x64xbf16>, vector<64x256xbf16>, vector<8x256xf32> -> vector<8x256xf32>
    %267 = arith.addf %263, %266 : vector<8x256xf32>
    %268 = arith.negf %267 : vector<8x256xf32>
    %269 = math.exp %268 : vector<8x256xf32>
    %cst_72 = arith.constant 1.000000e+00 : f32
    %270 = vector.broadcast %cst_72 : f32 to vector<8x256xf32>
    %271 = arith.addf %270, %269 : vector<8x256xf32>
    %272 = arith.divf %270, %271 : vector<8x256xf32>
    %273 = math.tanh %267 : vector<8x256xf32>
    %274 = vector.extract_strided_slice %272 {offsets = [0, 0], sizes = [8, 64], strides = [1, 1]} : vector<8x256xf32> to vector<8x64xf32>
    %275 = vector.extract_strided_slice %272 {offsets = [0, 64], sizes = [8, 64], strides = [1, 1]} : vector<8x256xf32> to vector<8x64xf32>
    %276 = vector.extract_strided_slice %273 {offsets = [0, 128], sizes = [8, 64], strides = [1, 1]} : vector<8x256xf32> to vector<8x64xf32>
    %277 = vector.extract_strided_slice %272 {offsets = [0, 192], sizes = [8, 64], strides = [1, 1]} : vector<8x256xf32> to vector<8x64xf32>
    %278 = arith.mulf %275, %238 : vector<8x64xf32>
    %279 = arith.mulf %274, %276 : vector<8x64xf32>
    %280 = arith.addf %278, %279 : vector<8x64xf32>
    %281 = math.tanh %280 : vector<8x64xf32>
    %282 = arith.mulf %277, %281 : vector<8x64xf32>
    %283 = tpu.concatenate %282, %262 in 1 : vector<8x64xf32>, vector<8x32xf32> -> vector<8x96xf32>
    %284 = arith.truncf %283 : vector<8x96xf32> to vector<8x96xbf16>
    %c0_73 = arith.constant 0 : index
    %c0_74 = arith.constant 0 : index
    %285 = vector.load %arg4[%c0_73, %c0_74] : memref<96x128xbf16, #tpu.memory_space<vmem>>, vector<96x128xbf16>
    %cst_75 = arith.constant dense<0.000000e+00> : vector<8x128xf32>
    %286 = tpu.matmul %284, %285, %cst_75 {dimension_numbers = #tpu.dot_dimension_numbers<[1], [0], [0], [1], [0, 0, 1, 1], [], []>} : vector<8x96xbf16>, vector<96x128xbf16>, vector<8x128xf32> -> vector<8x128xf32>
    %c0_76 = arith.constant 0 : index
    %c0_77 = arith.constant 0 : index
    %287 = vector.load %arg5[%c0_76, %c0_77] : memref<1x128xf32, #tpu.memory_space<vmem>>, vector<1x128xf32>
    %288 = vector.broadcast %287 : vector<1x128xf32> to vector<8x128xf32>
    %289 = arith.addf %286, %288 : vector<8x128xf32>
    %290 = arith.negf %289 : vector<8x128xf32>
    %291 = math.exp %290 : vector<8x128xf32>
    %cst_78 = arith.constant 1.000000e+00 : f32
    %292 = vector.broadcast %cst_78 : f32 to vector<8x128xf32>
    %293 = arith.addf %292, %291 : vector<8x128xf32>
    %294 = arith.divf %292, %293 : vector<8x128xf32>
    %295 = math.tanh %289 : vector<8x128xf32>
    %296 = vector.extract_strided_slice %294 {offsets = [0, 0], sizes = [8, 32], strides = [1, 1]} : vector<8x128xf32> to vector<8x32xf32>
    %297 = vector.extract_strided_slice %294 {offsets = [0, 32], sizes = [8, 32], strides = [1, 1]} : vector<8x128xf32> to vector<8x32xf32>
    %298 = vector.extract_strided_slice %295 {offsets = [0, 64], sizes = [8, 32], strides = [1, 1]} : vector<8x128xf32> to vector<8x32xf32>
    %299 = vector.extract_strided_slice %294 {offsets = [0, 96], sizes = [8, 32], strides = [1, 1]} : vector<8x128xf32> to vector<8x32xf32>
    %300 = arith.mulf %297, %260 : vector<8x32xf32>
    %301 = arith.mulf %296, %298 : vector<8x32xf32>
    %302 = arith.addf %300, %301 : vector<8x32xf32>
    %303 = math.tanh %302 : vector<8x32xf32>
    %304 = arith.mulf %299, %303 : vector<8x32xf32>
    %305 = vector.extract_strided_slice %6 {offsets = [56, 0], sizes = [8, 256], strides = [1, 1]} : vector<64x256xf32> to vector<8x256xf32>
    %306 = arith.truncf %282 : vector<8x64xf32> to vector<8x64xbf16>
    %c0_79 = arith.constant 0 : index
    %c0_80 = arith.constant 0 : index
    %307 = vector.load %arg2[%c0_79, %c0_80] : memref<64x256xbf16, #tpu.memory_space<vmem>>, vector<64x256xbf16>
    %cst_81 = arith.constant dense<0.000000e+00> : vector<8x256xf32>
    %308 = tpu.matmul %306, %307, %cst_81 {dimension_numbers = #tpu.dot_dimension_numbers<[1], [0], [0], [1], [0, 0, 1, 1], [], []>} : vector<8x64xbf16>, vector<64x256xbf16>, vector<8x256xf32> -> vector<8x256xf32>
    %309 = arith.addf %305, %308 : vector<8x256xf32>
    %310 = arith.negf %309 : vector<8x256xf32>
    %311 = math.exp %310 : vector<8x256xf32>
    %cst_82 = arith.constant 1.000000e+00 : f32
    %312 = vector.broadcast %cst_82 : f32 to vector<8x256xf32>
    %313 = arith.addf %312, %311 : vector<8x256xf32>
    %314 = arith.divf %312, %313 : vector<8x256xf32>
    %315 = math.tanh %309 : vector<8x256xf32>
    %316 = vector.extract_strided_slice %314 {offsets = [0, 0], sizes = [8, 64], strides = [1, 1]} : vector<8x256xf32> to vector<8x64xf32>
    %317 = vector.extract_strided_slice %314 {offsets = [0, 64], sizes = [8, 64], strides = [1, 1]} : vector<8x256xf32> to vector<8x64xf32>
    %318 = vector.extract_strided_slice %315 {offsets = [0, 128], sizes = [8, 64], strides = [1, 1]} : vector<8x256xf32> to vector<8x64xf32>
    %319 = vector.extract_strided_slice %314 {offsets = [0, 192], sizes = [8, 64], strides = [1, 1]} : vector<8x256xf32> to vector<8x64xf32>
    %320 = arith.mulf %317, %280 : vector<8x64xf32>
    %321 = arith.mulf %316, %318 : vector<8x64xf32>
    %322 = arith.addf %320, %321 : vector<8x64xf32>
    %323 = math.tanh %322 : vector<8x64xf32>
    %324 = arith.mulf %319, %323 : vector<8x64xf32>
    %325 = tpu.concatenate %324, %304 in 1 : vector<8x64xf32>, vector<8x32xf32> -> vector<8x96xf32>
    %326 = arith.truncf %325 : vector<8x96xf32> to vector<8x96xbf16>
    %c0_83 = arith.constant 0 : index
    %c0_84 = arith.constant 0 : index
    %327 = vector.load %arg4[%c0_83, %c0_84] : memref<96x128xbf16, #tpu.memory_space<vmem>>, vector<96x128xbf16>
    %cst_85 = arith.constant dense<0.000000e+00> : vector<8x128xf32>
    %328 = tpu.matmul %326, %327, %cst_85 {dimension_numbers = #tpu.dot_dimension_numbers<[1], [0], [0], [1], [0, 0, 1, 1], [], []>} : vector<8x96xbf16>, vector<96x128xbf16>, vector<8x128xf32> -> vector<8x128xf32>
    %c0_86 = arith.constant 0 : index
    %c0_87 = arith.constant 0 : index
    %329 = vector.load %arg5[%c0_86, %c0_87] : memref<1x128xf32, #tpu.memory_space<vmem>>, vector<1x128xf32>
    %330 = vector.broadcast %329 : vector<1x128xf32> to vector<8x128xf32>
    %331 = arith.addf %328, %330 : vector<8x128xf32>
    %332 = arith.negf %331 : vector<8x128xf32>
    %333 = math.exp %332 : vector<8x128xf32>
    %cst_88 = arith.constant 1.000000e+00 : f32
    %334 = vector.broadcast %cst_88 : f32 to vector<8x128xf32>
    %335 = arith.addf %334, %333 : vector<8x128xf32>
    %336 = arith.divf %334, %335 : vector<8x128xf32>
    %337 = math.tanh %331 : vector<8x128xf32>
    %338 = vector.extract_strided_slice %336 {offsets = [0, 0], sizes = [8, 32], strides = [1, 1]} : vector<8x128xf32> to vector<8x32xf32>
    %339 = vector.extract_strided_slice %336 {offsets = [0, 32], sizes = [8, 32], strides = [1, 1]} : vector<8x128xf32> to vector<8x32xf32>
    %340 = vector.extract_strided_slice %337 {offsets = [0, 64], sizes = [8, 32], strides = [1, 1]} : vector<8x128xf32> to vector<8x32xf32>
    %341 = vector.extract_strided_slice %336 {offsets = [0, 96], sizes = [8, 32], strides = [1, 1]} : vector<8x128xf32> to vector<8x32xf32>
    %342 = arith.mulf %339, %302 : vector<8x32xf32>
    %343 = arith.mulf %338, %340 : vector<8x32xf32>
    %344 = arith.addf %342, %343 : vector<8x32xf32>
    %345 = math.tanh %344 : vector<8x32xf32>
    %346 = arith.mulf %341, %345 : vector<8x32xf32>
    %347 = arith.truncf %346 : vector<8x32xf32> to vector<8x32xbf16>
    %c0_89 = arith.constant 0 : index
    %c0_90 = arith.constant 0 : index
    %348 = vector.load %arg11[%c0_89, %c0_90] : memref<32x128xbf16, #tpu.memory_space<vmem>>, vector<32x128xbf16>
    %cst_91 = arith.constant dense<0.000000e+00> : vector<8x128xf32>
    %349 = tpu.matmul %347, %348, %cst_91 {dimension_numbers = #tpu.dot_dimension_numbers<[1], [0], [0], [1], [0, 0, 1, 1], [], []>} : vector<8x32xbf16>, vector<32x128xbf16>, vector<8x128xf32> -> vector<8x128xf32>
    %c0_92 = arith.constant 0 : index
    %c0_93 = arith.constant 0 : index
    %350 = vector.load %arg12[%c0_92, %c0_93] : memref<1x128xf32, #tpu.memory_space<vmem>>, vector<1x128xf32>
    %351 = vector.broadcast %350 : vector<1x128xf32> to vector<8x128xf32>
    %352 = arith.addf %349, %351 : vector<8x128xf32>
    %c0_94 = arith.constant 0 : index
    %c0_95 = arith.constant 0 : index
    %353 = vector.load %arg16[%c0_94, %c0_95] : memref<8x128xf32, #tpu.memory_space<vmem>>, vector<8x128xf32>
    tpu.vector_store %arg16[%c0_94, %c0_95], %352 {strides = array<i32>} : memref<8x128xf32, #tpu.memory_space<vmem>>, vector<8x128xf32>,
    %354 = arith.truncf %346 : vector<8x32xf32> to vector<8x32xbf16>
    %c0_96 = arith.constant 0 : index
    %c0_97 = arith.constant 0 : index
    %355 = vector.load %arg6[%c0_96, %c0_97] : memref<32x128xbf16, #tpu.memory_space<vmem>>, vector<32x128xbf16>
    %cst_98 = arith.constant dense<0.000000e+00> : vector<8x128xf32>
    %356 = tpu.matmul %354, %355, %cst_98 {dimension_numbers = #tpu.dot_dimension_numbers<[1], [0], [0], [1], [0, 0, 1, 1], [], []>} : vector<8x32xbf16>, vector<32x128xbf16>, vector<8x128xf32> -> vector<8x128xf32>
    %c0_99 = arith.constant 0 : index
    %c0_100 = arith.constant 0 : index
    %357 = vector.load %arg8[%c0_99, %c0_100] : memref<1x128xf32, #tpu.memory_space<vmem>>, vector<1x128xf32>
    %358 = vector.broadcast %357 : vector<1x128xf32> to vector<8x128xf32>
    %359 = arith.addf %356, %358 : vector<8x128xf32>
    %cst_101 = arith.constant 0.000000e+00 : f32
    %360 = vector.broadcast %cst_101 : f32 to vector<8x32xf32>
    %cst_102 = arith.constant 0.000000e+00 : f32
    %361 = vector.broadcast %cst_102 : f32 to vector<8x32xf32>
    %cst_103 = arith.constant 0.000000e+00 : f32
    %362 = vector.broadcast %cst_103 : f32 to vector<8x64xf32>
    %cst_104 = arith.constant 0.000000e+00 : f32
    %363 = vector.broadcast %cst_104 : f32 to vector<8x64xf32>
    %364 = arith.truncf %360 : vector<8x32xf32> to vector<8x32xbf16>
    %c0_105 = arith.constant 0 : index
    %c0_106 = arith.constant 0 : index
    %365 = vector.load %arg7[%c0_105, %c0_106] : memref<32x128xbf16, #tpu.memory_space<vmem>>, vector<32x128xbf16>
    %cst_107 = arith.constant dense<0.000000e+00> : vector<8x128xf32>
    %366 = tpu.matmul %364, %365, %cst_107 {dimension_numbers = #tpu.dot_dimension_numbers<[1], [0], [0], [1], [0, 0, 1, 1], [], []>} : vector<8x32xbf16>, vector<32x128xbf16>, vector<8x128xf32> -> vector<8x128xf32>
    %367 = arith.addf %359, %366 : vector<8x128xf32>
    %368 = arith.negf %367 : vector<8x128xf32>
    %369 = math.exp %368 : vector<8x128xf32>
    %cst_108 = arith.constant 1.000000e+00 : f32
    %370 = vector.broadcast %cst_108 : f32 to vector<8x128xf32>
    %371 = arith.addf %370, %369 : vector<8x128xf32>
    %372 = arith.divf %370, %371 : vector<8x128xf32>
    %373 = math.tanh %367 : vector<8x128xf32>
    %374 = vector.extract_strided_slice %372 {offsets = [0, 0], sizes = [8, 32], strides = [1, 1]} : vector<8x128xf32> to vector<8x32xf32>
    %375 = vector.extract_strided_slice %372 {offsets = [0, 32], sizes = [8, 32], strides = [1, 1]} : vector<8x128xf32> to vector<8x32xf32>
    %376 = vector.extract_strided_slice %373 {offsets = [0, 64], sizes = [8, 32], strides = [1, 1]} : vector<8x128xf32> to vector<8x32xf32>
    %377 = vector.extract_strided_slice %372 {offsets = [0, 96], sizes = [8, 32], strides = [1, 1]} : vector<8x128xf32> to vector<8x32xf32>
    %378 = arith.mulf %375, %361 : vector<8x32xf32>
    %379 = arith.mulf %374, %376 : vector<8x32xf32>
    %380 = arith.addf %378, %379 : vector<8x32xf32>
    %381 = math.tanh %380 : vector<8x32xf32>
    %382 = arith.mulf %377, %381 : vector<8x32xf32>
    %383 = tpu.concatenate %382, %362 in 1 : vector<8x32xf32>, vector<8x64xf32> -> vector<8x96xf32>
    %384 = arith.truncf %383 : vector<8x96xf32> to vector<8x96xbf16>
    %c0_109 = arith.constant 0 : index
    %c0_110 = arith.constant 0 : index
    %385 = vector.load %arg9[%c0_109, %c0_110] : memref<96x256xbf16, #tpu.memory_space<vmem>>, vector<96x256xbf16>
    %cst_111 = arith.constant dense<0.000000e+00> : vector<8x256xf32>
    %386 = tpu.matmul %384, %385, %cst_111 {dimension_numbers = #tpu.dot_dimension_numbers<[1], [0], [0], [1], [0, 0, 1, 1], [], []>} : vector<8x96xbf16>, vector<96x256xbf16>, vector<8x256xf32> -> vector<8x256xf32>
    %c0_112 = arith.constant 0 : index
    %c0_113 = arith.constant 0 : index
    %387 = vector.load %arg10[%c0_112, %c0_113] : memref<1x256xf32, #tpu.memory_space<vmem>>, vector<1x256xf32>
    %388 = vector.broadcast %387 : vector<1x256xf32> to vector<8x256xf32>
    %389 = arith.addf %386, %388 : vector<8x256xf32>
    %390 = arith.negf %389 : vector<8x256xf32>
    %391 = math.exp %390 : vector<8x256xf32>
    %cst_114 = arith.constant 1.000000e+00 : f32
    %392 = vector.broadcast %cst_114 : f32 to vector<8x256xf32>
    %393 = arith.addf %392, %391 : vector<8x256xf32>
    %394 = arith.divf %392, %393 : vector<8x256xf32>
    %395 = math.tanh %389 : vector<8x256xf32>
    %396 = vector.extract_strided_slice %394 {offsets = [0, 0], sizes = [8, 64], strides = [1, 1]} : vector<8x256xf32> to vector<8x64xf32>
    %397 = vector.extract_strided_slice %394 {offsets = [0, 64], sizes = [8, 64], strides = [1, 1]} : vector<8x256xf32> to vector<8x64xf32>
    %398 = vector.extract_strided_slice %395 {offsets = [0, 128], sizes = [8, 64], strides = [1, 1]} : vector<8x256xf32> to vector<8x64xf32>
    %399 = vector.extract_strided_slice %394 {offsets = [0, 192], sizes = [8, 64], strides = [1, 1]} : vector<8x256xf32> to vector<8x64xf32>
    %400 = arith.mulf %397, %363 : vector<8x64xf32>
    %401 = arith.mulf %396, %398 : vector<8x64xf32>
    %402 = arith.addf %400, %401 : vector<8x64xf32>
    %403 = math.tanh %402 : vector<8x64xf32>
    %404 = arith.mulf %399, %403 : vector<8x64xf32>
    %405 = arith.truncf %382 : vector<8x32xf32> to vector<8x32xbf16>
    %c0_115 = arith.constant 0 : index
    %c0_116 = arith.constant 0 : index
    %406 = vector.load %arg7[%c0_115, %c0_116] : memref<32x128xbf16, #tpu.memory_space<vmem>>, vector<32x128xbf16>
    %cst_117 = arith.constant dense<0.000000e+00> : vector<8x128xf32>
    %407 = tpu.matmul %405, %406, %cst_117 {dimension_numbers = #tpu.dot_dimension_numbers<[1], [0], [0], [1], [0, 0, 1, 1], [], []>} : vector<8x32xbf16>, vector<32x128xbf16>, vector<8x128xf32> -> vector<8x128xf32>
    %408 = arith.addf %359, %407 : vector<8x128xf32>
    %409 = arith.negf %408 : vector<8x128xf32>
    %410 = math.exp %409 : vector<8x128xf32>
    %cst_118 = arith.constant 1.000000e+00 : f32
    %411 = vector.broadcast %cst_118 : f32 to vector<8x128xf32>
    %412 = arith.addf %411, %410 : vector<8x128xf32>
    %413 = arith.divf %411, %412 : vector<8x128xf32>
    %414 = math.tanh %408 : vector<8x128xf32>
    %415 = vector.extract_strided_slice %413 {offsets = [0, 0], sizes = [8, 32], strides = [1, 1]} : vector<8x128xf32> to vector<8x32xf32>
    %416 = vector.extract_strided_slice %413 {offsets = [0, 32], sizes = [8, 32], strides = [1, 1]} : vector<8x128xf32> to vector<8x32xf32>
    %417 = vector.extract_strided_slice %414 {offsets = [0, 64], sizes = [8, 32], strides = [1, 1]} : vector<8x128xf32> to vector<8x32xf32>
    %418 = vector.extract_strided_slice %413 {offsets = [0, 96], sizes = [8, 32], strides = [1, 1]} : vector<8x128xf32> to vector<8x32xf32>
    %419 = arith.mulf %416, %380 : vector<8x32xf32>
    %420 = arith.mulf %415, %417 : vector<8x32xf32>
    %421 = arith.addf %419, %420 : vector<8x32xf32>
    %422 = math.tanh %421 : vector<8x32xf32>
    %423 = arith.mulf %418, %422 : vector<8x32xf32>
    %424 = tpu.concatenate %423, %404 in 1 : vector<8x32xf32>, vector<8x64xf32> -> vector<8x96xf32>
    %425 = arith.truncf %424 : vector<8x96xf32> to vector<8x96xbf16>
    %c0_119 = arith.constant 0 : index
    %c0_120 = arith.constant 0 : index
    %426 = vector.load %arg9[%c0_119, %c0_120] : memref<96x256xbf16, #tpu.memory_space<vmem>>, vector<96x256xbf16>
    %cst_121 = arith.constant dense<0.000000e+00> : vector<8x256xf32>
    %427 = tpu.matmul %425, %426, %cst_121 {dimension_numbers = #tpu.dot_dimension_numbers<[1], [0], [0], [1], [0, 0, 1, 1], [], []>} : vector<8x96xbf16>, vector<96x256xbf16>, vector<8x256xf32> -> vector<8x256xf32>
    %c0_122 = arith.constant 0 : index
    %c0_123 = arith.constant 0 : index
    %428 = vector.load %arg10[%c0_122, %c0_123] : memref<1x256xf32, #tpu.memory_space<vmem>>, vector<1x256xf32>
    %429 = vector.broadcast %428 : vector<1x256xf32> to vector<8x256xf32>
    %430 = arith.addf %427, %429 : vector<8x256xf32>
    %431 = arith.negf %430 : vector<8x256xf32>
    %432 = math.exp %431 : vector<8x256xf32>
    %cst_124 = arith.constant 1.000000e+00 : f32
    %433 = vector.broadcast %cst_124 : f32 to vector<8x256xf32>
    %434 = arith.addf %433, %432 : vector<8x256xf32>
    %435 = arith.divf %433, %434 : vector<8x256xf32>
    %436 = math.tanh %430 : vector<8x256xf32>
    %437 = vector.extract_strided_slice %435 {offsets = [0, 0], sizes = [8, 64], strides = [1, 1]} : vector<8x256xf32> to vector<8x64xf32>
    %438 = vector.extract_strided_slice %435 {offsets = [0, 64], sizes = [8, 64], strides = [1, 1]} : vector<8x256xf32> to vector<8x64xf32>
    %439 = vector.extract_strided_slice %436 {offsets = [0, 128], sizes = [8, 64], strides = [1, 1]} : vector<8x256xf32> to vector<8x64xf32>
    %440 = vector.extract_strided_slice %435 {offsets = [0, 192], sizes = [8, 64], strides = [1, 1]} : vector<8x256xf32> to vector<8x64xf32>
    %441 = arith.mulf %438, %402 : vector<8x64xf32>
    %442 = arith.mulf %437, %439 : vector<8x64xf32>
    %443 = arith.addf %441, %442 : vector<8x64xf32>
    %444 = math.tanh %443 : vector<8x64xf32>
    %445 = arith.mulf %440, %444 : vector<8x64xf32>
    %446 = arith.truncf %423 : vector<8x32xf32> to vector<8x32xbf16>
    %c0_125 = arith.constant 0 : index
    %c0_126 = arith.constant 0 : index
    %447 = vector.load %arg7[%c0_125, %c0_126] : memref<32x128xbf16, #tpu.memory_space<vmem>>, vector<32x128xbf16>
    %cst_127 = arith.constant dense<0.000000e+00> : vector<8x128xf32>
    %448 = tpu.matmul %446, %447, %cst_127 {dimension_numbers = #tpu.dot_dimension_numbers<[1], [0], [0], [1], [0, 0, 1, 1], [], []>} : vector<8x32xbf16>, vector<32x128xbf16>, vector<8x128xf32> -> vector<8x128xf32>
    %449 = arith.addf %359, %448 : vector<8x128xf32>
    %450 = arith.negf %449 : vector<8x128xf32>
    %451 = math.exp %450 : vector<8x128xf32>
    %cst_128 = arith.constant 1.000000e+00 : f32
    %452 = vector.broadcast %cst_128 : f32 to vector<8x128xf32>
    %453 = arith.addf %452, %451 : vector<8x128xf32>
    %454 = arith.divf %452, %453 : vector<8x128xf32>
    %455 = math.tanh %449 : vector<8x128xf32>
    %456 = vector.extract_strided_slice %454 {offsets = [0, 0], sizes = [8, 32], strides = [1, 1]} : vector<8x128xf32> to vector<8x32xf32>
    %457 = vector.extract_strided_slice %454 {offsets = [0, 32], sizes = [8, 32], strides = [1, 1]} : vector<8x128xf32> to vector<8x32xf32>
    %458 = vector.extract_strided_slice %455 {offsets = [0, 64], sizes = [8, 32], strides = [1, 1]} : vector<8x128xf32> to vector<8x32xf32>
    %459 = vector.extract_strided_slice %454 {offsets = [0, 96], sizes = [8, 32], strides = [1, 1]} : vector<8x128xf32> to vector<8x32xf32>
    %460 = arith.mulf %457, %421 : vector<8x32xf32>
    %461 = arith.mulf %456, %458 : vector<8x32xf32>
    %462 = arith.addf %460, %461 : vector<8x32xf32>
    %463 = math.tanh %462 : vector<8x32xf32>
    %464 = arith.mulf %459, %463 : vector<8x32xf32>
    %465 = tpu.concatenate %464, %445 in 1 : vector<8x32xf32>, vector<8x64xf32> -> vector<8x96xf32>
    %466 = arith.truncf %465 : vector<8x96xf32> to vector<8x96xbf16>
    %c0_129 = arith.constant 0 : index
    %c0_130 = arith.constant 0 : index
    %467 = vector.load %arg9[%c0_129, %c0_130] : memref<96x256xbf16, #tpu.memory_space<vmem>>, vector<96x256xbf16>
    %cst_131 = arith.constant dense<0.000000e+00> : vector<8x256xf32>
    %468 = tpu.matmul %466, %467, %cst_131 {dimension_numbers = #tpu.dot_dimension_numbers<[1], [0], [0], [1], [0, 0, 1, 1], [], []>} : vector<8x96xbf16>, vector<96x256xbf16>, vector<8x256xf32> -> vector<8x256xf32>
    %c0_132 = arith.constant 0 : index
    %c0_133 = arith.constant 0 : index
    %469 = vector.load %arg10[%c0_132, %c0_133] : memref<1x256xf32, #tpu.memory_space<vmem>>, vector<1x256xf32>
    %470 = vector.broadcast %469 : vector<1x256xf32> to vector<8x256xf32>
    %471 = arith.addf %468, %470 : vector<8x256xf32>
    %472 = arith.negf %471 : vector<8x256xf32>
    %473 = math.exp %472 : vector<8x256xf32>
    %cst_134 = arith.constant 1.000000e+00 : f32
    %474 = vector.broadcast %cst_134 : f32 to vector<8x256xf32>
    %475 = arith.addf %474, %473 : vector<8x256xf32>
    %476 = arith.divf %474, %475 : vector<8x256xf32>
    %477 = math.tanh %471 : vector<8x256xf32>
    %478 = vector.extract_strided_slice %476 {offsets = [0, 0], sizes = [8, 64], strides = [1, 1]} : vector<8x256xf32> to vector<8x64xf32>
    %479 = vector.extract_strided_slice %476 {offsets = [0, 64], sizes = [8, 64], strides = [1, 1]} : vector<8x256xf32> to vector<8x64xf32>
    %480 = vector.extract_strided_slice %477 {offsets = [0, 128], sizes = [8, 64], strides = [1, 1]} : vector<8x256xf32> to vector<8x64xf32>
    %481 = vector.extract_strided_slice %476 {offsets = [0, 192], sizes = [8, 64], strides = [1, 1]} : vector<8x256xf32> to vector<8x64xf32>
    %482 = arith.mulf %479, %443 : vector<8x64xf32>
    %483 = arith.mulf %478, %480 : vector<8x64xf32>
    %484 = arith.addf %482, %483 : vector<8x64xf32>
    %485 = math.tanh %484 : vector<8x64xf32>
    %486 = arith.mulf %481, %485 : vector<8x64xf32>
    %487 = arith.truncf %464 : vector<8x32xf32> to vector<8x32xbf16>
    %c0_135 = arith.constant 0 : index
    %c0_136 = arith.constant 0 : index
    %488 = vector.load %arg7[%c0_135, %c0_136] : memref<32x128xbf16, #tpu.memory_space<vmem>>, vector<32x128xbf16>
    %cst_137 = arith.constant dense<0.000000e+00> : vector<8x128xf32>
    %489 = tpu.matmul %487, %488, %cst_137 {dimension_numbers = #tpu.dot_dimension_numbers<[1], [0], [0], [1], [0, 0, 1, 1], [], []>} : vector<8x32xbf16>, vector<32x128xbf16>, vector<8x128xf32> -> vector<8x128xf32>
    %490 = arith.addf %359, %489 : vector<8x128xf32>
    %491 = arith.negf %490 : vector<8x128xf32>
    %492 = math.exp %491 : vector<8x128xf32>
    %cst_138 = arith.constant 1.000000e+00 : f32
    %493 = vector.broadcast %cst_138 : f32 to vector<8x128xf32>
    %494 = arith.addf %493, %492 : vector<8x128xf32>
    %495 = arith.divf %493, %494 : vector<8x128xf32>
    %496 = math.tanh %490 : vector<8x128xf32>
    %497 = vector.extract_strided_slice %495 {offsets = [0, 0], sizes = [8, 32], strides = [1, 1]} : vector<8x128xf32> to vector<8x32xf32>
    %498 = vector.extract_strided_slice %495 {offsets = [0, 32], sizes = [8, 32], strides = [1, 1]} : vector<8x128xf32> to vector<8x32xf32>
    %499 = vector.extract_strided_slice %496 {offsets = [0, 64], sizes = [8, 32], strides = [1, 1]} : vector<8x128xf32> to vector<8x32xf32>
    %500 = vector.extract_strided_slice %495 {offsets = [0, 96], sizes = [8, 32], strides = [1, 1]} : vector<8x128xf32> to vector<8x32xf32>
    %501 = arith.mulf %498, %462 : vector<8x32xf32>
    %502 = arith.mulf %497, %499 : vector<8x32xf32>
    %503 = arith.addf %501, %502 : vector<8x32xf32>
    %504 = math.tanh %503 : vector<8x32xf32>
    %505 = arith.mulf %500, %504 : vector<8x32xf32>
    %506 = tpu.concatenate %505, %486 in 1 : vector<8x32xf32>, vector<8x64xf32> -> vector<8x96xf32>
    %507 = arith.truncf %506 : vector<8x96xf32> to vector<8x96xbf16>
    %c0_139 = arith.constant 0 : index
    %c0_140 = arith.constant 0 : index
    %508 = vector.load %arg9[%c0_139, %c0_140] : memref<96x256xbf16, #tpu.memory_space<vmem>>, vector<96x256xbf16>
    %cst_141 = arith.constant dense<0.000000e+00> : vector<8x256xf32>
    %509 = tpu.matmul %507, %508, %cst_141 {dimension_numbers = #tpu.dot_dimension_numbers<[1], [0], [0], [1], [0, 0, 1, 1], [], []>} : vector<8x96xbf16>, vector<96x256xbf16>, vector<8x256xf32> -> vector<8x256xf32>
    %c0_142 = arith.constant 0 : index
    %c0_143 = arith.constant 0 : index
    %510 = vector.load %arg10[%c0_142, %c0_143] : memref<1x256xf32, #tpu.memory_space<vmem>>, vector<1x256xf32>
    %511 = vector.broadcast %510 : vector<1x256xf32> to vector<8x256xf32>
    %512 = arith.addf %509, %511 : vector<8x256xf32>
    %513 = arith.negf %512 : vector<8x256xf32>
    %514 = math.exp %513 : vector<8x256xf32>
    %cst_144 = arith.constant 1.000000e+00 : f32
    %515 = vector.broadcast %cst_144 : f32 to vector<8x256xf32>
    %516 = arith.addf %515, %514 : vector<8x256xf32>
    %517 = arith.divf %515, %516 : vector<8x256xf32>
    %518 = math.tanh %512 : vector<8x256xf32>
    %519 = vector.extract_strided_slice %517 {offsets = [0, 0], sizes = [8, 64], strides = [1, 1]} : vector<8x256xf32> to vector<8x64xf32>
    %520 = vector.extract_strided_slice %517 {offsets = [0, 64], sizes = [8, 64], strides = [1, 1]} : vector<8x256xf32> to vector<8x64xf32>
    %521 = vector.extract_strided_slice %518 {offsets = [0, 128], sizes = [8, 64], strides = [1, 1]} : vector<8x256xf32> to vector<8x64xf32>
    %522 = vector.extract_strided_slice %517 {offsets = [0, 192], sizes = [8, 64], strides = [1, 1]} : vector<8x256xf32> to vector<8x64xf32>
    %523 = arith.mulf %520, %484 : vector<8x64xf32>
    %524 = arith.mulf %519, %521 : vector<8x64xf32>
    %525 = arith.addf %523, %524 : vector<8x64xf32>
    %526 = math.tanh %525 : vector<8x64xf32>
    %527 = arith.mulf %522, %526 : vector<8x64xf32>
    %528 = arith.truncf %505 : vector<8x32xf32> to vector<8x32xbf16>
    %c0_145 = arith.constant 0 : index
    %c0_146 = arith.constant 0 : index
    %529 = vector.load %arg7[%c0_145, %c0_146] : memref<32x128xbf16, #tpu.memory_space<vmem>>, vector<32x128xbf16>
    %cst_147 = arith.constant dense<0.000000e+00> : vector<8x128xf32>
    %530 = tpu.matmul %528, %529, %cst_147 {dimension_numbers = #tpu.dot_dimension_numbers<[1], [0], [0], [1], [0, 0, 1, 1], [], []>} : vector<8x32xbf16>, vector<32x128xbf16>, vector<8x128xf32> -> vector<8x128xf32>
    %531 = arith.addf %359, %530 : vector<8x128xf32>
    %532 = arith.negf %531 : vector<8x128xf32>
    %533 = math.exp %532 : vector<8x128xf32>
    %cst_148 = arith.constant 1.000000e+00 : f32
    %534 = vector.broadcast %cst_148 : f32 to vector<8x128xf32>
    %535 = arith.addf %534, %533 : vector<8x128xf32>
    %536 = arith.divf %534, %535 : vector<8x128xf32>
    %537 = math.tanh %531 : vector<8x128xf32>
    %538 = vector.extract_strided_slice %536 {offsets = [0, 0], sizes = [8, 32], strides = [1, 1]} : vector<8x128xf32> to vector<8x32xf32>
    %539 = vector.extract_strided_slice %536 {offsets = [0, 32], sizes = [8, 32], strides = [1, 1]} : vector<8x128xf32> to vector<8x32xf32>
    %540 = vector.extract_strided_slice %537 {offsets = [0, 64], sizes = [8, 32], strides = [1, 1]} : vector<8x128xf32> to vector<8x32xf32>
    %541 = vector.extract_strided_slice %536 {offsets = [0, 96], sizes = [8, 32], strides = [1, 1]} : vector<8x128xf32> to vector<8x32xf32>
    %542 = arith.mulf %539, %503 : vector<8x32xf32>
    %543 = arith.mulf %538, %540 : vector<8x32xf32>
    %544 = arith.addf %542, %543 : vector<8x32xf32>
    %545 = math.tanh %544 : vector<8x32xf32>
    %546 = arith.mulf %541, %545 : vector<8x32xf32>
    %547 = tpu.concatenate %546, %527 in 1 : vector<8x32xf32>, vector<8x64xf32> -> vector<8x96xf32>
    %548 = arith.truncf %547 : vector<8x96xf32> to vector<8x96xbf16>
    %c0_149 = arith.constant 0 : index
    %c0_150 = arith.constant 0 : index
    %549 = vector.load %arg9[%c0_149, %c0_150] : memref<96x256xbf16, #tpu.memory_space<vmem>>, vector<96x256xbf16>
    %cst_151 = arith.constant dense<0.000000e+00> : vector<8x256xf32>
    %550 = tpu.matmul %548, %549, %cst_151 {dimension_numbers = #tpu.dot_dimension_numbers<[1], [0], [0], [1], [0, 0, 1, 1], [], []>} : vector<8x96xbf16>, vector<96x256xbf16>, vector<8x256xf32> -> vector<8x256xf32>
    %c0_152 = arith.constant 0 : index
    %c0_153 = arith.constant 0 : index
    %551 = vector.load %arg10[%c0_152, %c0_153] : memref<1x256xf32, #tpu.memory_space<vmem>>, vector<1x256xf32>
    %552 = vector.broadcast %551 : vector<1x256xf32> to vector<8x256xf32>
    %553 = arith.addf %550, %552 : vector<8x256xf32>
    %554 = arith.negf %553 : vector<8x256xf32>
    %555 = math.exp %554 : vector<8x256xf32>
    %cst_154 = arith.constant 1.000000e+00 : f32
    %556 = vector.broadcast %cst_154 : f32 to vector<8x256xf32>
    %557 = arith.addf %556, %555 : vector<8x256xf32>
    %558 = arith.divf %556, %557 : vector<8x256xf32>
    %559 = math.tanh %553 : vector<8x256xf32>
    %560 = vector.extract_strided_slice %558 {offsets = [0, 0], sizes = [8, 64], strides = [1, 1]} : vector<8x256xf32> to vector<8x64xf32>
    %561 = vector.extract_strided_slice %558 {offsets = [0, 64], sizes = [8, 64], strides = [1, 1]} : vector<8x256xf32> to vector<8x64xf32>
    %562 = vector.extract_strided_slice %559 {offsets = [0, 128], sizes = [8, 64], strides = [1, 1]} : vector<8x256xf32> to vector<8x64xf32>
    %563 = vector.extract_strided_slice %558 {offsets = [0, 192], sizes = [8, 64], strides = [1, 1]} : vector<8x256xf32> to vector<8x64xf32>
    %564 = arith.mulf %561, %525 : vector<8x64xf32>
    %565 = arith.mulf %560, %562 : vector<8x64xf32>
    %566 = arith.addf %564, %565 : vector<8x64xf32>
    %567 = math.tanh %566 : vector<8x64xf32>
    %568 = arith.mulf %563, %567 : vector<8x64xf32>
    %569 = arith.truncf %546 : vector<8x32xf32> to vector<8x32xbf16>
    %c0_155 = arith.constant 0 : index
    %c0_156 = arith.constant 0 : index
    %570 = vector.load %arg7[%c0_155, %c0_156] : memref<32x128xbf16, #tpu.memory_space<vmem>>, vector<32x128xbf16>
    %cst_157 = arith.constant dense<0.000000e+00> : vector<8x128xf32>
    %571 = tpu.matmul %569, %570, %cst_157 {dimension_numbers = #tpu.dot_dimension_numbers<[1], [0], [0], [1], [0, 0, 1, 1], [], []>} : vector<8x32xbf16>, vector<32x128xbf16>, vector<8x128xf32> -> vector<8x128xf32>
    %572 = arith.addf %359, %571 : vector<8x128xf32>
    %573 = arith.negf %572 : vector<8x128xf32>
    %574 = math.exp %573 : vector<8x128xf32>
    %cst_158 = arith.constant 1.000000e+00 : f32
    %575 = vector.broadcast %cst_158 : f32 to vector<8x128xf32>
    %576 = arith.addf %575, %574 : vector<8x128xf32>
    %577 = arith.divf %575, %576 : vector<8x128xf32>
    %578 = math.tanh %572 : vector<8x128xf32>
    %579 = vector.extract_strided_slice %577 {offsets = [0, 0], sizes = [8, 32], strides = [1, 1]} : vector<8x128xf32> to vector<8x32xf32>
    %580 = vector.extract_strided_slice %577 {offsets = [0, 32], sizes = [8, 32], strides = [1, 1]} : vector<8x128xf32> to vector<8x32xf32>
    %581 = vector.extract_strided_slice %578 {offsets = [0, 64], sizes = [8, 32], strides = [1, 1]} : vector<8x128xf32> to vector<8x32xf32>
    %582 = vector.extract_strided_slice %577 {offsets = [0, 96], sizes = [8, 32], strides = [1, 1]} : vector<8x128xf32> to vector<8x32xf32>
    %583 = arith.mulf %580, %544 : vector<8x32xf32>
    %584 = arith.mulf %579, %581 : vector<8x32xf32>
    %585 = arith.addf %583, %584 : vector<8x32xf32>
    %586 = math.tanh %585 : vector<8x32xf32>
    %587 = arith.mulf %582, %586 : vector<8x32xf32>
    %588 = tpu.concatenate %587, %568 in 1 : vector<8x32xf32>, vector<8x64xf32> -> vector<8x96xf32>
    %589 = arith.truncf %588 : vector<8x96xf32> to vector<8x96xbf16>
    %c0_159 = arith.constant 0 : index
    %c0_160 = arith.constant 0 : index
    %590 = vector.load %arg9[%c0_159, %c0_160] : memref<96x256xbf16, #tpu.memory_space<vmem>>, vector<96x256xbf16>
    %cst_161 = arith.constant dense<0.000000e+00> : vector<8x256xf32>
    %591 = tpu.matmul %589, %590, %cst_161 {dimension_numbers = #tpu.dot_dimension_numbers<[1], [0], [0], [1], [0, 0, 1, 1], [], []>} : vector<8x96xbf16>, vector<96x256xbf16>, vector<8x256xf32> -> vector<8x256xf32>
    %c0_162 = arith.constant 0 : index
    %c0_163 = arith.constant 0 : index
    %592 = vector.load %arg10[%c0_162, %c0_163] : memref<1x256xf32, #tpu.memory_space<vmem>>, vector<1x256xf32>
    %593 = vector.broadcast %592 : vector<1x256xf32> to vector<8x256xf32>
    %594 = arith.addf %591, %593 : vector<8x256xf32>
    %595 = arith.negf %594 : vector<8x256xf32>
    %596 = math.exp %595 : vector<8x256xf32>
    %cst_164 = arith.constant 1.000000e+00 : f32
    %597 = vector.broadcast %cst_164 : f32 to vector<8x256xf32>
    %598 = arith.addf %597, %596 : vector<8x256xf32>
    %599 = arith.divf %597, %598 : vector<8x256xf32>
    %600 = math.tanh %594 : vector<8x256xf32>
    %601 = vector.extract_strided_slice %599 {offsets = [0, 0], sizes = [8, 64], strides = [1, 1]} : vector<8x256xf32> to vector<8x64xf32>
    %602 = vector.extract_strided_slice %599 {offsets = [0, 64], sizes = [8, 64], strides = [1, 1]} : vector<8x256xf32> to vector<8x64xf32>
    %603 = vector.extract_strided_slice %600 {offsets = [0, 128], sizes = [8, 64], strides = [1, 1]} : vector<8x256xf32> to vector<8x64xf32>
    %604 = vector.extract_strided_slice %599 {offsets = [0, 192], sizes = [8, 64], strides = [1, 1]} : vector<8x256xf32> to vector<8x64xf32>
    %605 = arith.mulf %602, %566 : vector<8x64xf32>
    %606 = arith.mulf %601, %603 : vector<8x64xf32>
    %607 = arith.addf %605, %606 : vector<8x64xf32>
    %608 = math.tanh %607 : vector<8x64xf32>
    %609 = arith.mulf %604, %608 : vector<8x64xf32>
    %610 = arith.truncf %587 : vector<8x32xf32> to vector<8x32xbf16>
    %c0_165 = arith.constant 0 : index
    %c0_166 = arith.constant 0 : index
    %611 = vector.load %arg7[%c0_165, %c0_166] : memref<32x128xbf16, #tpu.memory_space<vmem>>, vector<32x128xbf16>
    %cst_167 = arith.constant dense<0.000000e+00> : vector<8x128xf32>
    %612 = tpu.matmul %610, %611, %cst_167 {dimension_numbers = #tpu.dot_dimension_numbers<[1], [0], [0], [1], [0, 0, 1, 1], [], []>} : vector<8x32xbf16>, vector<32x128xbf16>, vector<8x128xf32> -> vector<8x128xf32>
    %613 = arith.addf %359, %612 : vector<8x128xf32>
    %614 = arith.negf %613 : vector<8x128xf32>
    %615 = math.exp %614 : vector<8x128xf32>
    %cst_168 = arith.constant 1.000000e+00 : f32
    %616 = vector.broadcast %cst_168 : f32 to vector<8x128xf32>
    %617 = arith.addf %616, %615 : vector<8x128xf32>
    %618 = arith.divf %616, %617 : vector<8x128xf32>
    %619 = math.tanh %613 : vector<8x128xf32>
    %620 = vector.extract_strided_slice %618 {offsets = [0, 0], sizes = [8, 32], strides = [1, 1]} : vector<8x128xf32> to vector<8x32xf32>
    %621 = vector.extract_strided_slice %618 {offsets = [0, 32], sizes = [8, 32], strides = [1, 1]} : vector<8x128xf32> to vector<8x32xf32>
    %622 = vector.extract_strided_slice %619 {offsets = [0, 64], sizes = [8, 32], strides = [1, 1]} : vector<8x128xf32> to vector<8x32xf32>
    %623 = vector.extract_strided_slice %618 {offsets = [0, 96], sizes = [8, 32], strides = [1, 1]} : vector<8x128xf32> to vector<8x32xf32>
    %624 = arith.mulf %621, %585 : vector<8x32xf32>
    %625 = arith.mulf %620, %622 : vector<8x32xf32>
    %626 = arith.addf %624, %625 : vector<8x32xf32>
    %627 = math.tanh %626 : vector<8x32xf32>
    %628 = arith.mulf %623, %627 : vector<8x32xf32>
    %629 = tpu.concatenate %628, %609 in 1 : vector<8x32xf32>, vector<8x64xf32> -> vector<8x96xf32>
    %630 = arith.truncf %629 : vector<8x96xf32> to vector<8x96xbf16>
    %c0_169 = arith.constant 0 : index
    %c0_170 = arith.constant 0 : index
    %631 = vector.load %arg9[%c0_169, %c0_170] : memref<96x256xbf16, #tpu.memory_space<vmem>>, vector<96x256xbf16>
    %cst_171 = arith.constant dense<0.000000e+00> : vector<8x256xf32>
    %632 = tpu.matmul %630, %631, %cst_171 {dimension_numbers = #tpu.dot_dimension_numbers<[1], [0], [0], [1], [0, 0, 1, 1], [], []>} : vector<8x96xbf16>, vector<96x256xbf16>, vector<8x256xf32> -> vector<8x256xf32>
    %c0_172 = arith.constant 0 : index
    %c0_173 = arith.constant 0 : index
    %633 = vector.load %arg10[%c0_172, %c0_173] : memref<1x256xf32, #tpu.memory_space<vmem>>, vector<1x256xf32>
    %634 = vector.broadcast %633 : vector<1x256xf32> to vector<8x256xf32>
    %635 = arith.addf %632, %634 : vector<8x256xf32>
    %636 = arith.negf %635 : vector<8x256xf32>
    %637 = math.exp %636 : vector<8x256xf32>
    %cst_174 = arith.constant 1.000000e+00 : f32
    %638 = vector.broadcast %cst_174 : f32 to vector<8x256xf32>
    %639 = arith.addf %638, %637 : vector<8x256xf32>
    %640 = arith.divf %638, %639 : vector<8x256xf32>
    %641 = math.tanh %635 : vector<8x256xf32>
    %642 = vector.extract_strided_slice %640 {offsets = [0, 0], sizes = [8, 64], strides = [1, 1]} : vector<8x256xf32> to vector<8x64xf32>
    %643 = vector.extract_strided_slice %640 {offsets = [0, 64], sizes = [8, 64], strides = [1, 1]} : vector<8x256xf32> to vector<8x64xf32>
    %644 = vector.extract_strided_slice %641 {offsets = [0, 128], sizes = [8, 64], strides = [1, 1]} : vector<8x256xf32> to vector<8x64xf32>
    %645 = vector.extract_strided_slice %640 {offsets = [0, 192], sizes = [8, 64], strides = [1, 1]} : vector<8x256xf32> to vector<8x64xf32>
    %646 = arith.mulf %643, %607 : vector<8x64xf32>
    %647 = arith.mulf %642, %644 : vector<8x64xf32>
    %648 = arith.addf %646, %647 : vector<8x64xf32>
    %649 = math.tanh %648 : vector<8x64xf32>
    %650 = arith.mulf %645, %649 : vector<8x64xf32>
    %651 = arith.truncf %628 : vector<8x32xf32> to vector<8x32xbf16>
    %c0_175 = arith.constant 0 : index
    %c0_176 = arith.constant 0 : index
    %652 = vector.load %arg7[%c0_175, %c0_176] : memref<32x128xbf16, #tpu.memory_space<vmem>>, vector<32x128xbf16>
    %cst_177 = arith.constant dense<0.000000e+00> : vector<8x128xf32>
    %653 = tpu.matmul %651, %652, %cst_177 {dimension_numbers = #tpu.dot_dimension_numbers<[1], [0], [0], [1], [0, 0, 1, 1], [], []>} : vector<8x32xbf16>, vector<32x128xbf16>, vector<8x128xf32> -> vector<8x128xf32>
    %654 = arith.addf %359, %653 : vector<8x128xf32>
    %655 = arith.negf %654 : vector<8x128xf32>
    %656 = math.exp %655 : vector<8x128xf32>
    %cst_178 = arith.constant 1.000000e+00 : f32
    %657 = vector.broadcast %cst_178 : f32 to vector<8x128xf32>
    %658 = arith.addf %657, %656 : vector<8x128xf32>
    %659 = arith.divf %657, %658 : vector<8x128xf32>
    %660 = math.tanh %654 : vector<8x128xf32>
    %661 = vector.extract_strided_slice %659 {offsets = [0, 0], sizes = [8, 32], strides = [1, 1]} : vector<8x128xf32> to vector<8x32xf32>
    %662 = vector.extract_strided_slice %659 {offsets = [0, 32], sizes = [8, 32], strides = [1, 1]} : vector<8x128xf32> to vector<8x32xf32>
    %663 = vector.extract_strided_slice %660 {offsets = [0, 64], sizes = [8, 32], strides = [1, 1]} : vector<8x128xf32> to vector<8x32xf32>
    %664 = vector.extract_strided_slice %659 {offsets = [0, 96], sizes = [8, 32], strides = [1, 1]} : vector<8x128xf32> to vector<8x32xf32>
    %665 = arith.mulf %662, %626 : vector<8x32xf32>
    %666 = arith.mulf %661, %663 : vector<8x32xf32>
    %667 = arith.addf %665, %666 : vector<8x32xf32>
    %668 = math.tanh %667 : vector<8x32xf32>
    %669 = arith.mulf %664, %668 : vector<8x32xf32>
    %670 = tpu.concatenate %669, %650 in 1 : vector<8x32xf32>, vector<8x64xf32> -> vector<8x96xf32>
    %671 = arith.truncf %670 : vector<8x96xf32> to vector<8x96xbf16>
    %c0_179 = arith.constant 0 : index
    %c0_180 = arith.constant 0 : index
    %672 = vector.load %arg9[%c0_179, %c0_180] : memref<96x256xbf16, #tpu.memory_space<vmem>>, vector<96x256xbf16>
    %cst_181 = arith.constant dense<0.000000e+00> : vector<8x256xf32>
    %673 = tpu.matmul %671, %672, %cst_181 {dimension_numbers = #tpu.dot_dimension_numbers<[1], [0], [0], [1], [0, 0, 1, 1], [], []>} : vector<8x96xbf16>, vector<96x256xbf16>, vector<8x256xf32> -> vector<8x256xf32>
    %c0_182 = arith.constant 0 : index
    %c0_183 = arith.constant 0 : index
    %674 = vector.load %arg10[%c0_182, %c0_183] : memref<1x256xf32, #tpu.memory_space<vmem>>, vector<1x256xf32>
    %675 = vector.broadcast %674 : vector<1x256xf32> to vector<8x256xf32>
    %676 = arith.addf %673, %675 : vector<8x256xf32>
    %677 = arith.negf %676 : vector<8x256xf32>
    %678 = math.exp %677 : vector<8x256xf32>
    %cst_184 = arith.constant 1.000000e+00 : f32
    %679 = vector.broadcast %cst_184 : f32 to vector<8x256xf32>
    %680 = arith.addf %679, %678 : vector<8x256xf32>
    %681 = arith.divf %679, %680 : vector<8x256xf32>
    %682 = math.tanh %676 : vector<8x256xf32>
    %683 = vector.extract_strided_slice %681 {offsets = [0, 0], sizes = [8, 64], strides = [1, 1]} : vector<8x256xf32> to vector<8x64xf32>
    %684 = vector.extract_strided_slice %681 {offsets = [0, 64], sizes = [8, 64], strides = [1, 1]} : vector<8x256xf32> to vector<8x64xf32>
    %685 = vector.extract_strided_slice %682 {offsets = [0, 128], sizes = [8, 64], strides = [1, 1]} : vector<8x256xf32> to vector<8x64xf32>
    %686 = vector.extract_strided_slice %681 {offsets = [0, 192], sizes = [8, 64], strides = [1, 1]} : vector<8x256xf32> to vector<8x64xf32>
    %687 = arith.mulf %684, %648 : vector<8x64xf32>
    %688 = arith.mulf %683, %685 : vector<8x64xf32>
    %689 = arith.addf %687, %688 : vector<8x64xf32>
    %690 = math.tanh %689 : vector<8x64xf32>
    %691 = arith.mulf %686, %690 : vector<8x64xf32>
    %692 = tpu.concatenate %404, %445, %486, %527, %568, %609, %650, %691 in 0 : vector<8x64xf32>, vector<8x64xf32>, vector<8x64xf32>, vector<8x64xf32>, vector<8x64xf32>, vector<8x64xf32>, vector<8x64xf32>, vector<8x64xf32> -> vector<64x64xf32>
    %693 = arith.truncf %692 : vector<64x64xf32> to vector<64x64xbf16>
    %c0_185 = arith.constant 0 : index
    %c0_186 = arith.constant 0 : index
    %694 = vector.load %arg13[%c0_185, %c0_186] : memref<64x128xbf16, #tpu.memory_space<vmem>>, vector<64x128xbf16>
    %cst_187 = arith.constant dense<0.000000e+00> : vector<64x128xf32>
    %695 = tpu.matmul %693, %694, %cst_187 {dimension_numbers = #tpu.dot_dimension_numbers<[1], [0], [0], [1], [0, 0, 1, 1], [], []>} : vector<64x64xbf16>, vector<64x128xbf16>, vector<64x128xf32> -> vector<64x128xf32>
    %c0_188 = arith.constant 0 : index
    %c0_189 = arith.constant 0 : index
    %696 = vector.load %arg14[%c0_188, %c0_189] : memref<1x128xf32, #tpu.memory_space<vmem>>, vector<1x128xf32>
    %697 = vector.broadcast %696 : vector<1x128xf32> to vector<64x128xf32>
    %698 = arith.addf %695, %697 : vector<64x128xf32>
    %c0_190 = arith.constant 0 : index
    %c0_191 = arith.constant 0 : index
    %699 = vector.load %arg15[%c0_190, %c0_191] : memref<64x128xf32, #tpu.memory_space<vmem>>, vector<64x128xf32>
    tpu.vector_store %arg15[%c0_190, %c0_191], %698 {strides = array<i32>} : memref<64x128xf32, #tpu.memory_space<vmem>>, vector<64x128xf32>,
    return
  }
}

</mosaic_0001>

<llo_original>
// kernel: autoencoder_forward.1
$region0: #{autoencoder_forward.1}
  #allocation0 [shape = 'u32[]', space=smem, size = 0x4, offset = 0x4, fixed_abs, tag = 'smem constant byte address 0x4 - core index']
  #allocation1 [shape = 'u32[144,128]{1,0:T(1,128)}', space=vmem, size = 0x12000, scoped, tag = 'internal scratch']
  %s0 = inlined_call_operand.vmem [shape: f32[64,128], index: 0, kind: input, shape index: {}]
  %s1 = inlined_call_operand.vmem [shape: bf16[128,256], index: 1, kind: input, shape index: {}]
  %s2 = inlined_call_operand.vmem [shape: bf16[64,256], index: 2, kind: input, shape index: {}]
  %s3 = inlined_call_operand.vmem [shape: f32[1,256], index: 3, kind: input, shape index: {}]
  %s4 = inlined_call_operand.vmem [shape: bf16[96,128], index: 4, kind: input, shape index: {}]
  %s5 = inlined_call_operand.vmem [shape: f32[1,128], index: 5, kind: input, shape index: {}]
  %s6 = inlined_call_operand.vmem [shape: bf16[32,128], index: 6, kind: input, shape index: {}]
  %s7 = inlined_call_operand.vmem [shape: bf16[32,128], index: 7, kind: input, shape index: {}]
  %s8 = inlined_call_operand.vmem [shape: f32[1,128], index: 8, kind: input, shape index: {}]
  %s9 = inlined_call_operand.vmem [shape: bf16[96,256], index: 9, kind: input, shape index: {}]
  %s10 = inlined_call_operand.vmem [shape: f32[1,256], index: 10, kind: input, shape index: {}]
  %s11 = inlined_call_operand.vmem [shape: bf16[32,128], index: 11, kind: input, shape index: {}]
  %s12 = inlined_call_operand.vmem [shape: f32[1,128], index: 12, kind: input, shape index: {}]
  %s13 = inlined_call_operand.vmem [shape: bf16[64,128], index: 13, kind: input, shape index: {}]
  %s14 = inlined_call_operand.vmem [shape: f32[1,128], index: 14, kind: input, shape index: {}]
  %s15 = inlined_call_operand.vmem [shape: f32[64,128], index: 15, kind: output, shape index: {0}]
  %s16 = inlined_call_operand.vmem [shape: f32[8,128], index: 16, kind: output, shape index: {1}]
  %17 = xla_tuple %s15, %s16
  %s18 = sld [smem:[#allocation0]]
  $region78: #{autoencoder_forward.1} parent=0
    _
  %s20 = ssub.s32 1, %s18
  %s21 = scalar_select 0, %s20, %s18
  // Predicated region
  $region2: #{autoencoder_forward.1} parent=0 // pred_check
    _
  $region3: #{autoencoder_forward.1} parent=0 // pred_check_branch
    %23 = sbr.rel (0) target = $region5
  $region4: #{autoencoder_forward.1} parent=0 // pred_region
    _
  $region5: #{autoencoder_forward.1} parent=0 // pred_fallthru
    _
  // Predicated region
  $region6: #{autoencoder_forward.1} parent=0 // pred_check
    _
  $region7: #{autoencoder_forward.1} parent=0 // pred_check_branch
    %25 = sbr.rel (0) target = $region9
  $region8: #{autoencoder_forward.1} parent=0 // pred_region
    _
  $region9: #{autoencoder_forward.1} parent=0 // pred_fallthru
    _
  // Predicated region
  $region10: #{autoencoder_forward.1} parent=0 // pred_check
    _
  $region11: #{autoencoder_forward.1} parent=0 // pred_check_branch
    %27 = sbr.rel (0) target = $region13
  $region12: #{autoencoder_forward.1} parent=0 // pred_region
    _
  $region13: #{autoencoder_forward.1} parent=0 // pred_fallthru
    _
  // Predicated region
  $region14: #{autoencoder_forward.1} parent=0 // pred_check
    _
  $region15: #{autoencoder_forward.1} parent=0 // pred_check_branch
    %29 = sbr.rel (0) target = $region17
  $region16: #{autoencoder_forward.1} parent=0 // pred_region
    _
  $region17: #{autoencoder_forward.1} parent=0 // pred_fallthru
    _
  // Predicated region
  $region18: #{autoencoder_forward.1} parent=0 // pred_check
    _
  $region19: #{autoencoder_forward.1} parent=0 // pred_check_branch
    %31 = sbr.rel (0) target = $region21
  $region20: #{autoencoder_forward.1} parent=0 // pred_region
    _
  $region21: #{autoencoder_forward.1} parent=0 // pred_fallthru
    _
  // Predicated region
  $region22: #{autoencoder_forward.1} parent=0 // pred_check
    _
  $region23: #{autoencoder_forward.1} parent=0 // pred_check_branch
    %33 = sbr.rel (0) target = $region25
  $region24: #{autoencoder_forward.1} parent=0 // pred_region
    _
  $region25: #{autoencoder_forward.1} parent=0 // pred_fallthru
    _
  // Predicated region
  $region26: #{autoencoder_forward.1} parent=0 // pred_check
    _
  $region27: #{autoencoder_forward.1} parent=0 // pred_check_branch
    %35 = sbr.rel (0) target = $region29
  $region28: #{autoencoder_forward.1} parent=0 // pred_region
    _
  $region29: #{autoencoder_forward.1} parent=0 // pred_fallthru
    _
  // Predicated region
  $region30: #{autoencoder_forward.1} parent=0 // pred_check
    _
  $region31: #{autoencoder_forward.1} parent=0 // pred_check_branch
    %37 = sbr.rel (0) target = $region33
  $region32: #{autoencoder_forward.1} parent=0 // pred_region
    _
  $region33: #{autoencoder_forward.1} parent=0 // pred_fallthru
    _
  // Predicated region
  $region34: #{autoencoder_forward.1} parent=0 // pred_check
    _
  $region35: #{autoencoder_forward.1} parent=0 // pred_check_branch
    %39 = sbr.rel (0) target = $region37
  $region36: #{autoencoder_forward.1} parent=0 // pred_region
    _
  $region37: #{autoencoder_forward.1} parent=0 // pred_fallthru
    _
  // Predicated region
  $region38: #{autoencoder_forward.1} parent=0 // pred_check
    _
  $region39: #{autoencoder_forward.1} parent=0 // pred_check_branch
    %41 = sbr.rel (0) target = $region41
  $region40: #{autoencoder_forward.1} parent=0 // pred_region
    _
  $region41: #{autoencoder_forward.1} parent=0 // pred_fallthru
    _
  // Predicated region
  $region42: #{autoencoder_forward.1} parent=0 // pred_check
    _
  $region43: #{autoencoder_forward.1} parent=0 // pred_check_branch
    %43 = sbr.rel (0) target = $region45
  $region44: #{autoencoder_forward.1} parent=0 // pred_region
    _
  $region45: #{autoencoder_forward.1} parent=0 // pred_fallthru
    _
  // Predicated region
  $region46: #{autoencoder_forward.1} parent=0 // pred_check
    _
  $region47: #{autoencoder_forward.1} parent=0 // pred_check_branch
    %45 = sbr.rel (0) target = $region49
  $region48: #{autoencoder_forward.1} parent=0 // pred_region
    _
  $region49: #{autoencoder_forward.1} parent=0 // pred_fallthru
    _
  // Predicated region
  $region50: #{autoencoder_forward.1} parent=0 // pred_check
    _
  $region51: #{autoencoder_forward.1} parent=0 // pred_check_branch
    %47 = sbr.rel (0) target = $region53
  $region52: #{autoencoder_forward.1} parent=0 // pred_region
    _
  $region53: #{autoencoder_forward.1} parent=0 // pred_fallthru
    _
  // Predicated region
  $region54: #{autoencoder_forward.1} parent=0 // pred_check
    _
  $region55: #{autoencoder_forward.1} parent=0 // pred_check_branch
    %49 = sbr.rel (0) target = $region57
  $region56: #{autoencoder_forward.1} parent=0 // pred_region
    _
  $region57: #{autoencoder_forward.1} parent=0 // pred_fallthru
    _
  // Predicated region
  $region58: #{autoencoder_forward.1} parent=0 // pred_check
    _
  $region59: #{autoencoder_forward.1} parent=0 // pred_check_branch
    %51 = sbr.rel (0) target = $region61
  $region60: #{autoencoder_forward.1} parent=0 // pred_region
    _
  $region61: #{autoencoder_forward.1} parent=0 // pred_fallthru
    _
  %v53 = vld [vmem:[%s0] sm:$0xff]
  %v54 = vld [vmem:[%s0 + $0x8] sm:$0xff]
  %v55 = vld [vmem:[%s0 + $0x10] sm:$0xff]
  %v56 = vld [vmem:[%s0 + $0x18] sm:$0xff]
  %v57 = vld [vmem:[%s0 + $0x20] sm:$0xff]
  %v58 = vld [vmem:[%s0 + $0x28] sm:$0xff]
  %v59 = vld [vmem:[%s0 + $0x30] sm:$0xff]
  %v60 = vld [vmem:[%s0 + $0x38] sm:$0xff]
  %v61 = vpack.c.bf16 %v54, %v53
  %v62 = vpack.c.bf16 %v56, %v55
  %v63 = vpack.c.bf16 %v58, %v57
  %v64 = vpack.c.bf16 %v60, %v59
  %v65 = vld [vmem:[%s1] sm:$0xff]
  %v66 = vld [vmem:[%s1 + $0x8] sm:$0xff]
  %v67 = vld [vmem:[%s1 + $0x10] sm:$0xff]
  %v68 = vld [vmem:[%s1 + $0x18] sm:$0xff]
  %v69 = vld [vmem:[%s1 + $0x20] sm:$0xff]
  %v70 = vld [vmem:[%s1 + $0x28] sm:$0xff]
  %v71 = vld [vmem:[%s1 + $0x30] sm:$0xff]
  %v72 = vld [vmem:[%s1 + $0x38] sm:$0xff]
  %v73 = vld [vmem:[%s1 + $0x40] sm:$0xff]
  %v74 = vld [vmem:[%s1 + $0x48] sm:$0xff]
  %v75 = vld [vmem:[%s1 + $0x50] sm:$0xff]
  %v76 = vld [vmem:[%s1 + $0x58] sm:$0xff]
  %v77 = vld [vmem:[%s1 + $0x60] sm:$0xff]
  %v78 = vld [vmem:[%s1 + $0x68] sm:$0xff]
  %v79 = vld [vmem:[%s1 + $0x70] sm:$0xff]
  %v80 = vld [vmem:[%s1 + $0x78] sm:$0xff]
  %v81 = vld [vmem:[%s3] sm:$0x3]
  %v83 = vlaneseq
  %v84 = vshrl.u32 %v83, 7
  %v85 = vsub.s32 0, %v84
  %v86 = vrot.slane %v81, %v85
  %v87 = vlaneseq
  %v88 = vshrl.u32 %v87, 7
  %v89 = vsub.s32 1, %v88
  %v90 = vrot.slane %v81, %v89
  %v109 = vunpack.c.l.b16 %v65
  %v110 = vunpack.c.h.b16 %v65
  %v111 = vunpack.c.l.b16 %v66
  %v112 = vunpack.c.h.b16 %v66
  %v113 = vunpack.c.l.b16 %v67
  %v114 = vunpack.c.h.b16 %v67
  %v115 = vunpack.c.l.b16 %v68
  %v116 = vunpack.c.h.b16 %v68
  %v117 = vunpack.c.l.b16 %v69
  %v118 = vunpack.c.h.b16 %v69
  %v119 = vunpack.c.l.b16 %v70
  %v120 = vunpack.c.h.b16 %v70
  %v121 = vunpack.c.l.b16 %v71
  %v122 = vunpack.c.h.b16 %v71
  %v123 = vunpack.c.l.b16 %v72
  %v124 = vunpack.c.h.b16 %v72
  %v125 = vunpack.c.l.b16 %v73
  %v126 = vunpack.c.h.b16 %v73
  %v127 = vunpack.c.l.b16 %v74
  %v128 = vunpack.c.h.b16 %v74
  %v129 = vunpack.c.l.b16 %v75
  %v130 = vunpack.c.h.b16 %v75
  %v131 = vunpack.c.l.b16 %v76
  %v132 = vunpack.c.h.b16 %v76
  %v133 = vunpack.c.l.b16 %v77
  %v134 = vunpack.c.h.b16 %v77
  %v135 = vunpack.c.l.b16 %v78
  %v136 = vunpack.c.h.b16 %v78
  %v137 = vunpack.c.l.b16 %v79
  %v138 = vunpack.c.h.b16 %v79
  %v139 = vunpack.c.l.b16 %v80
  %v140 = vunpack.c.h.b16 %v80
  %v141 = vpack.c.b16 %v111, %v109
  %v142 = vpack.c.b16 %v112, %v110
  %v143 = vpack.c.b16 %v115, %v113
  %v144 = vpack.c.b16 %v116, %v114
  %v145 = vpack.c.b16 %v119, %v117
  %v146 = vpack.c.b16 %v120, %v118
  %v147 = vpack.c.b16 %v123, %v121
  %v148 = vpack.c.b16 %v124, %v122
  %v149 = vpack.c.b16 %v127, %v125
  %v150 = vpack.c.b16 %v128, %v126
  %v151 = vpack.c.b16 %v131, %v129
  %v152 = vpack.c.b16 %v132, %v130
  %v153 = vpack.c.b16 %v135, %v133
  %v154 = vpack.c.b16 %v136, %v134
  %v155 = vpack.c.b16 %v139, %v137
  %v156 = vpack.c.b16 %v140, %v138
  %173 = vmatprep.subr.bf16.mxu0 %v142
  %174 = vmatpush1.bf16.msra.mxu0 %v141
  %175 = vmatprep.subr.bf16.mxu0 %v144
  %176 = vmatpush1.bf16.msra.mxu0 %v143
  %177 = vmatprep.subr.bf16.mxu0 %v146
  %178 = vmatpush1.bf16.msra.mxu0 %v145
  %179 = vmatprep.subr.bf16.mxu0 %v148
  %180 = vmatpush1.bf16.msra.mxu0 %v147
  %181 = vmatprep.subr.bf16.mxu0 %v150
  %182 = vmatpush1.bf16.msra.mxu0 %v149
  %183 = vmatprep.subr.bf16.mxu0 %v152
  %184 = vmatpush1.bf16.msra.mxu0 %v151
  %185 = vmatprep.subr.bf16.mxu0 %v154
  %186 = vmatpush1.bf16.msra.mxu0 %v153
  %187 = vmatprep.subr.bf16.mxu0 %v156
  %188 = vmatpush1.bf16.msra.mxu0 %v155
  %189 = vmatprep.subr.bf16.mxu0 0
  %190 = vmatpush1.bf16.msra.mxu0 0
  %191 = vmatprep.subr.bf16.mxu0 0
  %192 = vmatpush1.bf16.msra.mxu0 0
  %193 = vmatprep.subr.bf16.mxu0 0
  %194 = vmatpush1.bf16.msra.mxu0 0
  %195 = vmatprep.subr.bf16.mxu0 0
  %196 = vmatpush1.bf16.msra.mxu0 0
  %197 = vmatprep.subr.bf16.mxu0 0
  %198 = vmatpush1.bf16.msra.mxu0 0
  %199 = vmatprep.subr.bf16.mxu0 0
  %200 = vmatpush1.bf16.msra.mxu0 0
  %201 = vmatprep.subr.bf16.mxu0 0
  %202 = vmatpush1.bf16.msra.mxu0 0
  %203 = vmatprep.subr.bf16.mxu0 0
  %204 = vmatpush1.bf16.msra.mxu0 0
  %205 = vmatprep.mubr.bf16.mxu0 0
  %206 = vmatmul.mubr.bf16.gmra.mrb[0].mxu0 %v61
  %v207 = vpop.f32.mrb[0].mxu0
  %v208 = vadd.f32 %v86, %v207
  %v209 = vpop.f32.mrb[0].mxu0
  %v210 = vadd.f32 %v90, %v209
  %v211 = vpop.f32.mrb[0].mxu0
  %v212 = vadd.f32 %v86, %v211
  %v213 = vpop.f32.mrb[0].mxu0
  %v214 = vadd.f32 %v90, %v213
  %215 = vmatprep.mubr.bf16.mxu0 0
  %216 = vmatmul.mubr.bf16.gmra.mrb[0].mxu0 %v62
  %v217 = vpop.f32.mrb[0].mxu0
  %v218 = vadd.f32 %v86, %v217
  %v219 = vpop.f32.mrb[0].mxu0
  %v220 = vadd.f32 %v90, %v219
  %v221 = vpop.f32.mrb[0].mxu0
  %v222 = vadd.f32 %v86, %v221
  %v223 = vpop.f32.mrb[0].mxu0
  %v224 = vadd.f32 %v90, %v223
  %225 = vmatprep.mubr.bf16.mxu0 0
  %226 = vmatmul.mubr.bf16.gmra.mrb[0].mxu0 %v63
  %v227 = vpop.f32.mrb[0].mxu0
  %v228 = vadd.f32 %v86, %v227
  %v229 = vpop.f32.mrb[0].mxu0
  %v230 = vadd.f32 %v90, %v229
  %v231 = vpop.f32.mrb[0].mxu0
  %v232 = vadd.f32 %v86, %v231
  %v233 = vpop.f32.mrb[0].mxu0
  %v234 = vadd.f32 %v90, %v233
  %235 = vmatprep.mubr.bf16.mxu0 0
  %236 = vmatmul.mubr.bf16.gmra.mrb[0].mxu0 %v64
  %v237 = vpop.f32.mrb[0].mxu0
  %v238 = vadd.f32 %v86, %v237
  %v239 = vpop.f32.mrb[0].mxu0
  %v240 = vadd.f32 %v90, %v239
  %v241 = vpop.f32.mrb[0].mxu0
  %v242 = vadd.f32 %v86, %v241
  %v243 = vpop.f32.mrb[0].mxu0
  %v244 = vadd.f32 %v90, %v243
  %245 = vdwg.mxu0
  %v246 = vld [vmem:[%s2] sm:$0xff]
  %v247 = vld [vmem:[%s2 + $0x8] sm:$0xff]
  %v248 = vld [vmem:[%s2 + $0x10] sm:$0xff]
  %v249 = vld [vmem:[%s2 + $0x18] sm:$0xff]
  %v250 = vld [vmem:[%s2 + $0x20] sm:$0xff]
  %v251 = vld [vmem:[%s2 + $0x28] sm:$0xff]
  %v252 = vld [vmem:[%s2 + $0x30] sm:$0xff]
  %v253 = vld [vmem:[%s2 + $0x38] sm:$0xff]
  %v262 = vunpack.c.l.b16 %v246
  %v263 = vunpack.c.h.b16 %v246
  %v264 = vunpack.c.l.b16 %v247
  %v265 = vunpack.c.h.b16 %v247
  %v266 = vunpack.c.l.b16 %v248
  %v267 = vunpack.c.h.b16 %v248
  %v268 = vunpack.c.l.b16 %v249
  %v269 = vunpack.c.h.b16 %v249
  %v270 = vunpack.c.l.b16 %v250
  %v271 = vunpack.c.h.b16 %v250
  %v272 = vunpack.c.l.b16 %v251
  %v273 = vunpack.c.h.b16 %v251
  %v274 = vunpack.c.l.b16 %v252
  %v275 = vunpack.c.h.b16 %v252
  %v276 = vunpack.c.l.b16 %v253
  %v277 = vunpack.c.h.b16 %v253
  %v278 = vpack.c.b16 %v264, %v262
  %v279 = vpack.c.b16 %v265, %v263
  %v280 = vpack.c.b16 %v268, %v266
  %v281 = vpack.c.b16 %v269, %v267
  %v282 = vpack.c.b16 %v272, %v270
  %v283 = vpack.c.b16 %v273, %v271
  %v284 = vpack.c.b16 %v276, %v274
  %v285 = vpack.c.b16 %v277, %v275
  %vm294 = vcmask 523264
  %v296 = vsel %vm294, 0, 0
  %298 = vmatprep.subr.bf16.mxu0 %v279
  %299 = vmatpush1.bf16.msra.mxu0 %v278
  %300 = vmatprep.subr.bf16.mxu0 %v281
  %301 = vmatpush1.bf16.msra.mxu0 %v280
  %302 = vmatprep.subr.bf16.mxu0 %v283
  %303 = vmatpush1.bf16.msra.mxu0 %v282
  %304 = vmatprep.subr.bf16.mxu0 %v285
  %305 = vmatpush1.bf16.msra.mxu0 %v284
  %306 = vmatprep.subr.bf16.mxu0 0
  %307 = vmatpush1.bf16.msra.mxu0 0
  %308 = vmatprep.subr.bf16.mxu0 0
  %309 = vmatpush1.bf16.msra.mxu0 0
  %310 = vmatprep.subr.bf16.mxu0 0
  %311 = vmatpush1.bf16.msra.mxu0 0
  %312 = vmatprep.subr.bf16.mxu0 0
  %313 = vmatpush1.bf16.msra.mxu0 0
  %314 = vmatprep.subr.bf16.mxu0 0
  %315 = vmatpush1.bf16.msra.mxu0 0
  %316 = vmatprep.subr.bf16.mxu0 0
  %317 = vmatpush1.bf16.msra.mxu0 0
  %318 = vmatprep.subr.bf16.mxu0 0
  %319 = vmatpush1.bf16.msra.mxu0 0
  %320 = vmatprep.subr.bf16.mxu0 0
  %321 = vmatpush1.bf16.msra.mxu0 0
  %322 = vmatprep.subr.bf16.mxu0 0
  %323 = vmatpush1.bf16.msra.mxu0 0
  %324 = vmatprep.subr.bf16.mxu0 0
  %325 = vmatpush1.bf16.msra.mxu0 0
  %326 = vmatprep.subr.bf16.mxu0 0
  %327 = vmatpush1.bf16.msra.mxu0 0
  %328 = vmatprep.subr.bf16.mxu0 0
  %329 = vmatpush1.bf16.msra.mxu0 0
  %330 = vmatprep.mubr.bf16.mxu0 0
  %331 = vmatmul.mubr.bf16.gmra.mrb[0].mxu0 %v296
  %v332 = vpop.f32.mrb[0].mxu0
  %v333 = vadd.f32 0.0, %v332
  %v334 = vpop.f32.mrb[0].mxu0
  %v335 = vadd.f32 0.0, %v334
  %v336 = vpop.f32.mrb[0].mxu0
  %v337 = vpop.f32.mrb[0].mxu0
  %338 = vdwg.mxu0
  %v339 = vadd.f32 %v208, %v333
  %v340 = vadd.f32 %v210, %v335
  %v341 = vxor.u32 %v339, 2147483648
  %v342 = vxor.u32 %v340, 2147483648
  %v343 = vmul.f32 %v341, 1.442695
  %v344 = vpow.pop %v343
  %v345 = vmul.f32 %v342, 1.442695
  %v346 = vpow.pop %v345
  %v347 = vadd.f32 %v344, 1.0
  %v348 = vadd.f32 %v346, 1.0
  %v349 = vrcp.pop %v347
  %v350 = vmul.f32 1.0, %v349
  %v351 = vrcp.pop %v348
  %v352 = vmul.f32 1.0, %v351
  %v353 = vtanh.pop %v340
  %v354 = vmul.f32 %v350, 0.0
  %v355 = vmul.f32 %v350, %v353
  %357 = vrot.lane.b32.xlu0 %v355, 64
  %v358 = vpop.permute.xlu0 %357
  %v360 = vadd.f32 %v354, %v358
  %v361 = vtanh.pop %v360
  %v362 = vmul.f32 %v352, %v361
  %364 = vrot.lane.b32.xlu0 %v362, 64
  %v365 = vpop.permute.xlu0 %364
  %v367 = vsel %vm294, %v365, 0.0
  %v368 = vpack.c.bf16 %v367, %v367
  %v369 = vld [vmem:[%s4] sm:$0xf]
  %v370 = vld [vmem:[%s4 + $0x4] sm:$0xf]
  %v371 = vld [vmem:[%s4 + $0x8] sm:$0xf]
  %v372 = vld [vmem:[%s4 + $0xc] sm:$0xf]
  %v373 = vld [vmem:[%s4 + $0x10] sm:$0xf]
  %v374 = vld [vmem:[%s4 + $0x14] sm:$0xf]
  %v375 = vld [vmem:[%s4 + $0x18] sm:$0xf]
  %v376 = vld [vmem:[%s4 + $0x1c] sm:$0xf]
  %v377 = vld [vmem:[%s4 + $0x20] sm:$0xf]
  %v378 = vld [vmem:[%s4 + $0x24] sm:$0xf]
  %v379 = vld [vmem:[%s4 + $0x28] sm:$0xf]
  %v380 = vld [vmem:[%s4 + $0x2c] sm:$0xf]
  %v381 = vld [vmem:[%s5] sm:$0x1]
  %v383 = vlaneseq
  %v384 = vshrl.u32 %v383, 7
  %v385 = vsub.s32 0, %v384
  %v386 = vrot.slane %v381, %v385
  %v400 = vunpack.c.l.b16 %v369
  %v401 = vunpack.c.l.b16 %v370
  %v402 = vunpack.c.l.b16 %v371
  %v403 = vunpack.c.l.b16 %v372
  %v404 = vunpack.c.l.b16 %v373
  %v405 = vunpack.c.l.b16 %v374
  %v406 = vunpack.c.l.b16 %v375
  %v407 = vunpack.c.l.b16 %v376
  %v408 = vunpack.c.l.b16 %v377
  %v409 = vunpack.c.l.b16 %v378
  %v410 = vunpack.c.l.b16 %v379
  %v411 = vunpack.c.l.b16 %v380
  %v412 = vpack.c.b16 %v401, %v400
  %v413 = vpack.c.b16 %v403, %v402
  %v414 = vpack.c.b16 %v405, %v404
  %v415 = vpack.c.b16 %v407, %v406
  %v416 = vpack.c.b16 %v409, %v408
  %v417 = vpack.c.b16 %v411, %v410
  %vm424 = vcmask 785408
  %v426 = vsel %vm424, %v368, 0
  %428 = vmatprep.subr.bf16.mxu0 0
  %429 = vmatpush1.bf16.msra.mxu0 %v412
  %430 = vmatprep.subr.bf16.mxu0 0
  %431 = vmatpush1.bf16.msra.mxu0 %v413
  %432 = vmatprep.subr.bf16.mxu0 0
  %433 = vmatpush1.bf16.msra.mxu0 %v414
  %434 = vmatprep.subr.bf16.mxu0 0
  %435 = vmatpush1.bf16.msra.mxu0 %v415
  %436 = vmatprep.subr.bf16.mxu0 0
  %437 = vmatpush1.bf16.msra.mxu0 %v416
  %438 = vmatprep.subr.bf16.mxu0 0
  %439 = vmatpush1.bf16.msra.mxu0 %v417
  %440 = vmatprep.subr.bf16.mxu0 0
  %441 = vmatpush1.bf16.msra.mxu0 0
  %442 = vmatprep.subr.bf16.mxu0 0
  %443 = vmatpush1.bf16.msra.mxu0 0
  %444 = vmatprep.subr.bf16.mxu0 0
  %445 = vmatpush1.bf16.msra.mxu0 0
  %446 = vmatprep.subr.bf16.mxu0 0
  %447 = vmatpush1.bf16.msra.mxu0 0
  %448 = vmatprep.subr.bf16.mxu0 0
  %449 = vmatpush1.bf16.msra.mxu0 0
  %450 = vmatprep.subr.bf16.mxu0 0
  %451 = vmatpush1.bf16.msra.mxu0 0
  %452 = vmatprep.subr.bf16.mxu0 0
  %453 = vmatpush1.bf16.msra.mxu0 0
  %454 = vmatprep.subr.bf16.mxu0 0
  %455 = vmatpush1.bf16.msra.mxu0 0
  %456 = vmatprep.subr.bf16.mxu0 0
  %457 = vmatpush1.bf16.msra.mxu0 0
  %458 = vmatprep.subr.bf16.mxu0 0
  %459 = vmatpush1.bf16.msra.mxu0 0
  %460 = vmatprep.mubr.bf16.mxu0 0
  %461 = vmatmul.mubr.bf16.gmra.mrb[0].mxu0 %v426
  %v462 = vpop.f32.mrb[0].mxu0
  %v463 = vadd.f32 %v386, %v462
  %v464 = vpop.f32.mrb[0].mxu0
  %v465 = vpop.f32.mrb[0].mxu0
  %v466 = vpop.f32.mrb[0].mxu0
  %467 = vdwg.mxu0
  %v468 = vxor.u32 %v463, 2147483648
  %v469 = vmul.f32 %v468, 1.442695
  %v470 = vpow.pop %v469
  %v471 = vadd.f32 %v470, 1.0
  %v472 = vrcp.pop %v471
  %v473 = vmul.f32 1.0, %v472
  %v474 = vtanh.pop %v463
  %v475 = vmul.f32 %v473, 0.0
  %477 = vrot.lane.b32.xlu0 %v474, 64
  %v478 = vpop.permute.xlu0 %477
  %v480 = vmul.f32 %v473, %v478
  %482 = vrot.lane.b32.xlu0 %v480, 32
  %v483 = vpop.permute.xlu0 %482
  %v485 = vadd.f32 %v475, %v483
  %v486 = vtanh.pop %v485
  %488 = vrot.lane.b32.xlu0 %v486, 64
  %v489 = vpop.permute.xlu0 %488
  %v491 = vmul.f32 %v473, %v489
  %v492 = vpack.c.bf16 %v362, %v362
  %494 = vrot.lane.b32.xlu0 %v492, 64
  %v495 = vpop.permute.xlu0 %494
  %v497 = vsel %vm294, %v495, 0
  %499 = vmatprep.subr.bf16.mxu0 %v279
  %500 = vmatpush1.bf16.msra.mxu0 %v278
  %501 = vmatprep.subr.bf16.mxu0 %v281
  %502 = vmatpush1.bf16.msra.mxu0 %v280
  %503 = vmatprep.subr.bf16.mxu0 %v283
  %504 = vmatpush1.bf16.msra.mxu0 %v282
  %505 = vmatprep.subr.bf16.mxu0 %v285
  %506 = vmatpush1.bf16.msra.mxu0 %v284
  %507 = vmatprep.subr.bf16.mxu0 0
  %508 = vmatpush1.bf16.msra.mxu0 0
  %509 = vmatprep.subr.bf16.mxu0 0
  %510 = vmatpush1.bf16.msra.mxu0 0
  %511 = vmatprep.subr.bf16.mxu0 0
  %512 = vmatpush1.bf16.msra.mxu0 0
  %513 = vmatprep.subr.bf16.mxu0 0
  %514 = vmatpush1.bf16.msra.mxu0 0
  %515 = vmatprep.subr.bf16.mxu0 0
  %516 = vmatpush1.bf16.msra.mxu0 0
  %517 = vmatprep.subr.bf16.mxu0 0
  %518 = vmatpush1.bf16.msra.mxu0 0
  %519 = vmatprep.subr.bf16.mxu0 0
  %520 = vmatpush1.bf16.msra.mxu0 0
  %521 = vmatprep.subr.bf16.mxu0 0
  %522 = vmatpush1.bf16.msra.mxu0 0
  %523 = vmatprep.subr.bf16.mxu0 0
  %524 = vmatpush1.bf16.msra.mxu0 0
  %525 = vmatprep.subr.bf16.mxu0 0
  %526 = vmatpush1.bf16.msra.mxu0 0
  %527 = vmatprep.subr.bf16.mxu0 0
  %528 = vmatpush1.bf16.msra.mxu0 0
  %529 = vmatprep.subr.bf16.mxu0 0
  %530 = vmatpush1.bf16.msra.mxu0 0
  %531 = vmatprep.mubr.bf16.mxu0 0
  %532 = vmatmul.mubr.bf16.gmra.mrb[0].mxu0 %v497
  %v533 = vpop.f32.mrb[0].mxu0
  %v534 = vadd.f32 0.0, %v533
  %v535 = vpop.f32.mrb[0].mxu0
  %v536 = vadd.f32 0.0, %v535
  %v537 = vpop.f32.mrb[0].mxu0
  %v538 = vpop.f32.mrb[0].mxu0
  %539 = vdwg.mxu0
  %v540 = vadd.f32 %v212, %v534
  %v541 = vadd.f32 %v214, %v536
  %v542 = vxor.u32 %v540, 2147483648
  %v543 = vxor.u32 %v541, 2147483648
  %v544 = vmul.f32 %v542, 1.442695
  %v545 = vpow.pop %v544
  %v546 = vmul.f32 %v543, 1.442695
  %v547 = vpow.pop %v546
  %v548 = vadd.f32 %v545, 1.0
  %v549 = vadd.f32 %v547, 1.0
  %v550 = vrcp.pop %v548
  %v551 = vmul.f32 1.0, %v550
  %v552 = vrcp.pop %v549
  %v553 = vmul.f32 1.0, %v552
  %v554 = vtanh.pop %v541
  %v555 = vmul.f32 %v551, %v360
  %v556 = vmul.f32 %v551, %v554
  %558 = vrot.lane.b32.xlu0 %v556, 64
  %v559 = vpop.permute.xlu0 %558
  %v561 = vadd.f32 %v555, %v559
  %v562 = vtanh.pop %v561
  %v563 = vmul.f32 %v553, %v562
  %565 = vrot.lane.b32.xlu0 %v563, 64
  %v566 = vpop.permute.xlu0 %565
  %569 = vrot.lane.b32.xlu0 %v491, 96
  %v570 = vpop.permute.xlu0 %569
  %v572 = vsel %vm294, %v566, %v570
  %v573 = vpack.c.bf16 %v572, %v572
  %v575 = vsel %vm424, %v573, 0
  %577 = vmatprep.subr.bf16.mxu0 0
  %578 = vmatpush1.bf16.msra.mxu0 %v412
  %579 = vmatprep.subr.bf16.mxu0 0
  %580 = vmatpush1.bf16.msra.mxu0 %v413
  %581 = vmatprep.subr.bf16.mxu0 0
  %582 = vmatpush1.bf16.msra.mxu0 %v414
  %583 = vmatprep.subr.bf16.mxu0 0
  %584 = vmatpush1.bf16.msra.mxu0 %v415
  %585 = vmatprep.subr.bf16.mxu0 0
  %586 = vmatpush1.bf16.msra.mxu0 %v416
  %587 = vmatprep.subr.bf16.mxu0 0
  %588 = vmatpush1.bf16.msra.mxu0 %v417
  %589 = vmatprep.subr.bf16.mxu0 0
  %590 = vmatpush1.bf16.msra.mxu0 0
  %591 = vmatprep.subr.bf16.mxu0 0
  %592 = vmatpush1.bf16.msra.mxu0 0
  %593 = vmatprep.subr.bf16.mxu0 0
  %594 = vmatpush1.bf16.msra.mxu0 0
  %595 = vmatprep.subr.bf16.mxu0 0
  %596 = vmatpush1.bf16.msra.mxu0 0
  %597 = vmatprep.subr.bf16.mxu0 0
  %598 = vmatpush1.bf16.msra.mxu0 0
  %599 = vmatprep.subr.bf16.mxu0 0
  %600 = vmatpush1.bf16.msra.mxu0 0
  %601 = vmatprep.subr.bf16.mxu0 0
  %602 = vmatpush1.bf16.msra.mxu0 0
  %603 = vmatprep.subr.bf16.mxu0 0
  %604 = vmatpush1.bf16.msra.mxu0 0
  %605 = vmatprep.subr.bf16.mxu0 0
  %606 = vmatpush1.bf16.msra.mxu0 0
  %607 = vmatprep.subr.bf16.mxu0 0
  %608 = vmatpush1.bf16.msra.mxu0 0
  %609 = vmatprep.mubr.bf16.mxu0 0
  %610 = vmatmul.mubr.bf16.gmra.mrb[0].mxu0 %v575
  %v611 = vpop.f32.mrb[0].mxu0
  %v612 = vadd.f32 %v386, %v611
  %v613 = vpop.f32.mrb[0].mxu0
  %v614 = vpop.f32.mrb[0].mxu0
  %v615 = vpop.f32.mrb[0].mxu0
  %616 = vdwg.mxu0
  %v617 = vxor.u32 %v612, 2147483648
  %v618 = vmul.f32 %v617, 1.442695
  %v619 = vpow.pop %v618
  %v620 = vadd.f32 %v619, 1.0
  %v621 = vrcp.pop %v620
  %v622 = vmul.f32 1.0, %v621
  %v623 = vtanh.pop %v612
  %v624 = vmul.f32 %v622, %v485
  %626 = vrot.lane.b32.xlu0 %v623, 64
  %v627 = vpop.permute.xlu0 %626
  %v629 = vmul.f32 %v622, %v627
  %631 = vrot.lane.b32.xlu0 %v629, 32
  %v632 = vpop.permute.xlu0 %631
  %v634 = vadd.f32 %v624, %v632
  %v635 = vtanh.pop %v634
  %637 = vrot.lane.b32.xlu0 %v635, 64
  %v638 = vpop.permute.xlu0 %637
  %v640 = vmul.f32 %v622, %v638
  %v641 = vpack.c.bf16 %v563, %v563
  %643 = vrot.lane.b32.xlu0 %v641, 64
  %v644 = vpop.permute.xlu0 %643
  %v646 = vsel %vm294, %v644, 0
  %648 = vmatprep.subr.bf16.mxu0 %v279
  %649 = vmatpush1.bf16.msra.mxu0 %v278
  %650 = vmatprep.subr.bf16.mxu0 %v281
  %651 = vmatpush1.bf16.msra.mxu0 %v280
  %652 = vmatprep.subr.bf16.mxu0 %v283
  %653 = vmatpush1.bf16.msra.mxu0 %v282
  %654 = vmatprep.subr.bf16.mxu0 %v285
  %655 = vmatpush1.bf16.msra.mxu0 %v284
  %656 = vmatprep.subr.bf16.mxu0 0
  %657 = vmatpush1.bf16.msra.mxu0 0
  %658 = vmatprep.subr.bf16.mxu0 0
  %659 = vmatpush1.bf16.msra.mxu0 0
  %660 = vmatprep.subr.bf16.mxu0 0
  %661 = vmatpush1.bf16.msra.mxu0 0
  %662 = vmatprep.subr.bf16.mxu0 0
  %663 = vmatpush1.bf16.msra.mxu0 0
  %664 = vmatprep.subr.bf16.mxu0 0
  %665 = vmatpush1.bf16.msra.mxu0 0
  %666 = vmatprep.subr.bf16.mxu0 0
  %667 = vmatpush1.bf16.msra.mxu0 0
  %668 = vmatprep.subr.bf16.mxu0 0
  %669 = vmatpush1.bf16.msra.mxu0 0
  %670 = vmatprep.subr.bf16.mxu0 0
  %671 = vmatpush1.bf16.msra.mxu0 0
  %672 = vmatprep.subr.bf16.mxu0 0
  %673 = vmatpush1.bf16.msra.mxu0 0
  %674 = vmatprep.subr.bf16.mxu0 0
  %675 = vmatpush1.bf16.msra.mxu0 0
  %676 = vmatprep.subr.bf16.mxu0 0
  %677 = vmatpush1.bf16.msra.mxu0 0
  %678 = vmatprep.subr.bf16.mxu0 0
  %679 = vmatpush1.bf16.msra.mxu0 0
  %680 = vmatprep.mubr.bf16.mxu0 0
  %681 = vmatmul.mubr.bf16.gmra.mrb[0].mxu0 %v646
  %v682 = vpop.f32.mrb[0].mxu0
  %v683 = vadd.f32 0.0, %v682
  %v684 = vpop.f32.mrb[0].mxu0
  %v685 = vadd.f32 0.0, %v684
  %v686 = vpop.f32.mrb[0].mxu0
  %v687 = vpop.f32.mrb[0].mxu0
  %688 = vdwg.mxu0
  %v689 = vadd.f32 %v218, %v683
  %v690 = vadd.f32 %v220, %v685
  %v691 = vxor.u32 %v689, 2147483648
  %v692 = vxor.u32 %v690, 2147483648
  %v693 = vmul.f32 %v691, 1.442695
  %v694 = vpow.pop %v693
  %v695 = vmul.f32 %v692, 1.442695
  %v696 = vpow.pop %v695
  %v697 = vadd.f32 %v694, 1.0
  %v698 = vadd.f32 %v696, 1.0
  %v699 = vrcp.pop %v697
  %v700 = vmul.f32 1.0, %v699
  %v701 = vrcp.pop %v698
  %v702 = vmul.f32 1.0, %v701
  %v703 = vtanh.pop %v690
  %v704 = vmul.f32 %v700, %v561
  %v705 = vmul.f32 %v700, %v703
  %707 = vrot.lane.b32.xlu0 %v705, 64
  %v708 = vpop.permute.xlu0 %707
  %v710 = vadd.f32 %v704, %v708
  %v711 = vtanh.pop %v710
  %v712 = vmul.f32 %v702, %v711
  %714 = vrot.lane.b32.xlu0 %v712, 64
  %v715 = vpop.permute.xlu0 %714
  %718 = vrot.lane.b32.xlu0 %v640, 96
  %v719 = vpop.permute.xlu0 %718
  %v721 = vsel %vm294, %v715, %v719
  %v722 = vpack.c.bf16 %v721, %v721
  %v724 = vsel %vm424, %v722, 0
  %726 = vmatprep.subr.bf16.mxu0 0
  %727 = vmatpush1.bf16.msra.mxu0 %v412
  %728 = vmatprep.subr.bf16.mxu0 0
  %729 = vmatpush1.bf16.msra.mxu0 %v413
  %730 = vmatprep.subr.bf16.mxu0 0
  %731 = vmatpush1.bf16.msra.mxu0 %v414
  %732 = vmatprep.subr.bf16.mxu0 0
  %733 = vmatpush1.bf16.msra.mxu0 %v415
  %734 = vmatprep.subr.bf16.mxu0 0
  %735 = vmatpush1.bf16.msra.mxu0 %v416
  %736 = vmatprep.subr.bf16.mxu0 0
  %737 = vmatpush1.bf16.msra.mxu0 %v417
  %738 = vmatprep.subr.bf16.mxu0 0
  %739 = vmatpush1.bf16.msra.mxu0 0
  %740 = vmatprep.subr.bf16.mxu0 0
  %741 = vmatpush1.bf16.msra.mxu0 0
  %742 = vmatprep.subr.bf16.mxu0 0
  %743 = vmatpush1.bf16.msra.mxu0 0
  %744 = vmatprep.subr.bf16.mxu0 0
  %745 = vmatpush1.bf16.msra.mxu0 0
  %746 = vmatprep.subr.bf16.mxu0 0
  %747 = vmatpush1.bf16.msra.mxu0 0
  %748 = vmatprep.subr.bf16.mxu0 0
  %749 = vmatpush1.bf16.msra.mxu0 0
  %750 = vmatprep.subr.bf16.mxu0 0
  %751 = vmatpush1.bf16.msra.mxu0 0
  %752 = vmatprep.subr.bf16.mxu0 0
  %753 = vmatpush1.bf16.msra.mxu0 0
  %754 = vmatprep.subr.bf16.mxu0 0
  %755 = vmatpush1.bf16.msra.mxu0 0
  %756 = vmatprep.subr.bf16.mxu0 0
  %757 = vmatpush1.bf16.msra.mxu0 0
  %758 = vmatprep.mubr.bf16.mxu0 0
  %759 = vmatmul.mubr.bf16.gmra.mrb[0].mxu0 %v724
  %v760 = vpop.f32.mrb[0].mxu0
  %v761 = vadd.f32 %v386, %v760
  %v762 = vpop.f32.mrb[0].mxu0
  %v763 = vpop.f32.mrb[0].mxu0
  %v764 = vpop.f32.mrb[0].mxu0
  %765 = vdwg.mxu0
  %v766 = vxor.u32 %v761, 2147483648
  %v767 = vmul.f32 %v766, 1.442695
  %v768 = vpow.pop %v767
  %v769 = vadd.f32 %v768, 1.0
  %v770 = vrcp.pop %v769
  %v771 = vmul.f32 1.0, %v770
  %v772 = vtanh.pop %v761
  %v773 = vmul.f32 %v771, %v634
  %775 = vrot.lane.b32.xlu0 %v772, 64
  %v776 = vpop.permute.xlu0 %775
  %v778 = vmul.f32 %v771, %v776
  %780 = vrot.lane.b32.xlu0 %v778, 32
  %v781 = vpop.permute.xlu0 %780
  %v783 = vadd.f32 %v773, %v781
  %v784 = vtanh.pop %v783
  %786 = vrot.lane.b32.xlu0 %v784, 64
  %v787 = vpop.permute.xlu0 %786
  %v789 = vmul.f32 %v771, %v787
  %v790 = vpack.c.bf16 %v712, %v712
  %792 = vrot.lane.b32.xlu0 %v790, 64
  %v793 = vpop.permute.xlu0 %792
  %v795 = vsel %vm294, %v793, 0
  %797 = vmatprep.subr.bf16.mxu0 %v279
  %798 = vmatpush1.bf16.msra.mxu0 %v278
  %799 = vmatprep.subr.bf16.mxu0 %v281
  %800 = vmatpush1.bf16.msra.mxu0 %v280
  %801 = vmatprep.subr.bf16.mxu0 %v283
  %802 = vmatpush1.bf16.msra.mxu0 %v282
  %803 = vmatprep.subr.bf16.mxu0 %v285
  %804 = vmatpush1.bf16.msra.mxu0 %v284
  %805 = vmatprep.subr.bf16.mxu0 0
  %806 = vmatpush1.bf16.msra.mxu0 0
  %807 = vmatprep.subr.bf16.mxu0 0
  %808 = vmatpush1.bf16.msra.mxu0 0
  %809 = vmatprep.subr.bf16.mxu0 0
  %810 = vmatpush1.bf16.msra.mxu0 0
  %811 = vmatprep.subr.bf16.mxu0 0
  %812 = vmatpush1.bf16.msra.mxu0 0
  %813 = vmatprep.subr.bf16.mxu0 0
  %814 = vmatpush1.bf16.msra.mxu0 0
  %815 = vmatprep.subr.bf16.mxu0 0
  %816 = vmatpush1.bf16.msra.mxu0 0
  %817 = vmatprep.subr.bf16.mxu0 0
  %818 = vmatpush1.bf16.msra.mxu0 0
  %819 = vmatprep.subr.bf16.mxu0 0
  %820 = vmatpush1.bf16.msra.mxu0 0
  %821 = vmatprep.subr.bf16.mxu0 0
  %822 = vmatpush1.bf16.msra.mxu0 0
  %823 = vmatprep.subr.bf16.mxu0 0
  %824 = vmatpush1.bf16.msra.mxu0 0
  %825 = vmatprep.subr.bf16.mxu0 0
  %826 = vmatpush1.bf16.msra.mxu0 0
  %827 = vmatprep.subr.bf16.mxu0 0
  %828 = vmatpush1.bf16.msra.mxu0 0
  %829 = vmatprep.mubr.bf16.mxu0 0
  %830 = vmatmul.mubr.bf16.gmra.mrb[0].mxu0 %v795
  %v831 = vpop.f32.mrb[0].mxu0
  %v832 = vadd.f32 0.0, %v831
  %v833 = vpop.f32.mrb[0].mxu0
  %v834 = vadd.f32 0.0, %v833
  %v835 = vpop.f32.mrb[0].mxu0
  %v836 = vpop.f32.mrb[0].mxu0
  %837 = vdwg.mxu0
  %v838 = vadd.f32 %v222, %v832
  %v839 = vadd.f32 %v224, %v834
  %v840 = vxor.u32 %v838, 2147483648
  %v841 = vxor.u32 %v839, 2147483648
  %v842 = vmul.f32 %v840, 1.442695
  %v843 = vpow.pop %v842
  %v844 = vmul.f32 %v841, 1.442695
  %v845 = vpow.pop %v844
  %v846 = vadd.f32 %v843, 1.0
  %v847 = vadd.f32 %v845, 1.0
  %v848 = vrcp.pop %v846
  %v849 = vmul.f32 1.0, %v848
  %v850 = vrcp.pop %v847
  %v851 = vmul.f32 1.0, %v850
  %v852 = vtanh.pop %v839
  %v853 = vmul.f32 %v849, %v710
  %v854 = vmul.f32 %v849, %v852
  %856 = vrot.lane.b32.xlu0 %v854, 64
  %v857 = vpop.permute.xlu0 %856
  %v859 = vadd.f32 %v853, %v857
  %v860 = vtanh.pop %v859
  %v861 = vmul.f32 %v851, %v860
  %863 = vrot.lane.b32.xlu0 %v861, 64
  %v864 = vpop.permute.xlu0 %863
  %867 = vrot.lane.b32.xlu0 %v789, 96
  %v868 = vpop.permute.xlu0 %867
  %v870 = vsel %vm294, %v864, %v868
  %v871 = vpack.c.bf16 %v870, %v870
  %v873 = vsel %vm424, %v871, 0
  %875 = vmatprep.subr.bf16.mxu0 0
  %876 = vmatpush1.bf16.msra.mxu0 %v412
  %877 = vmatprep.subr.bf16.mxu0 0
  %878 = vmatpush1.bf16.msra.mxu0 %v413
  %879 = vmatprep.subr.bf16.mxu0 0
  %880 = vmatpush1.bf16.msra.mxu0 %v414
  %881 = vmatprep.subr.bf16.mxu0 0
  %882 = vmatpush1.bf16.msra.mxu0 %v415
  %883 = vmatprep.subr.bf16.mxu0 0
  %884 = vmatpush1.bf16.msra.mxu0 %v416
  %885 = vmatprep.subr.bf16.mxu0 0
  %886 = vmatpush1.bf16.msra.mxu0 %v417
  %887 = vmatprep.subr.bf16.mxu0 0
  %888 = vmatpush1.bf16.msra.mxu0 0
  %889 = vmatprep.subr.bf16.mxu0 0
  %890 = vmatpush1.bf16.msra.mxu0 0
  %891 = vmatprep.subr.bf16.mxu0 0
  %892 = vmatpush1.bf16.msra.mxu0 0
  %893 = vmatprep.subr.bf16.mxu0 0
  %894 = vmatpush1.bf16.msra.mxu0 0
  %895 = vmatprep.subr.bf16.mxu0 0
  %896 = vmatpush1.bf16.msra.mxu0 0
  %897 = vmatprep.subr.bf16.mxu0 0
  %898 = vmatpush1.bf16.msra.mxu0 0
  %899 = vmatprep.subr.bf16.mxu0 0
  %900 = vmatpush1.bf16.msra.mxu0 0
  %901 = vmatprep.subr.bf16.mxu0 0
  %902 = vmatpush1.bf16.msra.mxu0 0
  %903 = vmatprep.subr.bf16.mxu0 0
  %904 = vmatpush1.bf16.msra.mxu0 0
  %905 = vmatprep.subr.bf16.mxu0 0
  %906 = vmatpush1.bf16.msra.mxu0 0
  %907 = vmatprep.mubr.bf16.mxu0 0
  %908 = vmatmul.mubr.bf16.gmra.mrb[0].mxu0 %v873
  %v909 = vpop.f32.mrb[0].mxu0
  %v910 = vadd.f32 %v386, %v909
  %v911 = vpop.f32.mrb[0].mxu0
  %v912 = vpop.f32.mrb[0].mxu0
  %v913 = vpop.f32.mrb[0].mxu0
  %914 = vdwg.mxu0
  %v915 = vxor.u32 %v910, 2147483648
  %v916 = vmul.f32 %v915, 1.442695
  %v917 = vpow.pop %v916
  %v918 = vadd.f32 %v917, 1.0
  %v919 = vrcp.pop %v918
  %v920 = vmul.f32 1.0, %v919
  %v921 = vtanh.pop %v910
  %v922 = vmul.f32 %v920, %v783
  %924 = vrot.lane.b32.xlu0 %v921, 64
  %v925 = vpop.permute.xlu0 %924
  %v927 = vmul.f32 %v920, %v925
  %929 = vrot.lane.b32.xlu0 %v927, 32
  %v930 = vpop.permute.xlu0 %929
  %v932 = vadd.f32 %v922, %v930
  %v933 = vtanh.pop %v932
  %935 = vrot.lane.b32.xlu0 %v933, 64
  %v936 = vpop.permute.xlu0 %935
  %v938 = vmul.f32 %v920, %v936
  %v939 = vpack.c.bf16 %v861, %v861
  %941 = vrot.lane.b32.xlu0 %v939, 64
  %v942 = vpop.permute.xlu0 %941
  %v944 = vsel %vm294, %v942, 0
  %946 = vmatprep.subr.bf16.mxu0 %v279
  %947 = vmatpush1.bf16.msra.mxu0 %v278
  %948 = vmatprep.subr.bf16.mxu0 %v281
  %949 = vmatpush1.bf16.msra.mxu0 %v280
  %950 = vmatprep.subr.bf16.mxu0 %v283
  %951 = vmatpush1.bf16.msra.mxu0 %v282
  %952 = vmatprep.subr.bf16.mxu0 %v285
  %953 = vmatpush1.bf16.msra.mxu0 %v284
  %954 = vmatprep.subr.bf16.mxu0 0
  %955 = vmatpush1.bf16.msra.mxu0 0
  %956 = vmatprep.subr.bf16.mxu0 0
  %957 = vmatpush1.bf16.msra.mxu0 0
  %958 = vmatprep.subr.bf16.mxu0 0
  %959 = vmatpush1.bf16.msra.mxu0 0
  %960 = vmatprep.subr.bf16.mxu0 0
  %961 = vmatpush1.bf16.msra.mxu0 0
  %962 = vmatprep.subr.bf16.mxu0 0
  %963 = vmatpush1.bf16.msra.mxu0 0
  %964 = vmatprep.subr.bf16.mxu0 0
  %965 = vmatpush1.bf16.msra.mxu0 0
  %966 = vmatprep.subr.bf16.mxu0 0
  %967 = vmatpush1.bf16.msra.mxu0 0
  %968 = vmatprep.subr.bf16.mxu0 0
  %969 = vmatpush1.bf16.msra.mxu0 0
  %970 = vmatprep.subr.bf16.mxu0 0
  %971 = vmatpush1.bf16.msra.mxu0 0
  %972 = vmatprep.subr.bf16.mxu0 0
  %973 = vmatpush1.bf16.msra.mxu0 0
  %974 = vmatprep.subr.bf16.mxu0 0
  %975 = vmatpush1.bf16.msra.mxu0 0
  %976 = vmatprep.subr.bf16.mxu0 0
  %977 = vmatpush1.bf16.msra.mxu0 0
  %978 = vmatprep.mubr.bf16.mxu0 0
  %979 = vmatmul.mubr.bf16.gmra.mrb[0].mxu0 %v944
  %v980 = vpop.f32.mrb[0].mxu0
  %v981 = vadd.f32 0.0, %v980
  %v982 = vpop.f32.mrb[0].mxu0
  %v983 = vadd.f32 0.0, %v982
  %v984 = vpop.f32.mrb[0].mxu0
  %v985 = vpop.f32.mrb[0].mxu0
  %986 = vdwg.mxu0
  %v987 = vadd.f32 %v228, %v981
  %v988 = vadd.f32 %v230, %v983
  %v989 = vxor.u32 %v987, 2147483648
  %v990 = vxor.u32 %v988, 2147483648
  %v991 = vmul.f32 %v989, 1.442695
  %v992 = vpow.pop %v991
  %v993 = vmul.f32 %v990, 1.442695
  %v994 = vpow.pop %v993
  %v995 = vadd.f32 %v992, 1.0
  %v996 = vadd.f32 %v994, 1.0
  %v997 = vrcp.pop %v995
  %v998 = vmul.f32 1.0, %v997
  %v999 = vrcp.pop %v996
  %v1000 = vmul.f32 1.0, %v999
  %v1001 = vtanh.pop %v988
  %v1002 = vmul.f32 %v998, %v859
  %v1003 = vmul.f32 %v998, %v1001
  %1005 = vrot.lane.b32.xlu0 %v1003, 64
  %v1006 = vpop.permute.xlu0 %1005
  %v1008 = vadd.f32 %v1002, %v1006
  %v1009 = vtanh.pop %v1008
  %v1010 = vmul.f32 %v1000, %v1009
  %1012 = vrot.lane.b32.xlu0 %v1010, 64
  %v1013 = vpop.permute.xlu0 %1012
  %1016 = vrot.lane.b32.xlu0 %v938, 96
  %v1017 = vpop.permute.xlu0 %1016
  %v1019 = vsel %vm294, %v1013, %v1017
  %v1020 = vpack.c.bf16 %v1019, %v1019
  %v1022 = vsel %vm424, %v1020, 0
  %1024 = vmatprep.subr.bf16.mxu0 0
  %1025 = vmatpush1.bf16.msra.mxu0 %v412
  %1026 = vmatprep.subr.bf16.mxu0 0
  %1027 = vmatpush1.bf16.msra.mxu0 %v413
  %1028 = vmatprep.subr.bf16.mxu0 0
  %1029 = vmatpush1.bf16.msra.mxu0 %v414
  %1030 = vmatprep.subr.bf16.mxu0 0
  %1031 = vmatpush1.bf16.msra.mxu0 %v415
  %1032 = vmatprep.subr.bf16.mxu0 0
  %1033 = vmatpush1.bf16.msra.mxu0 %v416
  %1034 = vmatprep.subr.bf16.mxu0 0
  %1035 = vmatpush1.bf16.msra.mxu0 %v417
  %1036 = vmatprep.subr.bf16.mxu0 0
  %1037 = vmatpush1.bf16.msra.mxu0 0
  %1038 = vmatprep.subr.bf16.mxu0 0
  %1039 = vmatpush1.bf16.msra.mxu0 0
  %1040 = vmatprep.subr.bf16.mxu0 0
  %1041 = vmatpush1.bf16.msra.mxu0 0
  %1042 = vmatprep.subr.bf16.mxu0 0
  %1043 = vmatpush1.bf16.msra.mxu0 0
  %1044 = vmatprep.subr.bf16.mxu0 0
  %1045 = vmatpush1.bf16.msra.mxu0 0
  %1046 = vmatprep.subr.bf16.mxu0 0
  %1047 = vmatpush1.bf16.msra.mxu0 0
  %1048 = vmatprep.subr.bf16.mxu0 0
  %1049 = vmatpush1.bf16.msra.mxu0 0
  %1050 = vmatprep.subr.bf16.mxu0 0
  %1051 = vmatpush1.bf16.msra.mxu0 0
  %1052 = vmatprep.subr.bf16.mxu0 0
  %1053 = vmatpush1.bf16.msra.mxu0 0
  %1054 = vmatprep.subr.bf16.mxu0 0
  %1055 = vmatpush1.bf16.msra.mxu0 0
  %1056 = vmatprep.mubr.bf16.mxu0 0
  %1057 = vmatmul.mubr.bf16.gmra.mrb[0].mxu0 %v1022
  %v1058 = vpop.f32.mrb[0].mxu0
  %v1059 = vadd.f32 %v386, %v1058
  %v1060 = vpop.f32.mrb[0].mxu0
  %v1061 = vpop.f32.mrb[0].mxu0
  %v1062 = vpop.f32.mrb[0].mxu0
  %1063 = vdwg.mxu0
  %v1064 = vxor.u32 %v1059, 2147483648
  %v1065 = vmul.f32 %v1064, 1.442695
  %v1066 = vpow.pop %v1065
  %v1067 = vadd.f32 %v1066, 1.0
  %v1068 = vrcp.pop %v1067
  %v1069 = vmul.f32 1.0, %v1068
  %v1070 = vtanh.pop %v1059
  %v1071 = vmul.f32 %v1069, %v932
  %1073 = vrot.lane.b32.xlu0 %v1070, 64
  %v1074 = vpop.permute.xlu0 %1073
  %v1076 = vmul.f32 %v1069, %v1074
  %1078 = vrot.lane.b32.xlu0 %v1076, 32
  %v1079 = vpop.permute.xlu0 %1078
  %v1081 = vadd.f32 %v1071, %v1079
  %v1082 = vtanh.pop %v1081
  %1084 = vrot.lane.b32.xlu0 %v1082, 64
  %v1085 = vpop.permute.xlu0 %1084
  %v1087 = vmul.f32 %v1069, %v1085
  %v1088 = vpack.c.bf16 %v1010, %v1010
  %1090 = vrot.lane.b32.xlu0 %v1088, 64
  %v1091 = vpop.permute.xlu0 %1090
  %v1093 = vsel %vm294, %v1091, 0
  %1095 = vmatprep.subr.bf16.mxu0 %v279
  %1096 = vmatpush1.bf16.msra.mxu0 %v278
  %1097 = vmatprep.subr.bf16.mxu0 %v281
  %1098 = vmatpush1.bf16.msra.mxu0 %v280
  %1099 = vmatprep.subr.bf16.mxu0 %v283
  %1100 = vmatpush1.bf16.msra.mxu0 %v282
  %1101 = vmatprep.subr.bf16.mxu0 %v285
  %1102 = vmatpush1.bf16.msra.mxu0 %v284
  %1103 = vmatprep.subr.bf16.mxu0 0
  %1104 = vmatpush1.bf16.msra.mxu0 0
  %1105 = vmatprep.subr.bf16.mxu0 0
  %1106 = vmatpush1.bf16.msra.mxu0 0
  %1107 = vmatprep.subr.bf16.mxu0 0
  %1108 = vmatpush1.bf16.msra.mxu0 0
  %1109 = vmatprep.subr.bf16.mxu0 0
  %1110 = vmatpush1.bf16.msra.mxu0 0
  %1111 = vmatprep.subr.bf16.mxu0 0
  %1112 = vmatpush1.bf16.msra.mxu0 0
  %1113 = vmatprep.subr.bf16.mxu0 0
  %1114 = vmatpush1.bf16.msra.mxu0 0
  %1115 = vmatprep.subr.bf16.mxu0 0
  %1116 = vmatpush1.bf16.msra.mxu0 0
  %1117 = vmatprep.subr.bf16.mxu0 0
  %1118 = vmatpush1.bf16.msra.mxu0 0
  %1119 = vmatprep.subr.bf16.mxu0 0
  %1120 = vmatpush1.bf16.msra.mxu0 0
  %1121 = vmatprep.subr.bf16.mxu0 0
  %1122 = vmatpush1.bf16.msra.mxu0 0
  %1123 = vmatprep.subr.bf16.mxu0 0
  %1124 = vmatpush1.bf16.msra.mxu0 0
  %1125 = vmatprep.subr.bf16.mxu0 0
  %1126 = vmatpush1.bf16.msra.mxu0 0
  %1127 = vmatprep.mubr.bf16.mxu0 0
  %1128 = vmatmul.mubr.bf16.gmra.mrb[0].mxu0 %v1093
  %v1129 = vpop.f32.mrb[0].mxu0
  %v1130 = vadd.f32 0.0, %v1129
  %v1131 = vpop.f32.mrb[0].mxu0
  %v1132 = vadd.f32 0.0, %v1131
  %v1133 = vpop.f32.mrb[0].mxu0
  %v1134 = vpop.f32.mrb[0].mxu0
  %1135 = vdwg.mxu0
  %v1136 = vadd.f32 %v232, %v1130
  %v1137 = vadd.f32 %v234, %v1132
  %v1138 = vxor.u32 %v1136, 2147483648
  %v1139 = vxor.u32 %v1137, 2147483648
  %v1140 = vmul.f32 %v1138, 1.442695
  %v1141 = vpow.pop %v1140
  %v1142 = vmul.f32 %v1139, 1.442695
  %v1143 = vpow.pop %v1142
  %v1144 = vadd.f32 %v1141, 1.0
  %v1145 = vadd.f32 %v1143, 1.0
  %v1146 = vrcp.pop %v1144
  %v1147 = vmul.f32 1.0, %v1146
  %v1148 = vrcp.pop %v1145
  %v1149 = vmul.f32 1.0, %v1148
  %v1150 = vtanh.pop %v1137
  %v1151 = vmul.f32 %v1147, %v1008
  %v1152 = vmul.f32 %v1147, %v1150
  %1154 = vrot.lane.b32.xlu0 %v1152, 64
  %v1155 = vpop.permute.xlu0 %1154
  %v1157 = vadd.f32 %v1151, %v1155
  %v1158 = vtanh.pop %v1157
  %v1159 = vmul.f32 %v1149, %v1158
  %1161 = vrot.lane.b32.xlu0 %v1159, 64
  %v1162 = vpop.permute.xlu0 %1161
  %1165 = vrot.lane.b32.xlu0 %v1087, 96
  %v1166 = vpop.permute.xlu0 %1165
  %v1168 = vsel %vm294, %v1162, %v1166
  %v1169 = vpack.c.bf16 %v1168, %v1168
  %v1171 = vsel %vm424, %v1169, 0
  %1173 = vmatprep.subr.bf16.mxu0 0
  %1174 = vmatpush1.bf16.msra.mxu0 %v412
  %1175 = vmatprep.subr.bf16.mxu0 0
  %1176 = vmatpush1.bf16.msra.mxu0 %v413
  %1177 = vmatprep.subr.bf16.mxu0 0
  %1178 = vmatpush1.bf16.msra.mxu0 %v414
  %1179 = vmatprep.subr.bf16.mxu0 0
  %1180 = vmatpush1.bf16.msra.mxu0 %v415
  %1181 = vmatprep.subr.bf16.mxu0 0
  %1182 = vmatpush1.bf16.msra.mxu0 %v416
  %1183 = vmatprep.subr.bf16.mxu0 0
  %1184 = vmatpush1.bf16.msra.mxu0 %v417
  %1185 = vmatprep.subr.bf16.mxu0 0
  %1186 = vmatpush1.bf16.msra.mxu0 0
  %1187 = vmatprep.subr.bf16.mxu0 0
  %1188 = vmatpush1.bf16.msra.mxu0 0
  %1189 = vmatprep.subr.bf16.mxu0 0
  %1190 = vmatpush1.bf16.msra.mxu0 0
  %1191 = vmatprep.subr.bf16.mxu0 0
  %1192 = vmatpush1.bf16.msra.mxu0 0
  %1193 = vmatprep.subr.bf16.mxu0 0
  %1194 = vmatpush1.bf16.msra.mxu0 0
  %1195 = vmatprep.subr.bf16.mxu0 0
  %1196 = vmatpush1.bf16.msra.mxu0 0
  %1197 = vmatprep.subr.bf16.mxu0 0
  %1198 = vmatpush1.bf16.msra.mxu0 0
  %1199 = vmatprep.subr.bf16.mxu0 0
  %1200 = vmatpush1.bf16.msra.mxu0 0
  %1201 = vmatprep.subr.bf16.mxu0 0
  %1202 = vmatpush1.bf16.msra.mxu0 0
  %1203 = vmatprep.subr.bf16.mxu0 0
  %1204 = vmatpush1.bf16.msra.mxu0 0
  %1205 = vmatprep.mubr.bf16.mxu0 0
  %1206 = vmatmul.mubr.bf16.gmra.mrb[0].mxu0 %v1171
  %v1207 = vpop.f32.mrb[0].mxu0
  %v1208 = vadd.f32 %v386, %v1207
  %v1209 = vpop.f32.mrb[0].mxu0
  %v1210 = vpop.f32.mrb[0].mxu0
  %v1211 = vpop.f32.mrb[0].mxu0
  %1212 = vdwg.mxu0
  %v1213 = vxor.u32 %v1208, 2147483648
  %v1214 = vmul.f32 %v1213, 1.442695
  %v1215 = vpow.pop %v1214
  %v1216 = vadd.f32 %v1215, 1.0
  %v1217 = vrcp.pop %v1216
  %v1218 = vmul.f32 1.0, %v1217
  %v1219 = vtanh.pop %v1208
  %v1220 = vmul.f32 %v1218, %v1081
  %1222 = vrot.lane.b32.xlu0 %v1219, 64
  %v1223 = vpop.permute.xlu0 %1222
  %v1225 = vmul.f32 %v1218, %v1223
  %1227 = vrot.lane.b32.xlu0 %v1225, 32
  %v1228 = vpop.permute.xlu0 %1227
  %v1230 = vadd.f32 %v1220, %v1228
  %v1231 = vtanh.pop %v1230
  %1233 = vrot.lane.b32.xlu0 %v1231, 64
  %v1234 = vpop.permute.xlu0 %1233
  %v1236 = vmul.f32 %v1218, %v1234
  %v1237 = vpack.c.bf16 %v1159, %v1159
  %1239 = vrot.lane.b32.xlu0 %v1237, 64
  %v1240 = vpop.permute.xlu0 %1239
  %v1242 = vsel %vm294, %v1240, 0
  %1244 = vmatprep.subr.bf16.mxu0 %v279
  %1245 = vmatpush1.bf16.msra.mxu0 %v278
  %1246 = vmatprep.subr.bf16.mxu0 %v281
  %1247 = vmatpush1.bf16.msra.mxu0 %v280
  %1248 = vmatprep.subr.bf16.mxu0 %v283
  %1249 = vmatpush1.bf16.msra.mxu0 %v282
  %1250 = vmatprep.subr.bf16.mxu0 %v285
  %1251 = vmatpush1.bf16.msra.mxu0 %v284
  %1252 = vmatprep.subr.bf16.mxu0 0
  %1253 = vmatpush1.bf16.msra.mxu0 0
  %1254 = vmatprep.subr.bf16.mxu0 0
  %1255 = vmatpush1.bf16.msra.mxu0 0
  %1256 = vmatprep.subr.bf16.mxu0 0
  %1257 = vmatpush1.bf16.msra.mxu0 0
  %1258 = vmatprep.subr.bf16.mxu0 0
  %1259 = vmatpush1.bf16.msra.mxu0 0
  %1260 = vmatprep.subr.bf16.mxu0 0
  %1261 = vmatpush1.bf16.msra.mxu0 0
  %1262 = vmatprep.subr.bf16.mxu0 0
  %1263 = vmatpush1.bf16.msra.mxu0 0
  %1264 = vmatprep.subr.bf16.mxu0 0
  %1265 = vmatpush1.bf16.msra.mxu0 0
  %1266 = vmatprep.subr.bf16.mxu0 0
  %1267 = vmatpush1.bf16.msra.mxu0 0
  %1268 = vmatprep.subr.bf16.mxu0 0
  %1269 = vmatpush1.bf16.msra.mxu0 0
  %1270 = vmatprep.subr.bf16.mxu0 0
  %1271 = vmatpush1.bf16.msra.mxu0 0
  %1272 = vmatprep.subr.bf16.mxu0 0
  %1273 = vmatpush1.bf16.msra.mxu0 0
  %1274 = vmatprep.subr.bf16.mxu0 0
  %1275 = vmatpush1.bf16.msra.mxu0 0
  %1276 = vmatprep.mubr.bf16.mxu0 0
  %1277 = vmatmul.mubr.bf16.gmra.mrb[0].mxu0 %v1242
  %v1278 = vpop.f32.mrb[0].mxu0
  %v1279 = vadd.f32 0.0, %v1278
  %v1280 = vpop.f32.mrb[0].mxu0
  %v1281 = vadd.f32 0.0, %v1280
  %v1282 = vpop.f32.mrb[0].mxu0
  %v1283 = vpop.f32.mrb[0].mxu0
  %1284 = vdwg.mxu0
  %v1285 = vadd.f32 %v238, %v1279
  %v1286 = vadd.f32 %v240, %v1281
  %v1287 = vxor.u32 %v1285, 2147483648
  %v1288 = vxor.u32 %v1286, 2147483648
  %v1289 = vmul.f32 %v1287, 1.442695
  %v1290 = vpow.pop %v1289
  %v1291 = vmul.f32 %v1288, 1.442695
  %v1292 = vpow.pop %v1291
  %v1293 = vadd.f32 %v1290, 1.0
  %v1294 = vadd.f32 %v1292, 1.0
  %v1295 = vrcp.pop %v1293
  %v1296 = vmul.f32 1.0, %v1295
  %v1297 = vrcp.pop %v1294
  %v1298 = vmul.f32 1.0, %v1297
  %v1299 = vtanh.pop %v1286
  %v1300 = vmul.f32 %v1296, %v1157
  %v1301 = vmul.f32 %v1296, %v1299
  %1303 = vrot.lane.b32.xlu0 %v1301, 64
  %v1304 = vpop.permute.xlu0 %1303
  %v1306 = vadd.f32 %v1300, %v1304
  %v1307 = vtanh.pop %v1306
  %v1308 = vmul.f32 %v1298, %v1307
  %1310 = vrot.lane.b32.xlu0 %v1308, 64
  %v1311 = vpop.permute.xlu0 %1310
  %1314 = vrot.lane.b32.xlu0 %v1236, 96
  %v1315 = vpop.permute.xlu0 %1314
  %v1317 = vsel %vm294, %v1311, %v1315
  %v1318 = vpack.c.bf16 %v1317, %v1317
  %v1320 = vsel %vm424, %v1318, 0
  %1322 = vmatprep.subr.bf16.mxu0 0
  %1323 = vmatpush1.bf16.msra.mxu0 %v412
  %1324 = vmatprep.subr.bf16.mxu0 0
  %1325 = vmatpush1.bf16.msra.mxu0 %v413
  %1326 = vmatprep.subr.bf16.mxu0 0
  %1327 = vmatpush1.bf16.msra.mxu0 %v414
  %1328 = vmatprep.subr.bf16.mxu0 0
  %1329 = vmatpush1.bf16.msra.mxu0 %v415
  %1330 = vmatprep.subr.bf16.mxu0 0
  %1331 = vmatpush1.bf16.msra.mxu0 %v416
  %1332 = vmatprep.subr.bf16.mxu0 0
  %1333 = vmatpush1.bf16.msra.mxu0 %v417
  %1334 = vmatprep.subr.bf16.mxu0 0
  %1335 = vmatpush1.bf16.msra.mxu0 0
  %1336 = vmatprep.subr.bf16.mxu0 0
  %1337 = vmatpush1.bf16.msra.mxu0 0
  %1338 = vmatprep.subr.bf16.mxu0 0
  %1339 = vmatpush1.bf16.msra.mxu0 0
  %1340 = vmatprep.subr.bf16.mxu0 0
  %1341 = vmatpush1.bf16.msra.mxu0 0
  %1342 = vmatprep.subr.bf16.mxu0 0
  %1343 = vmatpush1.bf16.msra.mxu0 0
  %1344 = vmatprep.subr.bf16.mxu0 0
  %1345 = vmatpush1.bf16.msra.mxu0 0
  %1346 = vmatprep.subr.bf16.mxu0 0
  %1347 = vmatpush1.bf16.msra.mxu0 0
  %1348 = vmatprep.subr.bf16.mxu0 0
  %1349 = vmatpush1.bf16.msra.mxu0 0
  %1350 = vmatprep.subr.bf16.mxu0 0
  %1351 = vmatpush1.bf16.msra.mxu0 0
  %1352 = vmatprep.subr.bf16.mxu0 0
  %1353 = vmatpush1.bf16.msra.mxu0 0
  %1354 = vmatprep.mubr.bf16.mxu0 0
  %1355 = vmatmul.mubr.bf16.gmra.mrb[0].mxu0 %v1320
  %v1356 = vpop.f32.mrb[0].mxu0
  %v1357 = vadd.f32 %v386, %v1356
  %v1358 = vpop.f32.mrb[0].mxu0
  %v1359 = vpop.f32.mrb[0].mxu0
  %v1360 = vpop.f32.mrb[0].mxu0
  %1361 = vdwg.mxu0
  %v1362 = vxor.u32 %v1357, 2147483648
  %v1363 = vmul.f32 %v1362, 1.442695
  %v1364 = vpow.pop %v1363
  %v1365 = vadd.f32 %v1364, 1.0
  %v1366 = vrcp.pop %v1365
  %v1367 = vmul.f32 1.0, %v1366
  %v1368 = vtanh.pop %v1357
  %v1369 = vmul.f32 %v1367, %v1230
  %1371 = vrot.lane.b32.xlu0 %v1368, 64
  %v1372 = vpop.permute.xlu0 %1371
  %v1374 = vmul.f32 %v1367, %v1372
  %1376 = vrot.lane.b32.xlu0 %v1374, 32
  %v1377 = vpop.permute.xlu0 %1376
  %v1379 = vadd.f32 %v1369, %v1377
  %v1380 = vtanh.pop %v1379
  %1382 = vrot.lane.b32.xlu0 %v1380, 64
  %v1383 = vpop.permute.xlu0 %1382
  %v1385 = vmul.f32 %v1367, %v1383
  %v1386 = vpack.c.bf16 %v1308, %v1308
  %1388 = vrot.lane.b32.xlu0 %v1386, 64
  %v1389 = vpop.permute.xlu0 %1388
  %v1391 = vsel %vm294, %v1389, 0
  %1393 = vmatprep.subr.bf16.mxu0 %v279
  %1394 = vmatpush1.bf16.msra.mxu0 %v278
  %1395 = vmatprep.subr.bf16.mxu0 %v281
  %1396 = vmatpush1.bf16.msra.mxu0 %v280
  %1397 = vmatprep.subr.bf16.mxu0 %v283
  %1398 = vmatpush1.bf16.msra.mxu0 %v282
  %1399 = vmatprep.subr.bf16.mxu0 %v285
  %1400 = vmatpush1.bf16.msra.mxu0 %v284
  %1401 = vmatprep.subr.bf16.mxu0 0
  %1402 = vmatpush1.bf16.msra.mxu0 0
  %1403 = vmatprep.subr.bf16.mxu0 0
  %1404 = vmatpush1.bf16.msra.mxu0 0
  %1405 = vmatprep.subr.bf16.mxu0 0
  %1406 = vmatpush1.bf16.msra.mxu0 0
  %1407 = vmatprep.subr.bf16.mxu0 0
  %1408 = vmatpush1.bf16.msra.mxu0 0
  %1409 = vmatprep.subr.bf16.mxu0 0
  %1410 = vmatpush1.bf16.msra.mxu0 0
  %1411 = vmatprep.subr.bf16.mxu0 0
  %1412 = vmatpush1.bf16.msra.mxu0 0
  %1413 = vmatprep.subr.bf16.mxu0 0
  %1414 = vmatpush1.bf16.msra.mxu0 0
  %1415 = vmatprep.subr.bf16.mxu0 0
  %1416 = vmatpush1.bf16.msra.mxu0 0
  %1417 = vmatprep.subr.bf16.mxu0 0
  %1418 = vmatpush1.bf16.msra.mxu0 0
  %1419 = vmatprep.subr.bf16.mxu0 0
  %1420 = vmatpush1.bf16.msra.mxu0 0
  %1421 = vmatprep.subr.bf16.mxu0 0
  %1422 = vmatpush1.bf16.msra.mxu0 0
  %1423 = vmatprep.subr.bf16.mxu0 0
  %1424 = vmatpush1.bf16.msra.mxu0 0
  %1425 = vmatprep.mubr.bf16.mxu0 0
  %1426 = vmatmul.mubr.bf16.gmra.mrb[0].mxu0 %v1391
  %v1427 = vpop.f32.mrb[0].mxu0
  %v1428 = vadd.f32 0.0, %v1427
  %v1429 = vpop.f32.mrb[0].mxu0
  %v1430 = vadd.f32 0.0, %v1429
  %v1431 = vpop.f32.mrb[0].mxu0
  %v1432 = vpop.f32.mrb[0].mxu0
  %1433 = vdwg.mxu0
  %v1434 = vadd.f32 %v242, %v1428
  %v1435 = vadd.f32 %v244, %v1430
  %v1436 = vxor.u32 %v1434, 2147483648
  %v1437 = vxor.u32 %v1435, 2147483648
  %v1438 = vmul.f32 %v1436, 1.442695
  %v1439 = vpow.pop %v1438
  %v1440 = vmul.f32 %v1437, 1.442695
  %v1441 = vpow.pop %v1440
  %v1442 = vadd.f32 %v1439, 1.0
  %v1443 = vadd.f32 %v1441, 1.0
  %v1444 = vrcp.pop %v1442
  %v1445 = vmul.f32 1.0, %v1444
  %v1446 = vrcp.pop %v1443
  %v1447 = vmul.f32 1.0, %v1446
  %v1448 = vtanh.pop %v1435
  %v1449 = vmul.f32 %v1445, %v1306
  %v1450 = vmul.f32 %v1445, %v1448
  %1452 = vrot.lane.b32.xlu0 %v1450, 64
  %v1453 = vpop.permute.xlu0 %1452
  %v1455 = vadd.f32 %v1449, %v1453
  %v1456 = vtanh.pop %v1455
  %v1457 = vmul.f32 %v1447, %v1456
  %1459 = vrot.lane.b32.xlu0 %v1457, 64
  %v1460 = vpop.permute.xlu0 %1459
  %1463 = vrot.lane.b32.xlu0 %v1385, 96
  %v1464 = vpop.permute.xlu0 %1463
  %v1466 = vsel %vm294, %v1460, %v1464
  %v1467 = vpack.c.bf16 %v1466, %v1466
  %v1469 = vsel %vm424, %v1467, 0
  %1471 = vmatprep.subr.bf16.mxu0 0
  %1472 = vmatpush1.bf16.msra.mxu0 %v412
  %1473 = vmatprep.subr.bf16.mxu0 0
  %1474 = vmatpush1.bf16.msra.mxu0 %v413
  %1475 = vmatprep.subr.bf16.mxu0 0
  %1476 = vmatpush1.bf16.msra.mxu0 %v414
  %1477 = vmatprep.subr.bf16.mxu0 0
  %1478 = vmatpush1.bf16.msra.mxu0 %v415
  %1479 = vmatprep.subr.bf16.mxu0 0
  %1480 = vmatpush1.bf16.msra.mxu0 %v416
  %1481 = vmatprep.subr.bf16.mxu0 0
  %1482 = vmatpush1.bf16.msra.mxu0 %v417
  %1483 = vmatprep.subr.bf16.mxu0 0
  %1484 = vmatpush1.bf16.msra.mxu0 0
  %1485 = vmatprep.subr.bf16.mxu0 0
  %1486 = vmatpush1.bf16.msra.mxu0 0
  %1487 = vmatprep.subr.bf16.mxu0 0
  %1488 = vmatpush1.bf16.msra.mxu0 0
  %1489 = vmatprep.subr.bf16.mxu0 0
  %1490 = vmatpush1.bf16.msra.mxu0 0
  %1491 = vmatprep.subr.bf16.mxu0 0
  %1492 = vmatpush1.bf16.msra.mxu0 0
  %1493 = vmatprep.subr.bf16.mxu0 0
  %1494 = vmatpush1.bf16.msra.mxu0 0
  %1495 = vmatprep.subr.bf16.mxu0 0
  %1496 = vmatpush1.bf16.msra.mxu0 0
  %1497 = vmatprep.subr.bf16.mxu0 0
  %1498 = vmatpush1.bf16.msra.mxu0 0
  %1499 = vmatprep.subr.bf16.mxu0 0
  %1500 = vmatpush1.bf16.msra.mxu0 0
  %1501 = vmatprep.subr.bf16.mxu0 0
  %1502 = vmatpush1.bf16.msra.mxu0 0
  %1503 = vmatprep.mubr.bf16.mxu0 0
  %1504 = vmatmul.mubr.bf16.gmra.mrb[0].mxu0 %v1469
  %v1505 = vpop.f32.mrb[0].mxu0
  %v1506 = vadd.f32 %v386, %v1505
  %v1507 = vpop.f32.mrb[0].mxu0
  %v1508 = vpop.f32.mrb[0].mxu0
  %v1509 = vpop.f32.mrb[0].mxu0
  %1510 = vdwg.mxu0
  %v1511 = vxor.u32 %v1506, 2147483648
  %v1512 = vmul.f32 %v1511, 1.442695
  %v1513 = vpow.pop %v1512
  %v1514 = vadd.f32 %v1513, 1.0
  %v1515 = vrcp.pop %v1514
  %v1516 = vmul.f32 1.0, %v1515
  %v1517 = vtanh.pop %v1506
  %v1518 = vmul.f32 %v1516, %v1379
  %1520 = vrot.lane.b32.xlu0 %v1517, 64
  %v1521 = vpop.permute.xlu0 %1520
  %v1523 = vmul.f32 %v1516, %v1521
  %1525 = vrot.lane.b32.xlu0 %v1523, 32
  %v1526 = vpop.permute.xlu0 %1525
  %v1528 = vadd.f32 %v1518, %v1526
  %v1529 = vtanh.pop %v1528
  %1531 = vrot.lane.b32.xlu0 %v1529, 64
  %v1532 = vpop.permute.xlu0 %1531
  %v1534 = vmul.f32 %v1516, %v1532
  %v1535 = vpack.c.bf16 %v1534, %v1534
  %v1536 = vld [vmem:[%s11] sm:$0xf]
  %v1537 = vld [vmem:[%s11 + $0x4] sm:$0xf]
  %v1538 = vld [vmem:[%s11 + $0x8] sm:$0xf]
  %v1539 = vld [vmem:[%s11 + $0xc] sm:$0xf]
  %v1540 = vld [vmem:[%s12] sm:$0x1]
  %v1542 = vlaneseq
  %v1543 = vshrl.u32 %v1542, 7
  %v1544 = vsub.s32 0, %v1543
  %v1545 = vrot.slane %v1540, %v1544
  %1548 = vrot.lane.b32.xlu0 %v1535, 32
  %v1549 = vpop.permute.xlu0 %1548
  %v1554 = vunpack.c.l.b16 %v1536
  %v1555 = vunpack.c.l.b16 %v1537
  %v1556 = vunpack.c.l.b16 %v1538
  %v1557 = vunpack.c.l.b16 %v1539
  %v1558 = vpack.c.b16 %v1555, %v1554
  %v1559 = vpack.c.b16 %v1557, %v1556
  %vm1562 = vcmask 261120
  %v1564 = vsel %vm1562, %v1549, 0
  %1566 = vmatprep.subr.bf16.mxu0 0
  %1567 = vmatpush1.bf16.msra.mxu0 %v1558
  %1568 = vmatprep.subr.bf16.mxu0 0
  %1569 = vmatpush1.bf16.msra.mxu0 %v1559
  %1570 = vmatprep.subr.bf16.mxu0 0
  %1571 = vmatpush1.bf16.msra.mxu0 0
  %1572 = vmatprep.subr.bf16.mxu0 0
  %1573 = vmatpush1.bf16.msra.mxu0 0
  %1574 = vmatprep.subr.bf16.mxu0 0
  %1575 = vmatpush1.bf16.msra.mxu0 0
  %1576 = vmatprep.subr.bf16.mxu0 0
  %1577 = vmatpush1.bf16.msra.mxu0 0
  %1578 = vmatprep.subr.bf16.mxu0 0
  %1579 = vmatpush1.bf16.msra.mxu0 0
  %1580 = vmatprep.subr.bf16.mxu0 0
  %1581 = vmatpush1.bf16.msra.mxu0 0
  %1582 = vmatprep.subr.bf16.mxu0 0
  %1583 = vmatpush1.bf16.msra.mxu0 0
  %1584 = vmatprep.subr.bf16.mxu0 0
  %1585 = vmatpush1.bf16.msra.mxu0 0
  %1586 = vmatprep.subr.bf16.mxu0 0
  %1587 = vmatpush1.bf16.msra.mxu0 0
  %1588 = vmatprep.subr.bf16.mxu0 0
  %1589 = vmatpush1.bf16.msra.mxu0 0
  %1590 = vmatprep.subr.bf16.mxu0 0
  %1591 = vmatpush1.bf16.msra.mxu0 0
  %1592 = vmatprep.subr.bf16.mxu0 0
  %1593 = vmatpush1.bf16.msra.mxu0 0
  %1594 = vmatprep.subr.bf16.mxu0 0
  %1595 = vmatpush1.bf16.msra.mxu0 0
  %1596 = vmatprep.subr.bf16.mxu0 0
  %1597 = vmatpush1.bf16.msra.mxu0 0
  %1598 = vmatprep.mubr.bf16.mxu0 0
  %1599 = vmatmul.mubr.bf16.gmra.mrb[0].mxu0 %v1564
  %v1600 = vpop.f32.mrb[0].mxu0
  %v1601 = vadd.f32 %v1545, %v1600
  %v1602 = vpop.f32.mrb[0].mxu0
  %v1603 = vpop.f32.mrb[0].mxu0
  %v1604 = vpop.f32.mrb[0].mxu0
  %1605 = vdwg.mxu0
  %1606 = vst [vmem:[%s16] sm:$0xff] %v1601
  %v1607 = vld [vmem:[%s6] sm:$0xf]
  %v1608 = vld [vmem:[%s6 + $0x4] sm:$0xf]
  %v1609 = vld [vmem:[%s6 + $0x8] sm:$0xf]
  %v1610 = vld [vmem:[%s6 + $0xc] sm:$0xf]
  %v1611 = vld [vmem:[%s8] sm:$0x1]
  %v1613 = vlaneseq
  %v1614 = vshrl.u32 %v1613, 7
  %v1615 = vsub.s32 0, %v1614
  %v1616 = vrot.slane %v1611, %v1615
  %v1622 = vunpack.c.l.b16 %v1607
  %v1623 = vunpack.c.l.b16 %v1608
  %v1624 = vunpack.c.l.b16 %v1609
  %v1625 = vunpack.c.l.b16 %v1610
  %v1626 = vpack.c.b16 %v1623, %v1622
  %v1627 = vpack.c.b16 %v1625, %v1624
  %1630 = vmatprep.subr.bf16.mxu0 0
  %1631 = vmatpush1.bf16.msra.mxu0 %v1626
  %1632 = vmatprep.subr.bf16.mxu0 0
  %1633 = vmatpush1.bf16.msra.mxu0 %v1627
  %1634 = vmatprep.subr.bf16.mxu0 0
  %1635 = vmatpush1.bf16.msra.mxu0 0
  %1636 = vmatprep.subr.bf16.mxu0 0
  %1637 = vmatpush1.bf16.msra.mxu0 0
  %1638 = vmatprep.subr.bf16.mxu0 0
  %1639 = vmatpush1.bf16.msra.mxu0 0
  %1640 = vmatprep.subr.bf16.mxu0 0
  %1641 = vmatpush1.bf16.msra.mxu0 0
  %1642 = vmatprep.subr.bf16.mxu0 0
  %1643 = vmatpush1.bf16.msra.mxu0 0
  %1644 = vmatprep.subr.bf16.mxu0 0
  %1645 = vmatpush1.bf16.msra.mxu0 0
  %1646 = vmatprep.subr.bf16.mxu0 0
  %1647 = vmatpush1.bf16.msra.mxu0 0
  %1648 = vmatprep.subr.bf16.mxu0 0
  %1649 = vmatpush1.bf16.msra.mxu0 0
  %1650 = vmatprep.subr.bf16.mxu0 0
  %1651 = vmatpush1.bf16.msra.mxu0 0
  %1652 = vmatprep.subr.bf16.mxu0 0
  %1653 = vmatpush1.bf16.msra.mxu0 0
  %1654 = vmatprep.subr.bf16.mxu0 0
  %1655 = vmatpush1.bf16.msra.mxu0 0
  %1656 = vmatprep.subr.bf16.mxu0 0
  %1657 = vmatpush1.bf16.msra.mxu0 0
  %1658 = vmatprep.subr.bf16.mxu0 0
  %1659 = vmatpush1.bf16.msra.mxu0 0
  %1660 = vmatprep.subr.bf16.mxu0 0
  %1661 = vmatpush1.bf16.msra.mxu0 0
  %1662 = vmatprep.mubr.bf16.mxu0 0
  %1663 = vmatmul.mubr.bf16.gmra.mrb[0].mxu0 %v1564
  %v1664 = vpop.f32.mrb[0].mxu0
  %v1665 = vadd.f32 %v1616, %v1664
  %v1666 = vpop.f32.mrb[0].mxu0
  %v1667 = vpop.f32.mrb[0].mxu0
  %v1668 = vpop.f32.mrb[0].mxu0
  %1669 = vdwg.mxu0
  %v1670 = vld [vmem:[%s7] sm:$0xf]
  %v1671 = vld [vmem:[%s7 + $0x4] sm:$0xf]
  %v1672 = vld [vmem:[%s7 + $0x8] sm:$0xf]
  %v1673 = vld [vmem:[%s7 + $0xc] sm:$0xf]
  %v1678 = vunpack.c.l.b16 %v1670
  %v1679 = vunpack.c.l.b16 %v1671
  %v1680 = vunpack.c.l.b16 %v1672
  %v1681 = vunpack.c.l.b16 %v1673
  %v1682 = vpack.c.b16 %v1679, %v1678
  %v1683 = vpack.c.b16 %v1681, %v1680
  %v1686 = vsel %vm1562, 0, 0
  %1688 = vmatprep.subr.bf16.mxu0 0
  %1689 = vmatpush1.bf16.msra.mxu0 %v1682
  %1690 = vmatprep.subr.bf16.mxu0 0
  %1691 = vmatpush1.bf16.msra.mxu0 %v1683
  %1692 = vmatprep.subr.bf16.mxu0 0
  %1693 = vmatpush1.bf16.msra.mxu0 0
  %1694 = vmatprep.subr.bf16.mxu0 0
  %1695 = vmatpush1.bf16.msra.mxu0 0
  %1696 = vmatprep.subr.bf16.mxu0 0
  %1697 = vmatpush1.bf16.msra.mxu0 0
  %1698 = vmatprep.subr.bf16.mxu0 0
  %1699 = vmatpush1.bf16.msra.mxu0 0
  %1700 = vmatprep.subr.bf16.mxu0 0
  %1701 = vmatpush1.bf16.msra.mxu0 0
  %1702 = vmatprep.subr.bf16.mxu0 0
  %1703 = vmatpush1.bf16.msra.mxu0 0
  %1704 = vmatprep.subr.bf16.mxu0 0
  %1705 = vmatpush1.bf16.msra.mxu0 0
  %1706 = vmatprep.subr.bf16.mxu0 0
  %1707 = vmatpush1.bf16.msra.mxu0 0
  %1708 = vmatprep.subr.bf16.mxu0 0
  %1709 = vmatpush1.bf16.msra.mxu0 0
  %1710 = vmatprep.subr.bf16.mxu0 0
  %1711 = vmatpush1.bf16.msra.mxu0 0
  %1712 = vmatprep.subr.bf16.mxu0 0
  %1713 = vmatpush1.bf16.msra.mxu0 0
  %1714 = vmatprep.subr.bf16.mxu0 0
  %1715 = vmatpush1.bf16.msra.mxu0 0
  %1716 = vmatprep.subr.bf16.mxu0 0
  %1717 = vmatpush1.bf16.msra.mxu0 0
  %1718 = vmatprep.subr.bf16.mxu0 0
  %1719 = vmatpush1.bf16.msra.mxu0 0
  %1720 = vmatprep.mubr.bf16.mxu0 0
  %1721 = vmatmul.mubr.bf16.gmra.mrb[0].mxu0 %v1686
  %v1722 = vpop.f32.mrb[0].mxu0
  %v1723 = vadd.f32 0.0, %v1722
  %v1724 = vpop.f32.mrb[0].mxu0
  %v1725 = vpop.f32.mrb[0].mxu0
  %v1726 = vpop.f32.mrb[0].mxu0
  %1727 = vdwg.mxu0
  %v1728 = vadd.f32 %v1665, %v1723
  %v1729 = vxor.u32 %v1728, 2147483648
  %v1730 = vmul.f32 %v1729, 1.442695
  %v1731 = vpow.pop %v1730
  %v1732 = vadd.f32 %v1731, 1.0
  %v1733 = vrcp.pop %v1732
  %v1734 = vmul.f32 1.0, %v1733
  %v1735 = vtanh.pop %v1728
  %v1736 = vmul.f32 %v1734, 0.0
  %1738 = vrot.lane.b32.xlu0 %v1735, 64
  %v1739 = vpop.permute.xlu0 %1738
  %v1741 = vmul.f32 %v1734, %v1739
  %1743 = vrot.lane.b32.xlu0 %v1741, 32
  %v1744 = vpop.permute.xlu0 %1743
  %v1746 = vadd.f32 %v1736, %v1744
  %v1747 = vtanh.pop %v1746
  %1749 = vrot.lane.b32.xlu0 %v1747, 64
  %v1750 = vpop.permute.xlu0 %1749
  %v1752 = vmul.f32 %v1734, %v1750
  %1754 = vrot.lane.b32.xlu0 %v1752, 32
  %v1755 = vpop.permute.xlu0 %1754
  %v1757 = vsel %vm1562, %v1755, 0.0
  %v1758 = vpack.c.bf16 %v1757, %v1757
  %v1759 = vld [vmem:[%s9] sm:$0xff]
  %v1760 = vld [vmem:[%s9 + $0x8] sm:$0xff]
  %v1761 = vld [vmem:[%s9 + $0x10] sm:$0xff]
  %v1762 = vld [vmem:[%s9 + $0x18] sm:$0xff]
  %v1763 = vld [vmem:[%s9 + $0x20] sm:$0xff]
  %v1764 = vld [vmem:[%s9 + $0x28] sm:$0xff]
  %v1765 = vld [vmem:[%s9 + $0x30] sm:$0xff]
  %v1766 = vld [vmem:[%s9 + $0x38] sm:$0xff]
  %v1767 = vld [vmem:[%s9 + $0x40] sm:$0xff]
  %v1768 = vld [vmem:[%s9 + $0x48] sm:$0xff]
  %v1769 = vld [vmem:[%s9 + $0x50] sm:$0xff]
  %v1770 = vld [vmem:[%s9 + $0x58] sm:$0xff]
  %v1771 = vld [vmem:[%s10] sm:$0x3]
  %v1773 = vlaneseq
  %v1774 = vshrl.u32 %v1773, 7
  %v1775 = vsub.s32 0, %v1774
  %v1776 = vrot.slane %v1771, %v1775
  %v1777 = vlaneseq
  %v1778 = vshrl.u32 %v1777, 7
  %v1779 = vsub.s32 1, %v1778
  %v1780 = vrot.slane %v1771, %v1779
  %v1795 = vunpack.c.l.b16 %v1759
  %v1796 = vunpack.c.h.b16 %v1759
  %v1797 = vunpack.c.l.b16 %v1760
  %v1798 = vunpack.c.h.b16 %v1760
  %v1799 = vunpack.c.l.b16 %v1761
  %v1800 = vunpack.c.h.b16 %v1761
  %v1801 = vunpack.c.l.b16 %v1762
  %v1802 = vunpack.c.h.b16 %v1762
  %v1803 = vunpack.c.l.b16 %v1763
  %v1804 = vunpack.c.h.b16 %v1763
  %v1805 = vunpack.c.l.b16 %v1764
  %v1806 = vunpack.c.h.b16 %v1764
  %v1807 = vunpack.c.l.b16 %v1765
  %v1808 = vunpack.c.h.b16 %v1765
  %v1809 = vunpack.c.l.b16 %v1766
  %v1810 = vunpack.c.h.b16 %v1766
  %v1811 = vunpack.c.l.b16 %v1767
  %v1812 = vunpack.c.h.b16 %v1767
  %v1813 = vunpack.c.l.b16 %v1768
  %v1814 = vunpack.c.h.b16 %v1768
  %v1815 = vunpack.c.l.b16 %v1769
  %v1816 = vunpack.c.h.b16 %v1769
  %v1817 = vunpack.c.l.b16 %v1770
  %v1818 = vunpack.c.h.b16 %v1770
  %v1819 = vpack.c.b16 %v1797, %v1795
  %v1820 = vpack.c.b16 %v1798, %v1796
  %v1821 = vpack.c.b16 %v1801, %v1799
  %v1822 = vpack.c.b16 %v1802, %v1800
  %v1823 = vpack.c.b16 %v1805, %v1803
  %v1824 = vpack.c.b16 %v1806, %v1804
  %v1825 = vpack.c.b16 %v1809, %v1807
  %v1826 = vpack.c.b16 %v1810, %v1808
  %v1827 = vpack.c.b16 %v1813, %v1811
  %v1828 = vpack.c.b16 %v1814, %v1812
  %v1829 = vpack.c.b16 %v1817, %v1815
  %v1830 = vpack.c.b16 %v1818, %v1816
  %v1844 = vsel %vm424, %v1758, 0
  %1846 = vmatprep.subr.bf16.mxu0 %v1820
  %1847 = vmatpush1.bf16.msra.mxu0 %v1819
  %1848 = vmatprep.subr.bf16.mxu0 %v1822
  %1849 = vmatpush1.bf16.msra.mxu0 %v1821
  %1850 = vmatprep.subr.bf16.mxu0 %v1824
  %1851 = vmatpush1.bf16.msra.mxu0 %v1823
  %1852 = vmatprep.subr.bf16.mxu0 %v1826
  %1853 = vmatpush1.bf16.msra.mxu0 %v1825
  %1854 = vmatprep.subr.bf16.mxu0 %v1828
  %1855 = vmatpush1.bf16.msra.mxu0 %v1827
  %1856 = vmatprep.subr.bf16.mxu0 %v1830
  %1857 = vmatpush1.bf16.msra.mxu0 %v1829
  %1858 = vmatprep.subr.bf16.mxu0 0
  %1859 = vmatpush1.bf16.msra.mxu0 0
  %1860 = vmatprep.subr.bf16.mxu0 0
  %1861 = vmatpush1.bf16.msra.mxu0 0
  %1862 = vmatprep.subr.bf16.mxu0 0
  %1863 = vmatpush1.bf16.msra.mxu0 0
  %1864 = vmatprep.subr.bf16.mxu0 0
  %1865 = vmatpush1.bf16.msra.mxu0 0
  %1866 = vmatprep.subr.bf16.mxu0 0
  %1867 = vmatpush1.bf16.msra.mxu0 0
  %1868 = vmatprep.subr.bf16.mxu0 0
  %1869 = vmatpush1.bf16.msra.mxu0 0
  %1870 = vmatprep.subr.bf16.mxu0 0
  %1871 = vmatpush1.bf16.msra.mxu0 0
  %1872 = vmatprep.subr.bf16.mxu0 0
  %1873 = vmatpush1.bf16.msra.mxu0 0
  %1874 = vmatprep.subr.bf16.mxu0 0
  %1875 = vmatpush1.bf16.msra.mxu0 0
  %1876 = vmatprep.subr.bf16.mxu0 0
  %1877 = vmatpush1.bf16.msra.mxu0 0
  %1878 = vmatprep.mubr.bf16.mxu0 0
  %1879 = vmatmul.mubr.bf16.gmra.mrb[0].mxu0 %v1844
  %v1880 = vpop.f32.mrb[0].mxu0
  %v1881 = vadd.f32 %v1776, %v1880
  %v1882 = vpop.f32.mrb[0].mxu0
  %v1883 = vadd.f32 %v1780, %v1882
  %v1884 = vpop.f32.mrb[0].mxu0
  %v1885 = vpop.f32.mrb[0].mxu0
  %1886 = vdwg.mxu0
  %v1887 = vxor.u32 %v1881, 2147483648
  %v1888 = vxor.u32 %v1883, 2147483648
  %v1889 = vmul.f32 %v1887, 1.442695
  %v1890 = vpow.pop %v1889
  %v1891 = vmul.f32 %v1888, 1.442695
  %v1892 = vpow.pop %v1891
  %v1893 = vadd.f32 %v1890, 1.0
  %v1894 = vadd.f32 %v1892, 1.0
  %v1895 = vrcp.pop %v1893
  %v1896 = vmul.f32 1.0, %v1895
  %v1897 = vrcp.pop %v1894
  %v1898 = vmul.f32 1.0, %v1897
  %v1899 = vtanh.pop %v1883
  %v1900 = vmul.f32 %v1896, 0.0
  %v1901 = vmul.f32 %v1896, %v1899
  %1903 = vrot.lane.b32.xlu0 %v1901, 64
  %v1904 = vpop.permute.xlu0 %1903
  %v1906 = vadd.f32 %v1900, %v1904
  %v1907 = vtanh.pop %v1906
  %v1908 = vmul.f32 %v1898, %v1907
  %v1909 = vpack.c.bf16 %v1752, %v1752
  %1911 = vrot.lane.b32.xlu0 %v1909, 32
  %v1912 = vpop.permute.xlu0 %1911
  %v1914 = vsel %vm1562, %v1912, 0
  %1916 = vmatprep.subr.bf16.mxu0 0
  %1917 = vmatpush1.bf16.msra.mxu0 %v1682
  %1918 = vmatprep.subr.bf16.mxu0 0
  %1919 = vmatpush1.bf16.msra.mxu0 %v1683
  %1920 = vmatprep.subr.bf16.mxu0 0
  %1921 = vmatpush1.bf16.msra.mxu0 0
  %1922 = vmatprep.subr.bf16.mxu0 0
  %1923 = vmatpush1.bf16.msra.mxu0 0
  %1924 = vmatprep.subr.bf16.mxu0 0
  %1925 = vmatpush1.bf16.msra.mxu0 0
  %1926 = vmatprep.subr.bf16.mxu0 0
  %1927 = vmatpush1.bf16.msra.mxu0 0
  %1928 = vmatprep.subr.bf16.mxu0 0
  %1929 = vmatpush1.bf16.msra.mxu0 0
  %1930 = vmatprep.subr.bf16.mxu0 0
  %1931 = vmatpush1.bf16.msra.mxu0 0
  %1932 = vmatprep.subr.bf16.mxu0 0
  %1933 = vmatpush1.bf16.msra.mxu0 0
  %1934 = vmatprep.subr.bf16.mxu0 0
  %1935 = vmatpush1.bf16.msra.mxu0 0
  %1936 = vmatprep.subr.bf16.mxu0 0
  %1937 = vmatpush1.bf16.msra.mxu0 0
  %1938 = vmatprep.subr.bf16.mxu0 0
  %1939 = vmatpush1.bf16.msra.mxu0 0
  %1940 = vmatprep.subr.bf16.mxu0 0
  %1941 = vmatpush1.bf16.msra.mxu0 0
  %1942 = vmatprep.subr.bf16.mxu0 0
  %1943 = vmatpush1.bf16.msra.mxu0 0
  %1944 = vmatprep.subr.bf16.mxu0 0
  %1945 = vmatpush1.bf16.msra.mxu0 0
  %1946 = vmatprep.subr.bf16.mxu0 0
  %1947 = vmatpush1.bf16.msra.mxu0 0
  %1948 = vmatprep.mubr.bf16.mxu0 0
  %1949 = vmatmul.mubr.bf16.gmra.mrb[0].mxu0 %v1914
  %v1950 = vpop.f32.mrb[0].mxu0
  %v1951 = vadd.f32 0.0, %v1950
  %v1952 = vpop.f32.mrb[0].mxu0
  %v1953 = vpop.f32.mrb[0].mxu0
  %v1954 = vpop.f32.mrb[0].mxu0
  %1955 = vdwg.mxu0
  %v1956 = vadd.f32 %v1665, %v1951
  %v1957 = vxor.u32 %v1956, 2147483648
  %v1958 = vmul.f32 %v1957, 1.442695
  %v1959 = vpow.pop %v1958
  %v1960 = vadd.f32 %v1959, 1.0
  %v1961 = vrcp.pop %v1960
  %v1962 = vmul.f32 1.0, %v1961
  %v1963 = vtanh.pop %v1956
  %v1964 = vmul.f32 %v1962, %v1746
  %1966 = vrot.lane.b32.xlu0 %v1963, 64
  %v1967 = vpop.permute.xlu0 %1966
  %v1969 = vmul.f32 %v1962, %v1967
  %1971 = vrot.lane.b32.xlu0 %v1969, 32
  %v1972 = vpop.permute.xlu0 %1971
  %v1974 = vadd.f32 %v1964, %v1972
  %v1975 = vtanh.pop %v1974
  %1977 = vrot.lane.b32.xlu0 %v1975, 64
  %v1978 = vpop.permute.xlu0 %1977
  %v1980 = vmul.f32 %v1962, %v1978
  %1982 = vrot.lane.b32.xlu0 %v1980, 32
  %v1983 = vpop.permute.xlu0 %1982
  %1986 = vrot.lane.b32.xlu0 %v1908, 96
  %v1987 = vpop.permute.xlu0 %1986
  %v1989 = vsel %vm1562, %v1983, %v1987
  %v1990 = vpack.c.bf16 %v1989, %v1989
  %v1992 = vsel %vm424, %v1990, 0
  %1994 = vmatprep.subr.bf16.mxu0 %v1820
  %1995 = vmatpush1.bf16.msra.mxu0 %v1819
  %1996 = vmatprep.subr.bf16.mxu0 %v1822
  %1997 = vmatpush1.bf16.msra.mxu0 %v1821
  %1998 = vmatprep.subr.bf16.mxu0 %v1824
  %1999 = vmatpush1.bf16.msra.mxu0 %v1823
  %2000 = vmatprep.subr.bf16.mxu0 %v1826
  %2001 = vmatpush1.bf16.msra.mxu0 %v1825
  %2002 = vmatprep.subr.bf16.mxu0 %v1828
  %2003 = vmatpush1.bf16.msra.mxu0 %v1827
  %2004 = vmatprep.subr.bf16.mxu0 %v1830
  %2005 = vmatpush1.bf16.msra.mxu0 %v1829
  %2006 = vmatprep.subr.bf16.mxu0 0
  %2007 = vmatpush1.bf16.msra.mxu0 0
  %2008 = vmatprep.subr.bf16.mxu0 0
  %2009 = vmatpush1.bf16.msra.mxu0 0
  %2010 = vmatprep.subr.bf16.mxu0 0
  %2011 = vmatpush1.bf16.msra.mxu0 0
  %2012 = vmatprep.subr.bf16.mxu0 0
  %2013 = vmatpush1.bf16.msra.mxu0 0
  %2014 = vmatprep.subr.bf16.mxu0 0
  %2015 = vmatpush1.bf16.msra.mxu0 0
  %2016 = vmatprep.subr.bf16.mxu0 0
  %2017 = vmatpush1.bf16.msra.mxu0 0
  %2018 = vmatprep.subr.bf16.mxu0 0
  %2019 = vmatpush1.bf16.msra.mxu0 0
  %2020 = vmatprep.subr.bf16.mxu0 0
  %2021 = vmatpush1.bf16.msra.mxu0 0
  %2022 = vmatprep.subr.bf16.mxu0 0
  %2023 = vmatpush1.bf16.msra.mxu0 0
  %2024 = vmatprep.subr.bf16.mxu0 0
  %2025 = vmatpush1.bf16.msra.mxu0 0
  %2026 = vmatprep.mubr.bf16.mxu0 0
  %2027 = vmatmul.mubr.bf16.gmra.mrb[0].mxu0 %v1992
  %v2028 = vpop.f32.mrb[0].mxu0
  %v2029 = vadd.f32 %v1776, %v2028
  %v2030 = vpop.f32.mrb[0].mxu0
  %v2031 = vadd.f32 %v1780, %v2030
  %v2032 = vpop.f32.mrb[0].mxu0
  %v2033 = vpop.f32.mrb[0].mxu0
  %2034 = vdwg.mxu0
  %v2035 = vxor.u32 %v2029, 2147483648
  %v2036 = vxor.u32 %v2031, 2147483648
  %v2037 = vmul.f32 %v2035, 1.442695
  %v2038 = vpow.pop %v2037
  %v2039 = vmul.f32 %v2036, 1.442695
  %v2040 = vpow.pop %v2039
  %v2041 = vadd.f32 %v2038, 1.0
  %v2042 = vadd.f32 %v2040, 1.0
  %v2043 = vrcp.pop %v2041
  %v2044 = vmul.f32 1.0, %v2043
  %v2045 = vrcp.pop %v2042
  %v2046 = vmul.f32 1.0, %v2045
  %v2047 = vtanh.pop %v2031
  %v2048 = vmul.f32 %v2044, %v1906
  %v2049 = vmul.f32 %v2044, %v2047
  %2051 = vrot.lane.b32.xlu0 %v2049, 64
  %v2052 = vpop.permute.xlu0 %2051
  %v2054 = vadd.f32 %v2048, %v2052
  %v2055 = vtanh.pop %v2054
  %v2056 = vmul.f32 %v2046, %v2055
  %v2057 = vpack.c.bf16 %v1980, %v1980
  %2059 = vrot.lane.b32.xlu0 %v2057, 32
  %v2060 = vpop.permute.xlu0 %2059
  %v2062 = vsel %vm1562, %v2060, 0
  %2064 = vmatprep.subr.bf16.mxu0 0
  %2065 = vmatpush1.bf16.msra.mxu0 %v1682
  %2066 = vmatprep.subr.bf16.mxu0 0
  %2067 = vmatpush1.bf16.msra.mxu0 %v1683
  %2068 = vmatprep.subr.bf16.mxu0 0
  %2069 = vmatpush1.bf16.msra.mxu0 0
  %2070 = vmatprep.subr.bf16.mxu0 0
  %2071 = vmatpush1.bf16.msra.mxu0 0
  %2072 = vmatprep.subr.bf16.mxu0 0
  %2073 = vmatpush1.bf16.msra.mxu0 0
  %2074 = vmatprep.subr.bf16.mxu0 0
  %2075 = vmatpush1.bf16.msra.mxu0 0
  %2076 = vmatprep.subr.bf16.mxu0 0
  %2077 = vmatpush1.bf16.msra.mxu0 0
  %2078 = vmatprep.subr.bf16.mxu0 0
  %2079 = vmatpush1.bf16.msra.mxu0 0
  %2080 = vmatprep.subr.bf16.mxu0 0
  %2081 = vmatpush1.bf16.msra.mxu0 0
  %2082 = vmatprep.subr.bf16.mxu0 0
  %2083 = vmatpush1.bf16.msra.mxu0 0
  %2084 = vmatprep.subr.bf16.mxu0 0
  %2085 = vmatpush1.bf16.msra.mxu0 0
  %2086 = vmatprep.subr.bf16.mxu0 0
  %2087 = vmatpush1.bf16.msra.mxu0 0
  %2088 = vmatprep.subr.bf16.mxu0 0
  %2089 = vmatpush1.bf16.msra.mxu0 0
  %2090 = vmatprep.subr.bf16.mxu0 0
  %2091 = vmatpush1.bf16.msra.mxu0 0
  %2092 = vmatprep.subr.bf16.mxu0 0
  %2093 = vmatpush1.bf16.msra.mxu0 0
  %2094 = vmatprep.subr.bf16.mxu0 0
  %2095 = vmatpush1.bf16.msra.mxu0 0
  %2096 = vmatprep.mubr.bf16.mxu0 0
  %2097 = vmatmul.mubr.bf16.gmra.mrb[0].mxu0 %v2062
  %v2098 = vpop.f32.mrb[0].mxu0
  %v2099 = vadd.f32 0.0, %v2098
  %v2100 = vpop.f32.mrb[0].mxu0
  %v2101 = vpop.f32.mrb[0].mxu0
  %v2102 = vpop.f32.mrb[0].mxu0
  %2103 = vdwg.mxu0
  %v2104 = vadd.f32 %v1665, %v2099
  %v2105 = vxor.u32 %v2104, 2147483648
  %v2106 = vmul.f32 %v2105, 1.442695
  %v2107 = vpow.pop %v2106
  %v2108 = vadd.f32 %v2107, 1.0
  %v2109 = vrcp.pop %v2108
  %v2110 = vmul.f32 1.0, %v2109
  %v2111 = vtanh.pop %v2104
  %v2112 = vmul.f32 %v2110, %v1974
  %2114 = vrot.lane.b32.xlu0 %v2111, 64
  %v2115 = vpop.permute.xlu0 %2114
  %v2117 = vmul.f32 %v2110, %v2115
  %2119 = vrot.lane.b32.xlu0 %v2117, 32
  %v2120 = vpop.permute.xlu0 %2119
  %v2122 = vadd.f32 %v2112, %v2120
  %v2123 = vtanh.pop %v2122
  %2125 = vrot.lane.b32.xlu0 %v2123, 64
  %v2126 = vpop.permute.xlu0 %2125
  %v2128 = vmul.f32 %v2110, %v2126
  %2130 = vrot.lane.b32.xlu0 %v2128, 32
  %v2131 = vpop.permute.xlu0 %2130
  %2134 = vrot.lane.b32.xlu0 %v2056, 96
  %v2135 = vpop.permute.xlu0 %2134
  %v2137 = vsel %vm1562, %v2131, %v2135
  %v2138 = vpack.c.bf16 %v2137, %v2137
  %v2140 = vsel %vm424, %v2138, 0
  %2142 = vmatprep.subr.bf16.mxu0 %v1820
  %2143 = vmatpush1.bf16.msra.mxu0 %v1819
  %2144 = vmatprep.subr.bf16.mxu0 %v1822
  %2145 = vmatpush1.bf16.msra.mxu0 %v1821
  %2146 = vmatprep.subr.bf16.mxu0 %v1824
  %2147 = vmatpush1.bf16.msra.mxu0 %v1823
  %2148 = vmatprep.subr.bf16.mxu0 %v1826
  %2149 = vmatpush1.bf16.msra.mxu0 %v1825
  %2150 = vmatprep.subr.bf16.mxu0 %v1828
  %2151 = vmatpush1.bf16.msra.mxu0 %v1827
  %2152 = vmatprep.subr.bf16.mxu0 %v1830
  %2153 = vmatpush1.bf16.msra.mxu0 %v1829
  %2154 = vmatprep.subr.bf16.mxu0 0
  %2155 = vmatpush1.bf16.msra.mxu0 0
  %2156 = vmatprep.subr.bf16.mxu0 0
  %2157 = vmatpush1.bf16.msra.mxu0 0
  %2158 = vmatprep.subr.bf16.mxu0 0
  %2159 = vmatpush1.bf16.msra.mxu0 0
  %2160 = vmatprep.subr.bf16.mxu0 0
  %2161 = vmatpush1.bf16.msra.mxu0 0
  %2162 = vmatprep.subr.bf16.mxu0 0
  %2163 = vmatpush1.bf16.msra.mxu0 0
  %2164 = vmatprep.subr.bf16.mxu0 0
  %2165 = vmatpush1.bf16.msra.mxu0 0
  %2166 = vmatprep.subr.bf16.mxu0 0
  %2167 = vmatpush1.bf16.msra.mxu0 0
  %2168 = vmatprep.subr.bf16.mxu0 0
  %2169 = vmatpush1.bf16.msra.mxu0 0
  %2170 = vmatprep.subr.bf16.mxu0 0
  %2171 = vmatpush1.bf16.msra.mxu0 0
  %2172 = vmatprep.subr.bf16.mxu0 0
  %2173 = vmatpush1.bf16.msra.mxu0 0
  %2174 = vmatprep.mubr.bf16.mxu0 0
  %2175 = vmatmul.mubr.bf16.gmra.mrb[0].mxu0 %v2140
  %v2176 = vpop.f32.mrb[0].mxu0
  %v2177 = vadd.f32 %v1776, %v2176
  %v2178 = vpop.f32.mrb[0].mxu0
  %v2179 = vadd.f32 %v1780, %v2178
  %v2180 = vpop.f32.mrb[0].mxu0
  %v2181 = vpop.f32.mrb[0].mxu0
  %2182 = vdwg.mxu0
  %v2183 = vxor.u32 %v2177, 2147483648
  %v2184 = vxor.u32 %v2179, 2147483648
  %v2185 = vmul.f32 %v2183, 1.442695
  %v2186 = vpow.pop %v2185
  %v2187 = vmul.f32 %v2184, 1.442695
  %v2188 = vpow.pop %v2187
  %v2189 = vadd.f32 %v2186, 1.0
  %v2190 = vadd.f32 %v2188, 1.0
  %v2191 = vrcp.pop %v2189
  %v2192 = vmul.f32 1.0, %v2191
  %v2193 = vrcp.pop %v2190
  %v2194 = vmul.f32 1.0, %v2193
  %v2195 = vtanh.pop %v2179
  %v2196 = vmul.f32 %v2192, %v2054
  %v2197 = vmul.f32 %v2192, %v2195
  %2199 = vrot.lane.b32.xlu0 %v2197, 64
  %v2200 = vpop.permute.xlu0 %2199
  %v2202 = vadd.f32 %v2196, %v2200
  %v2203 = vtanh.pop %v2202
  %v2204 = vmul.f32 %v2194, %v2203
  %v2205 = vpack.c.bf16 %v2128, %v2128
  %2207 = vrot.lane.b32.xlu0 %v2205, 32
  %v2208 = vpop.permute.xlu0 %2207
  %v2210 = vsel %vm1562, %v2208, 0
  %2212 = vmatprep.subr.bf16.mxu0 0
  %2213 = vmatpush1.bf16.msra.mxu0 %v1682
  %2214 = vmatprep.subr.bf16.mxu0 0
  %2215 = vmatpush1.bf16.msra.mxu0 %v1683
  %2216 = vmatprep.subr.bf16.mxu0 0
  %2217 = vmatpush1.bf16.msra.mxu0 0
  %2218 = vmatprep.subr.bf16.mxu0 0
  %2219 = vmatpush1.bf16.msra.mxu0 0
  %2220 = vmatprep.subr.bf16.mxu0 0
  %2221 = vmatpush1.bf16.msra.mxu0 0
  %2222 = vmatprep.subr.bf16.mxu0 0
  %2223 = vmatpush1.bf16.msra.mxu0 0
  %2224 = vmatprep.subr.bf16.mxu0 0
  %2225 = vmatpush1.bf16.msra.mxu0 0
  %2226 = vmatprep.subr.bf16.mxu0 0
  %2227 = vmatpush1.bf16.msra.mxu0 0
  %2228 = vmatprep.subr.bf16.mxu0 0
  %2229 = vmatpush1.bf16.msra.mxu0 0
  %2230 = vmatprep.subr.bf16.mxu0 0
  %2231 = vmatpush1.bf16.msra.mxu0 0
  %2232 = vmatprep.subr.bf16.mxu0 0
  %2233 = vmatpush1.bf16.msra.mxu0 0
  %2234 = vmatprep.subr.bf16.mxu0 0
  %2235 = vmatpush1.bf16.msra.mxu0 0
  %2236 = vmatprep.subr.bf16.mxu0 0
  %2237 = vmatpush1.bf16.msra.mxu0 0
  %2238 = vmatprep.subr.bf16.mxu0 0
  %2239 = vmatpush1.bf16.msra.mxu0 0
  %2240 = vmatprep.subr.bf16.mxu0 0
  %2241 = vmatpush1.bf16.msra.mxu0 0
  %2242 = vmatprep.subr.bf16.mxu0 0
  %2243 = vmatpush1.bf16.msra.mxu0 0
  %2244 = vmatprep.mubr.bf16.mxu0 0
  %2245 = vmatmul.mubr.bf16.gmra.mrb[0].mxu0 %v2210
  %v2246 = vpop.f32.mrb[0].mxu0
  %v2247 = vadd.f32 0.0, %v2246
  %v2248 = vpop.f32.mrb[0].mxu0
  %v2249 = vpop.f32.mrb[0].mxu0
  %v2250 = vpop.f32.mrb[0].mxu0
  %2251 = vdwg.mxu0
  %v2252 = vadd.f32 %v1665, %v2247
  %v2253 = vxor.u32 %v2252, 2147483648
  %v2254 = vmul.f32 %v2253, 1.442695
  %v2255 = vpow.pop %v2254
  %v2256 = vadd.f32 %v2255, 1.0
  %v2257 = vrcp.pop %v2256
  %v2258 = vmul.f32 1.0, %v2257
  %v2259 = vtanh.pop %v2252
  %v2260 = vmul.f32 %v2258, %v2122
  %2262 = vrot.lane.b32.xlu0 %v2259, 64
  %v2263 = vpop.permute.xlu0 %2262
  %v2265 = vmul.f32 %v2258, %v2263
  %2267 = vrot.lane.b32.xlu0 %v2265, 32
  %v2268 = vpop.permute.xlu0 %2267
  %v2270 = vadd.f32 %v2260, %v2268
  %v2271 = vtanh.pop %v2270
  %2273 = vrot.lane.b32.xlu0 %v2271, 64
  %v2274 = vpop.permute.xlu0 %2273
  %v2276 = vmul.f32 %v2258, %v2274
  %2278 = vrot.lane.b32.xlu0 %v2276, 32
  %v2279 = vpop.permute.xlu0 %2278
  %2282 = vrot.lane.b32.xlu0 %v2204, 96
  %v2283 = vpop.permute.xlu0 %2282
  %v2285 = vsel %vm1562, %v2279, %v2283
  %v2286 = vpack.c.bf16 %v2285, %v2285
  %v2288 = vsel %vm424, %v2286, 0
  %2290 = vmatprep.subr.bf16.mxu0 %v1820
  %2291 = vmatpush1.bf16.msra.mxu0 %v1819
  %2292 = vmatprep.subr.bf16.mxu0 %v1822
  %2293 = vmatpush1.bf16.msra.mxu0 %v1821
  %2294 = vmatprep.subr.bf16.mxu0 %v1824
  %2295 = vmatpush1.bf16.msra.mxu0 %v1823
  %2296 = vmatprep.subr.bf16.mxu0 %v1826
  %2297 = vmatpush1.bf16.msra.mxu0 %v1825
  %2298 = vmatprep.subr.bf16.mxu0 %v1828
  %2299 = vmatpush1.bf16.msra.mxu0 %v1827
  %2300 = vmatprep.subr.bf16.mxu0 %v1830
  %2301 = vmatpush1.bf16.msra.mxu0 %v1829
  %2302 = vmatprep.subr.bf16.mxu0 0
  %2303 = vmatpush1.bf16.msra.mxu0 0
  %2304 = vmatprep.subr.bf16.mxu0 0
  %2305 = vmatpush1.bf16.msra.mxu0 0
  %2306 = vmatprep.subr.bf16.mxu0 0
  %2307 = vmatpush1.bf16.msra.mxu0 0
  %2308 = vmatprep.subr.bf16.mxu0 0
  %2309 = vmatpush1.bf16.msra.mxu0 0
  %2310 = vmatprep.subr.bf16.mxu0 0
  %2311 = vmatpush1.bf16.msra.mxu0 0
  %2312 = vmatprep.subr.bf16.mxu0 0
  %2313 = vmatpush1.bf16.msra.mxu0 0
  %2314 = vmatprep.subr.bf16.mxu0 0
  %2315 = vmatpush1.bf16.msra.mxu0 0
  %2316 = vmatprep.subr.bf16.mxu0 0
  %2317 = vmatpush1.bf16.msra.mxu0 0
  %2318 = vmatprep.subr.bf16.mxu0 0
  %2319 = vmatpush1.bf16.msra.mxu0 0
  %2320 = vmatprep.subr.bf16.mxu0 0
  %2321 = vmatpush1.bf16.msra.mxu0 0
  %2322 = vmatprep.mubr.bf16.mxu0 0
  %2323 = vmatmul.mubr.bf16.gmra.mrb[0].mxu0 %v2288
  %v2324 = vpop.f32.mrb[0].mxu0
  %v2325 = vadd.f32 %v1776, %v2324
  %v2326 = vpop.f32.mrb[0].mxu0
  %v2327 = vadd.f32 %v1780, %v2326
  %v2328 = vpop.f32.mrb[0].mxu0
  %v2329 = vpop.f32.mrb[0].mxu0
  %2330 = vdwg.mxu0
  %v2331 = vxor.u32 %v2325, 2147483648
  %v2332 = vxor.u32 %v2327, 2147483648
  %v2333 = vmul.f32 %v2331, 1.442695
  %v2334 = vpow.pop %v2333
  %v2335 = vmul.f32 %v2332, 1.442695
  %v2336 = vpow.pop %v2335
  %v2337 = vadd.f32 %v2334, 1.0
  %v2338 = vadd.f32 %v2336, 1.0
  %v2339 = vrcp.pop %v2337
  %v2340 = vmul.f32 1.0, %v2339
  %v2341 = vrcp.pop %v2338
  %v2342 = vmul.f32 1.0, %v2341
  %v2343 = vtanh.pop %v2327
  %v2344 = vmul.f32 %v2340, %v2202
  %v2345 = vmul.f32 %v2340, %v2343
  %2347 = vrot.lane.b32.xlu0 %v2345, 64
  %v2348 = vpop.permute.xlu0 %2347
  %v2350 = vadd.f32 %v2344, %v2348
  %v2351 = vtanh.pop %v2350
  %v2352 = vmul.f32 %v2342, %v2351
  %v2353 = vpack.c.bf16 %v2276, %v2276
  %2355 = vrot.lane.b32.xlu0 %v2353, 32
  %v2356 = vpop.permute.xlu0 %2355
  %v2358 = vsel %vm1562, %v2356, 0
  %2360 = vmatprep.subr.bf16.mxu0 0
  %2361 = vmatpush1.bf16.msra.mxu0 %v1682
  %2362 = vmatprep.subr.bf16.mxu0 0
  %2363 = vmatpush1.bf16.msra.mxu0 %v1683
  %2364 = vmatprep.subr.bf16.mxu0 0
  %2365 = vmatpush1.bf16.msra.mxu0 0
  %2366 = vmatprep.subr.bf16.mxu0 0
  %2367 = vmatpush1.bf16.msra.mxu0 0
  %2368 = vmatprep.subr.bf16.mxu0 0
  %2369 = vmatpush1.bf16.msra.mxu0 0
  %2370 = vmatprep.subr.bf16.mxu0 0
  %2371 = vmatpush1.bf16.msra.mxu0 0
  %2372 = vmatprep.subr.bf16.mxu0 0
  %2373 = vmatpush1.bf16.msra.mxu0 0
  %2374 = vmatprep.subr.bf16.mxu0 0
  %2375 = vmatpush1.bf16.msra.mxu0 0
  %2376 = vmatprep.subr.bf16.mxu0 0
  %2377 = vmatpush1.bf16.msra.mxu0 0
  %2378 = vmatprep.subr.bf16.mxu0 0
  %2379 = vmatpush1.bf16.msra.mxu0 0
  %2380 = vmatprep.subr.bf16.mxu0 0
  %2381 = vmatpush1.bf16.msra.mxu0 0
  %2382 = vmatprep.subr.bf16.mxu0 0
  %2383 = vmatpush1.bf16.msra.mxu0 0
  %2384 = vmatprep.subr.bf16.mxu0 0
  %2385 = vmatpush1.bf16.msra.mxu0 0
  %2386 = vmatprep.subr.bf16.mxu0 0
  %2387 = vmatpush1.bf16.msra.mxu0 0
  %2388 = vmatprep.subr.bf16.mxu0 0
  %2389 = vmatpush1.bf16.msra.mxu0 0
  %2390 = vmatprep.subr.bf16.mxu0 0
  %2391 = vmatpush1.bf16.msra.mxu0 0
  %2392 = vmatprep.mubr.bf16.mxu0 0
  %2393 = vmatmul.mubr.bf16.gmra.mrb[0].mxu0 %v2358
  %v2394 = vpop.f32.mrb[0].mxu0
  %v2395 = vadd.f32 0.0, %v2394
  %v2396 = vpop.f32.mrb[0].mxu0
  %v2397 = vpop.f32.mrb[0].mxu0
  %v2398 = vpop.f32.mrb[0].mxu0
  %2399 = vdwg.mxu0
  %v2400 = vadd.f32 %v1665, %v2395
  %v2401 = vxor.u32 %v2400, 2147483648
  %v2402 = vmul.f32 %v2401, 1.442695
  %v2403 = vpow.pop %v2402
  %v2404 = vadd.f32 %v2403, 1.0
  %v2405 = vrcp.pop %v2404
  %v2406 = vmul.f32 1.0, %v2405
  %v2407 = vtanh.pop %v2400
  %v2408 = vmul.f32 %v2406, %v2270
  %2410 = vrot.lane.b32.xlu0 %v2407, 64
  %v2411 = vpop.permute.xlu0 %2410
  %v2413 = vmul.f32 %v2406, %v2411
  %2415 = vrot.lane.b32.xlu0 %v2413, 32
  %v2416 = vpop.permute.xlu0 %2415
  %v2418 = vadd.f32 %v2408, %v2416
  %v2419 = vtanh.pop %v2418
  %2421 = vrot.lane.b32.xlu0 %v2419, 64
  %v2422 = vpop.permute.xlu0 %2421
  %v2424 = vmul.f32 %v2406, %v2422
  %2426 = vrot.lane.b32.xlu0 %v2424, 32
  %v2427 = vpop.permute.xlu0 %2426
  %2430 = vrot.lane.b32.xlu0 %v2352, 96
  %v2431 = vpop.permute.xlu0 %2430
  %v2433 = vsel %vm1562, %v2427, %v2431
  %v2434 = vpack.c.bf16 %v2433, %v2433
  %v2436 = vsel %vm424, %v2434, 0
  %2438 = vmatprep.subr.bf16.mxu0 %v1820
  %2439 = vmatpush1.bf16.msra.mxu0 %v1819
  %2440 = vmatprep.subr.bf16.mxu0 %v1822
  %2441 = vmatpush1.bf16.msra.mxu0 %v1821
  %2442 = vmatprep.subr.bf16.mxu0 %v1824
  %2443 = vmatpush1.bf16.msra.mxu0 %v1823
  %2444 = vmatprep.subr.bf16.mxu0 %v1826
  %2445 = vmatpush1.bf16.msra.mxu0 %v1825
  %2446 = vmatprep.subr.bf16.mxu0 %v1828
  %2447 = vmatpush1.bf16.msra.mxu0 %v1827
  %2448 = vmatprep.subr.bf16.mxu0 %v1830
  %2449 = vmatpush1.bf16.msra.mxu0 %v1829
  %2450 = vmatprep.subr.bf16.mxu0 0
  %2451 = vmatpush1.bf16.msra.mxu0 0
  %2452 = vmatprep.subr.bf16.mxu0 0
  %2453 = vmatpush1.bf16.msra.mxu0 0
  %2454 = vmatprep.subr.bf16.mxu0 0
  %2455 = vmatpush1.bf16.msra.mxu0 0
  %2456 = vmatprep.subr.bf16.mxu0 0
  %2457 = vmatpush1.bf16.msra.mxu0 0
  %2458 = vmatprep.subr.bf16.mxu0 0
  %2459 = vmatpush1.bf16.msra.mxu0 0
  %2460 = vmatprep.subr.bf16.mxu0 0
  %2461 = vmatpush1.bf16.msra.mxu0 0
  %2462 = vmatprep.subr.bf16.mxu0 0
  %2463 = vmatpush1.bf16.msra.mxu0 0
  %2464 = vmatprep.subr.bf16.mxu0 0
  %2465 = vmatpush1.bf16.msra.mxu0 0
  %2466 = vmatprep.subr.bf16.mxu0 0
  %2467 = vmatpush1.bf16.msra.mxu0 0
  %2468 = vmatprep.subr.bf16.mxu0 0
  %2469 = vmatpush1.bf16.msra.mxu0 0
  %2470 = vmatprep.mubr.bf16.mxu0 0
  %2471 = vmatmul.mubr.bf16.gmra.mrb[0].mxu0 %v2436
  %v2472 = vpop.f32.mrb[0].mxu0
  %v2473 = vadd.f32 %v1776, %v2472
  %v2474 = vpop.f32.mrb[0].mxu0
  %v2475 = vadd.f32 %v1780, %v2474
  %v2476 = vpop.f32.mrb[0].mxu0
  %v2477 = vpop.f32.mrb[0].mxu0
  %2478 = vdwg.mxu0
  %v2479 = vxor.u32 %v2473, 2147483648
  %v2480 = vxor.u32 %v2475, 2147483648
  %v2481 = vmul.f32 %v2479, 1.442695
  %v2482 = vpow.pop %v2481
  %v2483 = vmul.f32 %v2480, 1.442695
  %v2484 = vpow.pop %v2483
  %v2485 = vadd.f32 %v2482, 1.0
  %v2486 = vadd.f32 %v2484, 1.0
  %v2487 = vrcp.pop %v2485
  %v2488 = vmul.f32 1.0, %v2487
  %v2489 = vrcp.pop %v2486
  %v2490 = vmul.f32 1.0, %v2489
  %v2491 = vtanh.pop %v2475
  %v2492 = vmul.f32 %v2488, %v2350
  %v2493 = vmul.f32 %v2488, %v2491
  %2495 = vrot.lane.b32.xlu0 %v2493, 64
  %v2496 = vpop.permute.xlu0 %2495
  %v2498 = vadd.f32 %v2492, %v2496
  %v2499 = vtanh.pop %v2498
  %v2500 = vmul.f32 %v2490, %v2499
  %v2501 = vpack.c.bf16 %v2424, %v2424
  %2503 = vrot.lane.b32.xlu0 %v2501, 32
  %v2504 = vpop.permute.xlu0 %2503
  %v2506 = vsel %vm1562, %v2504, 0
  %2508 = vmatprep.subr.bf16.mxu0 0
  %2509 = vmatpush1.bf16.msra.mxu0 %v1682
  %2510 = vmatprep.subr.bf16.mxu0 0
  %2511 = vmatpush1.bf16.msra.mxu0 %v1683
  %2512 = vmatprep.subr.bf16.mxu0 0
  %2513 = vmatpush1.bf16.msra.mxu0 0
  %2514 = vmatprep.subr.bf16.mxu0 0
  %2515 = vmatpush1.bf16.msra.mxu0 0
  %2516 = vmatprep.subr.bf16.mxu0 0
  %2517 = vmatpush1.bf16.msra.mxu0 0
  %2518 = vmatprep.subr.bf16.mxu0 0
  %2519 = vmatpush1.bf16.msra.mxu0 0
  %2520 = vmatprep.subr.bf16.mxu0 0
  %2521 = vmatpush1.bf16.msra.mxu0 0
  %2522 = vmatprep.subr.bf16.mxu0 0
  %2523 = vmatpush1.bf16.msra.mxu0 0
  %2524 = vmatprep.subr.bf16.mxu0 0
  %2525 = vmatpush1.bf16.msra.mxu0 0
  %2526 = vmatprep.subr.bf16.mxu0 0
  %2527 = vmatpush1.bf16.msra.mxu0 0
  %2528 = vmatprep.subr.bf16.mxu0 0
  %2529 = vmatpush1.bf16.msra.mxu0 0
  %2530 = vmatprep.subr.bf16.mxu0 0
  %2531 = vmatpush1.bf16.msra.mxu0 0
  %2532 = vmatprep.subr.bf16.mxu0 0
  %2533 = vmatpush1.bf16.msra.mxu0 0
  %2534 = vmatprep.subr.bf16.mxu0 0
  %2535 = vmatpush1.bf16.msra.mxu0 0
  %2536 = vmatprep.subr.bf16.mxu0 0
  %2537 = vmatpush1.bf16.msra.mxu0 0
  %2538 = vmatprep.subr.bf16.mxu0 0
  %2539 = vmatpush1.bf16.msra.mxu0 0
  %2540 = vmatprep.mubr.bf16.mxu0 0
  %2541 = vmatmul.mubr.bf16.gmra.mrb[0].mxu0 %v2506
  %v2542 = vpop.f32.mrb[0].mxu0
  %v2543 = vadd.f32 0.0, %v2542
  %v2544 = vpop.f32.mrb[0].mxu0
  %v2545 = vpop.f32.mrb[0].mxu0
  %v2546 = vpop.f32.mrb[0].mxu0
  %2547 = vdwg.mxu0
  %v2548 = vadd.f32 %v1665, %v2543
  %v2549 = vxor.u32 %v2548, 2147483648
  %v2550 = vmul.f32 %v2549, 1.442695
  %v2551 = vpow.pop %v2550
  %v2552 = vadd.f32 %v2551, 1.0
  %v2553 = vrcp.pop %v2552
  %v2554 = vmul.f32 1.0, %v2553
  %v2555 = vtanh.pop %v2548
  %v2556 = vmul.f32 %v2554, %v2418
  %2558 = vrot.lane.b32.xlu0 %v2555, 64
  %v2559 = vpop.permute.xlu0 %2558
  %v2561 = vmul.f32 %v2554, %v2559
  %2563 = vrot.lane.b32.xlu0 %v2561, 32
  %v2564 = vpop.permute.xlu0 %2563
  %v2566 = vadd.f32 %v2556, %v2564
  %v2567 = vtanh.pop %v2566
  %2569 = vrot.lane.b32.xlu0 %v2567, 64
  %v2570 = vpop.permute.xlu0 %2569
  %v2572 = vmul.f32 %v2554, %v2570
  %2574 = vrot.lane.b32.xlu0 %v2572, 32
  %v2575 = vpop.permute.xlu0 %2574
  %2578 = vrot.lane.b32.xlu0 %v2500, 96
  %v2579 = vpop.permute.xlu0 %2578
  %v2581 = vsel %vm1562, %v2575, %v2579
  %v2582 = vpack.c.bf16 %v2581, %v2581
  %v2584 = vsel %vm424, %v2582, 0
  %2586 = vmatprep.subr.bf16.mxu0 %v1820
  %2587 = vmatpush1.bf16.msra.mxu0 %v1819
  %2588 = vmatprep.subr.bf16.mxu0 %v1822
  %2589 = vmatpush1.bf16.msra.mxu0 %v1821
  %2590 = vmatprep.subr.bf16.mxu0 %v1824
  %2591 = vmatpush1.bf16.msra.mxu0 %v1823
  %2592 = vmatprep.subr.bf16.mxu0 %v1826
  %2593 = vmatpush1.bf16.msra.mxu0 %v1825
  %2594 = vmatprep.subr.bf16.mxu0 %v1828
  %2595 = vmatpush1.bf16.msra.mxu0 %v1827
  %2596 = vmatprep.subr.bf16.mxu0 %v1830
  %2597 = vmatpush1.bf16.msra.mxu0 %v1829
  %2598 = vmatprep.subr.bf16.mxu0 0
  %2599 = vmatpush1.bf16.msra.mxu0 0
  %2600 = vmatprep.subr.bf16.mxu0 0
  %2601 = vmatpush1.bf16.msra.mxu0 0
  %2602 = vmatprep.subr.bf16.mxu0 0
  %2603 = vmatpush1.bf16.msra.mxu0 0
  %2604 = vmatprep.subr.bf16.mxu0 0
  %2605 = vmatpush1.bf16.msra.mxu0 0
  %2606 = vmatprep.subr.bf16.mxu0 0
  %2607 = vmatpush1.bf16.msra.mxu0 0
  %2608 = vmatprep.subr.bf16.mxu0 0
  %2609 = vmatpush1.bf16.msra.mxu0 0
  %2610 = vmatprep.subr.bf16.mxu0 0
  %2611 = vmatpush1.bf16.msra.mxu0 0
  %2612 = vmatprep.subr.bf16.mxu0 0
  %2613 = vmatpush1.bf16.msra.mxu0 0
  %2614 = vmatprep.subr.bf16.mxu0 0
  %2615 = vmatpush1.bf16.msra.mxu0 0
  %2616 = vmatprep.subr.bf16.mxu0 0
  %2617 = vmatpush1.bf16.msra.mxu0 0
  %2618 = vmatprep.mubr.bf16.mxu0 0
  %2619 = vmatmul.mubr.bf16.gmra.mrb[0].mxu0 %v2584
  %v2620 = vpop.f32.mrb[0].mxu0
  %v2621 = vadd.f32 %v1776, %v2620
  %v2622 = vpop.f32.mrb[0].mxu0
  %v2623 = vadd.f32 %v1780, %v2622
  %v2624 = vpop.f32.mrb[0].mxu0
  %v2625 = vpop.f32.mrb[0].mxu0
  %2626 = vdwg.mxu0
  %v2627 = vxor.u32 %v2621, 2147483648
  %v2628 = vxor.u32 %v2623, 2147483648
  %v2629 = vmul.f32 %v2627, 1.442695
  %v2630 = vpow.pop %v2629
  %v2631 = vmul.f32 %v2628, 1.442695
  %v2632 = vpow.pop %v2631
  %v2633 = vadd.f32 %v2630, 1.0
  %v2634 = vadd.f32 %v2632, 1.0
  %v2635 = vrcp.pop %v2633
  %v2636 = vmul.f32 1.0, %v2635
  %v2637 = vrcp.pop %v2634
  %v2638 = vmul.f32 1.0, %v2637
  %v2639 = vtanh.pop %v2623
  %v2640 = vmul.f32 %v2636, %v2498
  %v2641 = vmul.f32 %v2636, %v2639
  %2643 = vrot.lane.b32.xlu0 %v2641, 64
  %v2644 = vpop.permute.xlu0 %2643
  %v2646 = vadd.f32 %v2640, %v2644
  %v2647 = vtanh.pop %v2646
  %v2648 = vmul.f32 %v2638, %v2647
  %v2649 = vpack.c.bf16 %v2572, %v2572
  %2651 = vrot.lane.b32.xlu0 %v2649, 32
  %v2652 = vpop.permute.xlu0 %2651
  %v2654 = vsel %vm1562, %v2652, 0
  %2656 = vmatprep.subr.bf16.mxu0 0
  %2657 = vmatpush1.bf16.msra.mxu0 %v1682
  %2658 = vmatprep.subr.bf16.mxu0 0
  %2659 = vmatpush1.bf16.msra.mxu0 %v1683
  %2660 = vmatprep.subr.bf16.mxu0 0
  %2661 = vmatpush1.bf16.msra.mxu0 0
  %2662 = vmatprep.subr.bf16.mxu0 0
  %2663 = vmatpush1.bf16.msra.mxu0 0
  %2664 = vmatprep.subr.bf16.mxu0 0
  %2665 = vmatpush1.bf16.msra.mxu0 0
  %2666 = vmatprep.subr.bf16.mxu0 0
  %2667 = vmatpush1.bf16.msra.mxu0 0
  %2668 = vmatprep.subr.bf16.mxu0 0
  %2669 = vmatpush1.bf16.msra.mxu0 0
  %2670 = vmatprep.subr.bf16.mxu0 0
  %2671 = vmatpush1.bf16.msra.mxu0 0
  %2672 = vmatprep.subr.bf16.mxu0 0
  %2673 = vmatpush1.bf16.msra.mxu0 0
  %2674 = vmatprep.subr.bf16.mxu0 0
  %2675 = vmatpush1.bf16.msra.mxu0 0
  %2676 = vmatprep.subr.bf16.mxu0 0
  %2677 = vmatpush1.bf16.msra.mxu0 0
  %2678 = vmatprep.subr.bf16.mxu0 0
  %2679 = vmatpush1.bf16.msra.mxu0 0
  %2680 = vmatprep.subr.bf16.mxu0 0
  %2681 = vmatpush1.bf16.msra.mxu0 0
  %2682 = vmatprep.subr.bf16.mxu0 0
  %2683 = vmatpush1.bf16.msra.mxu0 0
  %2684 = vmatprep.subr.bf16.mxu0 0
  %2685 = vmatpush1.bf16.msra.mxu0 0
  %2686 = vmatprep.subr.bf16.mxu0 0
  %2687 = vmatpush1.bf16.msra.mxu0 0
  %2688 = vmatprep.mubr.bf16.mxu0 0
  %2689 = vmatmul.mubr.bf16.gmra.mrb[0].mxu0 %v2654
  %v2690 = vpop.f32.mrb[0].mxu0
  %v2691 = vadd.f32 0.0, %v2690
  %v2692 = vpop.f32.mrb[0].mxu0
  %v2693 = vpop.f32.mrb[0].mxu0
  %v2694 = vpop.f32.mrb[0].mxu0
  %2695 = vdwg.mxu0
  %v2696 = vadd.f32 %v1665, %v2691
  %v2697 = vxor.u32 %v2696, 2147483648
  %v2698 = vmul.f32 %v2697, 1.442695
  %v2699 = vpow.pop %v2698
  %v2700 = vadd.f32 %v2699, 1.0
  %v2701 = vrcp.pop %v2700
  %v2702 = vmul.f32 1.0, %v2701
  %v2703 = vtanh.pop %v2696
  %v2704 = vmul.f32 %v2702, %v2566
  %2706 = vrot.lane.b32.xlu0 %v2703, 64
  %v2707 = vpop.permute.xlu0 %2706
  %v2709 = vmul.f32 %v2702, %v2707
  %2711 = vrot.lane.b32.xlu0 %v2709, 32
  %v2712 = vpop.permute.xlu0 %2711
  %v2714 = vadd.f32 %v2704, %v2712
  %v2715 = vtanh.pop %v2714
  %2717 = vrot.lane.b32.xlu0 %v2715, 64
  %v2718 = vpop.permute.xlu0 %2717
  %v2720 = vmul.f32 %v2702, %v2718
  %2722 = vrot.lane.b32.xlu0 %v2720, 32
  %v2723 = vpop.permute.xlu0 %2722
  %2726 = vrot.lane.b32.xlu0 %v2648, 96
  %v2727 = vpop.permute.xlu0 %2726
  %v2729 = vsel %vm1562, %v2723, %v2727
  %v2730 = vpack.c.bf16 %v2729, %v2729
  %v2732 = vsel %vm424, %v2730, 0
  %2734 = vmatprep.subr.bf16.mxu0 %v1820
  %2735 = vmatpush1.bf16.msra.mxu0 %v1819
  %2736 = vmatprep.subr.bf16.mxu0 %v1822
  %2737 = vmatpush1.bf16.msra.mxu0 %v1821
  %2738 = vmatprep.subr.bf16.mxu0 %v1824
  %2739 = vmatpush1.bf16.msra.mxu0 %v1823
  %2740 = vmatprep.subr.bf16.mxu0 %v1826
  %2741 = vmatpush1.bf16.msra.mxu0 %v1825
  %2742 = vmatprep.subr.bf16.mxu0 %v1828
  %2743 = vmatpush1.bf16.msra.mxu0 %v1827
  %2744 = vmatprep.subr.bf16.mxu0 %v1830
  %2745 = vmatpush1.bf16.msra.mxu0 %v1829
  %2746 = vmatprep.subr.bf16.mxu0 0
  %2747 = vmatpush1.bf16.msra.mxu0 0
  %2748 = vmatprep.subr.bf16.mxu0 0
  %2749 = vmatpush1.bf16.msra.mxu0 0
  %2750 = vmatprep.subr.bf16.mxu0 0
  %2751 = vmatpush1.bf16.msra.mxu0 0
  %2752 = vmatprep.subr.bf16.mxu0 0
  %2753 = vmatpush1.bf16.msra.mxu0 0
  %2754 = vmatprep.subr.bf16.mxu0 0
  %2755 = vmatpush1.bf16.msra.mxu0 0
  %2756 = vmatprep.subr.bf16.mxu0 0
  %2757 = vmatpush1.bf16.msra.mxu0 0
  %2758 = vmatprep.subr.bf16.mxu0 0
  %2759 = vmatpush1.bf16.msra.mxu0 0
  %2760 = vmatprep.subr.bf16.mxu0 0
  %2761 = vmatpush1.bf16.msra.mxu0 0
  %2762 = vmatprep.subr.bf16.mxu0 0
  %2763 = vmatpush1.bf16.msra.mxu0 0
  %2764 = vmatprep.subr.bf16.mxu0 0
  %2765 = vmatpush1.bf16.msra.mxu0 0
  %2766 = vmatprep.mubr.bf16.mxu0 0
  %2767 = vmatmul.mubr.bf16.gmra.mrb[0].mxu0 %v2732
  %v2768 = vpop.f32.mrb[0].mxu0
  %v2769 = vadd.f32 %v1776, %v2768
  %v2770 = vpop.f32.mrb[0].mxu0
  %v2771 = vadd.f32 %v1780, %v2770
  %v2772 = vpop.f32.mrb[0].mxu0
  %v2773 = vpop.f32.mrb[0].mxu0
  %2774 = vdwg.mxu0
  %v2775 = vxor.u32 %v2769, 2147483648
  %v2776 = vxor.u32 %v2771, 2147483648
  %v2777 = vmul.f32 %v2775, 1.442695
  %v2778 = vpow.pop %v2777
  %v2779 = vmul.f32 %v2776, 1.442695
  %v2780 = vpow.pop %v2779
  %v2781 = vadd.f32 %v2778, 1.0
  %v2782 = vadd.f32 %v2780, 1.0
  %v2783 = vrcp.pop %v2781
  %v2784 = vmul.f32 1.0, %v2783
  %v2785 = vrcp.pop %v2782
  %v2786 = vmul.f32 1.0, %v2785
  %v2787 = vtanh.pop %v2771
  %v2788 = vmul.f32 %v2784, %v2646
  %v2789 = vmul.f32 %v2784, %v2787
  %2791 = vrot.lane.b32.xlu0 %v2789, 64
  %v2792 = vpop.permute.xlu0 %2791
  %v2794 = vadd.f32 %v2788, %v2792
  %v2795 = vtanh.pop %v2794
  %v2796 = vmul.f32 %v2786, %v2795
  %v2797 = vpack.c.bf16 %v2720, %v2720
  %2799 = vrot.lane.b32.xlu0 %v2797, 32
  %v2800 = vpop.permute.xlu0 %2799
  %v2802 = vsel %vm1562, %v2800, 0
  %2804 = vmatprep.subr.bf16.mxu0 0
  %2805 = vmatpush1.bf16.msra.mxu0 %v1682
  %2806 = vmatprep.subr.bf16.mxu0 0
  %2807 = vmatpush1.bf16.msra.mxu0 %v1683
  %2808 = vmatprep.subr.bf16.mxu0 0
  %2809 = vmatpush1.bf16.msra.mxu0 0
  %2810 = vmatprep.subr.bf16.mxu0 0
  %2811 = vmatpush1.bf16.msra.mxu0 0
  %2812 = vmatprep.subr.bf16.mxu0 0
  %2813 = vmatpush1.bf16.msra.mxu0 0
  %2814 = vmatprep.subr.bf16.mxu0 0
  %2815 = vmatpush1.bf16.msra.mxu0 0
  %2816 = vmatprep.subr.bf16.mxu0 0
  %2817 = vmatpush1.bf16.msra.mxu0 0
  %2818 = vmatprep.subr.bf16.mxu0 0
  %2819 = vmatpush1.bf16.msra.mxu0 0
  %2820 = vmatprep.subr.bf16.mxu0 0
  %2821 = vmatpush1.bf16.msra.mxu0 0
  %2822 = vmatprep.subr.bf16.mxu0 0
  %2823 = vmatpush1.bf16.msra.mxu0 0
  %2824 = vmatprep.subr.bf16.mxu0 0
  %2825 = vmatpush1.bf16.msra.mxu0 0
  %2826 = vmatprep.subr.bf16.mxu0 0
  %2827 = vmatpush1.bf16.msra.mxu0 0
  %2828 = vmatprep.subr.bf16.mxu0 0
  %2829 = vmatpush1.bf16.msra.mxu0 0
  %2830 = vmatprep.subr.bf16.mxu0 0
  %2831 = vmatpush1.bf16.msra.mxu0 0
  %2832 = vmatprep.subr.bf16.mxu0 0
  %2833 = vmatpush1.bf16.msra.mxu0 0
  %2834 = vmatprep.subr.bf16.mxu0 0
  %2835 = vmatpush1.bf16.msra.mxu0 0
  %2836 = vmatprep.mubr.bf16.mxu0 0
  %2837 = vmatmul.mubr.bf16.gmra.mrb[0].mxu0 %v2802
  %v2838 = vpop.f32.mrb[0].mxu0
  %v2839 = vadd.f32 0.0, %v2838
  %v2840 = vpop.f32.mrb[0].mxu0
  %v2841 = vpop.f32.mrb[0].mxu0
  %v2842 = vpop.f32.mrb[0].mxu0
  %2843 = vdwg.mxu0
  %v2844 = vadd.f32 %v1665, %v2839
  %v2845 = vxor.u32 %v2844, 2147483648
  %v2846 = vmul.f32 %v2845, 1.442695
  %v2847 = vpow.pop %v2846
  %v2848 = vadd.f32 %v2847, 1.0
  %v2849 = vrcp.pop %v2848
  %v2850 = vmul.f32 1.0, %v2849
  %v2851 = vtanh.pop %v2844
  %v2852 = vmul.f32 %v2850, %v2714
  %2854 = vrot.lane.b32.xlu0 %v2851, 64
  %v2855 = vpop.permute.xlu0 %2854
  %v2857 = vmul.f32 %v2850, %v2855
  %2859 = vrot.lane.b32.xlu0 %v2857, 32
  %v2860 = vpop.permute.xlu0 %2859
  %v2862 = vadd.f32 %v2852, %v2860
  %v2863 = vtanh.pop %v2862
  %2865 = vrot.lane.b32.xlu0 %v2863, 64
  %v2866 = vpop.permute.xlu0 %2865
  %v2868 = vmul.f32 %v2850, %v2866
  %2870 = vrot.lane.b32.xlu0 %v2868, 32
  %v2871 = vpop.permute.xlu0 %2870
  %2874 = vrot.lane.b32.xlu0 %v2796, 96
  %v2875 = vpop.permute.xlu0 %2874
  %v2877 = vsel %vm1562, %v2871, %v2875
  %v2878 = vpack.c.bf16 %v2877, %v2877
  %v2880 = vsel %vm424, %v2878, 0
  %2882 = vmatprep.subr.bf16.mxu0 %v1820
  %2883 = vmatpush1.bf16.msra.mxu0 %v1819
  %2884 = vmatprep.subr.bf16.mxu0 %v1822
  %2885 = vmatpush1.bf16.msra.mxu0 %v1821
  %2886 = vmatprep.subr.bf16.mxu0 %v1824
  %2887 = vmatpush1.bf16.msra.mxu0 %v1823
  %2888 = vmatprep.subr.bf16.mxu0 %v1826
  %2889 = vmatpush1.bf16.msra.mxu0 %v1825
  %2890 = vmatprep.subr.bf16.mxu0 %v1828
  %2891 = vmatpush1.bf16.msra.mxu0 %v1827
  %2892 = vmatprep.subr.bf16.mxu0 %v1830
  %2893 = vmatpush1.bf16.msra.mxu0 %v1829
  %2894 = vmatprep.subr.bf16.mxu0 0
  %2895 = vmatpush1.bf16.msra.mxu0 0
  %2896 = vmatprep.subr.bf16.mxu0 0
  %2897 = vmatpush1.bf16.msra.mxu0 0
  %2898 = vmatprep.subr.bf16.mxu0 0
  %2899 = vmatpush1.bf16.msra.mxu0 0
  %2900 = vmatprep.subr.bf16.mxu0 0
  %2901 = vmatpush1.bf16.msra.mxu0 0
  %2902 = vmatprep.subr.bf16.mxu0 0
  %2903 = vmatpush1.bf16.msra.mxu0 0
  %2904 = vmatprep.subr.bf16.mxu0 0
  %2905 = vmatpush1.bf16.msra.mxu0 0
  %2906 = vmatprep.subr.bf16.mxu0 0
  %2907 = vmatpush1.bf16.msra.mxu0 0
  %2908 = vmatprep.subr.bf16.mxu0 0
  %2909 = vmatpush1.bf16.msra.mxu0 0
  %2910 = vmatprep.subr.bf16.mxu0 0
  %2911 = vmatpush1.bf16.msra.mxu0 0
  %2912 = vmatprep.subr.bf16.mxu0 0
  %2913 = vmatpush1.bf16.msra.mxu0 0
  %2914 = vmatprep.mubr.bf16.mxu0 0
  %2915 = vmatmul.mubr.bf16.gmra.mrb[0].mxu0 %v2880
  %v2916 = vpop.f32.mrb[0].mxu0
  %v2917 = vadd.f32 %v1776, %v2916
  %v2918 = vpop.f32.mrb[0].mxu0
  %v2919 = vadd.f32 %v1780, %v2918
  %v2920 = vpop.f32.mrb[0].mxu0
  %v2921 = vpop.f32.mrb[0].mxu0
  %2922 = vdwg.mxu0
  %v2923 = vxor.u32 %v2917, 2147483648
  %v2924 = vxor.u32 %v2919, 2147483648
  %v2925 = vmul.f32 %v2923, 1.442695
  %v2926 = vpow.pop %v2925
  %v2927 = vmul.f32 %v2924, 1.442695
  %v2928 = vpow.pop %v2927
  %v2929 = vadd.f32 %v2926, 1.0
  %v2930 = vadd.f32 %v2928, 1.0
  %v2931 = vrcp.pop %v2929
  %v2932 = vmul.f32 1.0, %v2931
  %v2933 = vrcp.pop %v2930
  %v2934 = vmul.f32 1.0, %v2933
  %v2935 = vtanh.pop %v2919
  %v2936 = vmul.f32 %v2932, %v2794
  %v2937 = vmul.f32 %v2932, %v2935
  %2939 = vrot.lane.b32.xlu0 %v2937, 64
  %v2940 = vpop.permute.xlu0 %2939
  %v2942 = vadd.f32 %v2936, %v2940
  %v2943 = vtanh.pop %v2942
  %v2944 = vmul.f32 %v2934, %v2943
  %v2945 = vpack.c.bf16 %v2056, %v1908
  %v2946 = vpack.c.bf16 %v2352, %v2204
  %v2947 = vpack.c.bf16 %v2648, %v2500
  %v2948 = vpack.c.bf16 %v2944, %v2796
  %v2949 = vld [vmem:[%s13] sm:$0xf]
  %v2950 = vld [vmem:[%s13 + $0x4] sm:$0xf]
  %v2951 = vld [vmem:[%s13 + $0x8] sm:$0xf]
  %v2952 = vld [vmem:[%s13 + $0xc] sm:$0xf]
  %v2953 = vld [vmem:[%s13 + $0x10] sm:$0xf]
  %v2954 = vld [vmem:[%s13 + $0x14] sm:$0xf]
  %v2955 = vld [vmem:[%s13 + $0x18] sm:$0xf]
  %v2956 = vld [vmem:[%s13 + $0x1c] sm:$0xf]
  %v2957 = vld [vmem:[%s14] sm:$0x1]
  %v2959 = vlaneseq
  %v2960 = vshrl.u32 %v2959, 7
  %v2961 = vsub.s32 0, %v2960
  %v2962 = vrot.slane %v2957, %v2961
  %2968 = vrot.lane.b32.xlu0 %v2945, 64
  %v2969 = vpop.permute.xlu0 %2968
  %2970 = vrot.lane.b32.xlu0 %v2946, 64
  %v2971 = vpop.permute.xlu0 %2970
  %2972 = vrot.lane.b32.xlu0 %v2947, 64
  %v2973 = vpop.permute.xlu0 %2972
  %2974 = vrot.lane.b32.xlu0 %v2948, 64
  %v2975 = vpop.permute.xlu0 %2974
  %v2984 = vunpack.c.l.b16 %v2949
  %v2985 = vunpack.c.l.b16 %v2950
  %v2986 = vunpack.c.l.b16 %v2951
  %v2987 = vunpack.c.l.b16 %v2952
  %v2988 = vunpack.c.l.b16 %v2953
  %v2989 = vunpack.c.l.b16 %v2954
  %v2990 = vunpack.c.l.b16 %v2955
  %v2991 = vunpack.c.l.b16 %v2956
  %v2992 = vpack.c.b16 %v2985, %v2984
  %v2993 = vpack.c.b16 %v2987, %v2986
  %v2994 = vpack.c.b16 %v2989, %v2988
  %v2995 = vpack.c.b16 %v2991, %v2990
  %v3001 = vsel %vm294, %v2969, 0
  %v3004 = vsel %vm294, %v2971, 0
  %v3007 = vsel %vm294, %v2973, 0
  %v3010 = vsel %vm294, %v2975, 0
  %3012 = vmatprep.subr.bf16.mxu0 0
  %3013 = vmatpush1.bf16.msra.mxu0 %v2992
  %3014 = vmatprep.subr.bf16.mxu0 0
  %3015 = vmatpush1.bf16.msra.mxu0 %v2993
  %3016 = vmatprep.subr.bf16.mxu0 0
  %3017 = vmatpush1.bf16.msra.mxu0 %v2994
  %3018 = vmatprep.subr.bf16.mxu0 0
  %3019 = vmatpush1.bf16.msra.mxu0 %v2995
  %3020 = vmatprep.subr.bf16.mxu0 0
  %3021 = vmatpush1.bf16.msra.mxu0 0
  %3022 = vmatprep.subr.bf16.mxu0 0
  %3023 = vmatpush1.bf16.msra.mxu0 0
  %3024 = vmatprep.subr.bf16.mxu0 0
  %3025 = vmatpush1.bf16.msra.mxu0 0
  %3026 = vmatprep.subr.bf16.mxu0 0
  %3027 = vmatpush1.bf16.msra.mxu0 0
  %3028 = vmatprep.subr.bf16.mxu0 0
  %3029 = vmatpush1.bf16.msra.mxu0 0
  %3030 = vmatprep.subr.bf16.mxu0 0
  %3031 = vmatpush1.bf16.msra.mxu0 0
  %3032 = vmatprep.subr.bf16.mxu0 0
  %3033 = vmatpush1.bf16.msra.mxu0 0
  %3034 = vmatprep.subr.bf16.mxu0 0
  %3035 = vmatpush1.bf16.msra.mxu0 0
  %3036 = vmatprep.subr.bf16.mxu0 0
  %3037 = vmatpush1.bf16.msra.mxu0 0
  %3038 = vmatprep.subr.bf16.mxu0 0
  %3039 = vmatpush1.bf16.msra.mxu0 0
  %3040 = vmatprep.subr.bf16.mxu0 0
  %3041 = vmatpush1.bf16.msra.mxu0 0
  %3042 = vmatprep.subr.bf16.mxu0 0
  %3043 = vmatpush1.bf16.msra.mxu0 0
  %3044 = vmatprep.mubr.bf16.mxu0 0
  %3045 = vmatmul.mubr.bf16.gmra.mrb[0].mxu0 %v3001
  %v3046 = vpop.f32.mrb[0].mxu0
  %v3047 = vadd.f32 %v2962, %v3046
  %v3048 = vpop.f32.mrb[0].mxu0
  %v3049 = vpop.f32.mrb[0].mxu0
  %v3050 = vadd.f32 %v2962, %v3049
  %v3051 = vpop.f32.mrb[0].mxu0
  %3052 = vmatprep.mubr.bf16.mxu0 0
  %3053 = vmatmul.mubr.bf16.gmra.mrb[0].mxu0 %v3004
  %v3054 = vpop.f32.mrb[0].mxu0
  %v3055 = vadd.f32 %v2962, %v3054
  %v3056 = vpop.f32.mrb[0].mxu0
  %v3057 = vpop.f32.mrb[0].mxu0
  %v3058 = vadd.f32 %v2962, %v3057
  %v3059 = vpop.f32.mrb[0].mxu0
  %3060 = vmatprep.mubr.bf16.mxu0 0
  %3061 = vmatmul.mubr.bf16.gmra.mrb[0].mxu0 %v3007
  %v3062 = vpop.f32.mrb[0].mxu0
  %v3063 = vadd.f32 %v2962, %v3062
  %v3064 = vpop.f32.mrb[0].mxu0
  %v3065 = vpop.f32.mrb[0].mxu0
  %v3066 = vadd.f32 %v2962, %v3065
  %v3067 = vpop.f32.mrb[0].mxu0
  %3068 = vmatprep.mubr.bf16.mxu0 0
  %3069 = vmatmul.mubr.bf16.gmra.mrb[0].mxu0 %v3010
  %v3070 = vpop.f32.mrb[0].mxu0
  %v3071 = vadd.f32 %v2962, %v3070
  %v3072 = vpop.f32.mrb[0].mxu0
  %v3073 = vpop.f32.mrb[0].mxu0
  %v3074 = vadd.f32 %v2962, %v3073
  %v3075 = vpop.f32.mrb[0].mxu0
  %3076 = vdwg.mxu0
  %3077 = vst [vmem:[%s15] sm:$0xff] %v3047
  %3078 = vst [vmem:[%s15 + $0x8] sm:$0xff] %v3050
  %3079 = vst [vmem:[%s15 + $0x10] sm:$0xff] %v3055
  %3080 = vst [vmem:[%s15 + $0x18] sm:$0xff] %v3058
  %3081 = vst [vmem:[%s15 + $0x20] sm:$0xff] %v3063
  %3082 = vst [vmem:[%s15 + $0x28] sm:$0xff] %v3066
  %3083 = vst [vmem:[%s15 + $0x30] sm:$0xff] %v3071
  %3084 = vst [vmem:[%s15 + $0x38] sm:$0xff] %v3074
  // Predicated region
  $region62: #{autoencoder_forward.1} parent=0 // pred_check
    _
  $region63: #{autoencoder_forward.1} parent=0 // pred_check_branch
    %3086 = sbr.rel (0) target = $region65
  $region64: #{autoencoder_forward.1} parent=0 // pred_region
    _
  $region65: #{autoencoder_forward.1} parent=0 // pred_fallthru
    _
  // Predicated region
  $region66: #{autoencoder_forward.1} parent=0 // pred_check
    _
  $region67: #{autoencoder_forward.1} parent=0 // pred_check_branch
    %3088 = sbr.rel (0) target = $region69
  $region68: #{autoencoder_forward.1} parent=0 // pred_region
    _
  $region69: #{autoencoder_forward.1} parent=0 // pred_fallthru
    _
  // Predicated region
  $region70: #{autoencoder_forward.1} parent=0 // pred_check
    _
  $region71: #{autoencoder_forward.1} parent=0 // pred_check_branch
    %3090 = sbr.rel (0) target = $region73
  $region72: #{autoencoder_forward.1} parent=0 // pred_region
    _
  $region73: #{autoencoder_forward.1} parent=0 // pred_fallthru
    _
  // Predicated region
  $region74: #{autoencoder_forward.1} parent=0 // pred_check
    _
  $region75: #{autoencoder_forward.1} parent=0 // pred_check_branch
    %3092 = sbr.rel (0) target = $region77
  $region76: #{autoencoder_forward.1} parent=0 // pred_region
    _
  $region77: #{autoencoder_forward.1} parent=0 // pred_fallthru
    _

</llo_original>
